<compile_context>
chip_gen: v5e
topology: v5e:2x2
jax: 0.10.0
libtpu: 0.0.40
codegen_flags: <defaults>
</compile_context>

<pallas_src>
import functools
import math

import jax
import jax.numpy as jnp
from jax.experimental import pallas as pl
from jax.experimental.pallas import tpu as pltpu


# ----------------------------- Pallas kernel ---------------------------------
def _encoder_stack_kernel(
    x_ref, xm_col_ref, xm_row_ref,
    wqkv_ref, bqkv_ref, wo_ref, bo_ref,
    g1_ref, be1_ref,
    wf1_ref, bf1_ref, wf2_ref, bf2_ref,
    g2_ref, be2_ref,
    ek_ref, ev_ref,
    o_ref,
    *, n_heads: int, window: int, eps: float = 1e-5,
):
    f32 = jnp.float32
    bf16 = jnp.bfloat16

    l_idx = pl.program_id(1)

    # Layer chaining: o_ref's block index only depends on the batch grid index, so the
    # same VMEM buffer is revisited for every layer of this batch row.  Seed it with the
    # (pre-masked) input activation at layer 0 and carry it across layers.
    @pl.when(l_idx == 0)
    def _():
        o_ref[0] = x_ref[0]

    x = o_ref[0]              # [T, C]  f32 activation entering this layer
    xm_col = xm_col_ref[0]    # [T, 1]
    xm_row = xm_row_ref[0]    # [1, T]
    T, C = x.shape
    H = n_heads
    dk = C // H

    # ---- head-invariant relative-position machinery (hoisted out of the head loop) ----
    row_i = jax.lax.broadcasted_iota(jnp.int32, (T, T), 0)
    col_j = jax.lax.broadcasted_iota(jnp.int32, (T, T), 1)
    relpos = col_j - row_i
    pad_bool = (xm_col * xm_row) == 0.0          # [T, T]; True where query or key is pad

    # valid relative-embedding rows for this sequence length (offset = e - window)
    e_lo = max(0, window - (T - 1))
    e_hi = min(2 * window, window + (T - 1))
    n_rel = e_hi - e_lo + 1
    diag_masks = [(relpos == (e - window)).astype(f32)
                  for e in range(e_lo, e_hi + 1)]          # built ONCE, shared by heads

    ek = ek_ref[0][e_lo:e_hi + 1, :]             # [n_rel, dk] bf16 (heads-shared)
    ev = ev_ref[0][e_lo:e_hi + 1, :]             # [n_rel, dk] f32

    x_bf = x.astype(bf16)

    # ---- fused QKV projection: one [T, C] @ [C, 3C] MXU matmul ----
    # (1/sqrt(dk) already folded into the Q slice of wqkv/bqkv by the wrapper)
    qkv = jnp.dot(x_bf, wqkv_ref[0], preferred_element_type=f32) + bqkv_ref[0]
    qkv_bf = qkv.astype(bf16)                    # [T, 3C]

    head_outs = []
    for h in range(H):                           # static unroll over heads
        q_h = qkv_bf[:, h * dk:(h + 1) * dk]
        k_h = qkv_bf[:, C + h * dk:C + (h + 1) * dk]
        v_h = qkv_bf[:, 2 * C + h * dk:2 * C + (h + 1) * dk]

        # content logits  q_h @ k_h^T
        scores = jax.lax.dot_general(
            q_h, k_h, (((1,), (1,)), ((), ())), preferred_element_type=f32)   # [T, T]

        # relative-key logits on the MXU, scattered onto diagonals with hoisted masks.
        rel_logits = jax.lax.dot_general(
            q_h, ek, (((1,), (1,)), ((), ())), preferred_element_type=f32)    # [T, n_rel]
        for idx in range(n_rel):
            scores = scores + diag_masks[idx] * rel_logits[:, idx:idx + 1]

        # mask + softmax (reference uses -1e4 fill); reciprocal on the EUP slot.
        scores = jnp.where(pad_bool, f32(-1e4), scores)
        s_max = jnp.max(scores, axis=-1, keepdims=True)
        p = jnp.exp(scores - s_max)
        p = p * pl.reciprocal(jnp.sum(p, axis=-1, keepdims=True), approx=True)

        out_h = jnp.dot(p.astype(bf16), v_h, preferred_element_type=f32)      # [T, dk]

        # relative-value term: gather the (2W+1)-wide band of p once, then ONE matmul.
        p_band = jnp.concatenate(
            [jnp.sum(p * diag_masks[idx], axis=-1, keepdims=True)
             for idx in range(n_rel)], axis=-1)                               # [T, n_rel]
        out_h = out_h + jnp.dot(p_band, ev, preferred_element_type=f32)

        head_outs.append(out_h)

    # ---- fused output projection: concat heads on lanes -> one [T,C] @ [C,C] matmul ----
    attn = jnp.concatenate(head_outs, axis=-1)                                # [T, C]
    y = jnp.dot(attn.astype(bf16), wo_ref[0], preferred_element_type=f32) + bo_ref[0]

    # ---- residual + LayerNorm over the channel axis (f32) ----
    def layer_norm(z, g, b):
        mean = jnp.mean(z, axis=-1, keepdims=True)
        var = jnp.mean((z - mean) ** 2, axis=-1, keepdims=True)
        return (z - mean) * jax.lax.rsqrt(var + eps) * g + b

    x1 = layer_norm(x + y, g1_ref[0], be1_ref[0])

    # ---- FFN (kernel_size == 1 -> matmuls; relu; masking as in the reference) ----
    # TODO(synk): kernel_size > 1 (same-padded Conv1d) and dropout > 0 not implemented
    #             (module defaults are kernel_size=1, p_dropout=0.0).
    h1 = jnp.dot((x1 * xm_col).astype(bf16), wf1_ref[0],
                 preferred_element_type=f32) + bf1_ref[0]
    h1 = jnp.maximum(h1, 0.0)
    h2 = jnp.dot((h1 * xm_col).astype(bf16), wf2_ref[0],
                 preferred_element_type=f32) + bf2_ref[0]
    y2 = h2 * xm_col

    o_ref[0] = layer_norm(x1 + y2, g2_ref[0], be2_ref[0]).astype(o_ref.dtype)


# ------------------------------ wrappers --------------------------------------
def _prep_layer(lp, n_heads):
    """Fold 1/sqrt(dk) into Q, fuse QKV weights, cast matmul weights to bf16."""
    C = lp["wq"].shape[0]
    dk = C // n_heads
    scale = 1.0 / math.sqrt(dk)
    bf16 = jnp.bfloat16
    wqkv = jnp.concatenate([lp["wq"] * scale, lp["wk"], lp["wv"]], axis=1)    # [C, 3C]
    bqkv = jnp.concatenate([lp["bq"] * scale, lp["bk"], lp["bv"]], axis=1)    # [1, 3C]
    return dict(
        wqkv=wqkv.astype(bf16), bqkv=bqkv,
        wo=lp["wo"].astype(bf16), bo=lp["bo"],
        g1=lp["g1"], be1=lp["be1"],
        wf1=lp["wf1"].astype(bf16), bf1=lp["bf1"],
        wf2=lp["wf2"].astype(bf16), bf2=lp["bf2"],
        g2=lp["g2"], be2=lp["be2"],
        ek=lp["emb_rel_k"].astype(bf16),   # [2W+1, dk]  heads-shared, as in reference
        ev=lp["emb_rel_v"],                # [2W+1, dk]  kept f32
    )


def _prep_stacked(params_list, n_heads):
    per_layer = [_prep_layer(lp, n_heads) for lp in params_list]
    return {k: jnp.stack([pl_[k] for pl_ in per_layer], axis=0)
            for k in per_layer[0]}


def _encoder_stack_call(x, xm_col, xm_row, w, n_heads, window, n_layers):
    B, T, C = x.shape
    L = n_layers
    kern = functools.partial(_encoder_stack_kernel, n_heads=n_heads, window=window)

    names = ["wqkv", "bqkv", "wo", "bo", "g1", "be1",
             "wf1", "bf1", "wf2", "bf2", "g2", "be2", "ek", "ev"]
    weights = [w[n] for n in names]

    def wspec(arr):
        # per-layer block; indexed by the layer grid axis -> next layer's weights
        # are prefetched while the current layer computes.
        nd = arr.ndim
        return pl.BlockSpec((1,) + arr.shape[1:],
                            lambda b, l, _nd=nd: (l,) + (0,) * (_nd - 1))

    in_specs = [
        pl.BlockSpec((1, T, C), lambda b, l: (b, 0, 0)),   # x (read at layer 0 only)
        pl.BlockSpec((1, T, 1), lambda b, l: (b, 0, 0)),   # x_mask as column [T, 1]
        pl.BlockSpec((1, 1, T), lambda b, l: (b, 0, 0)),   # x_mask as row    [1, T]
    ] + [wspec(a) for a in weights]

    # advisory cost estimate for XLA's scheduler
    dk = C // n_heads
    F = int(w["wf1"].shape[-1])
    n_rel = min(2 * window + 1, 2 * T - 1)
    flops_per_bl = (
        2 * T * C * (3 * C)                                  # fused QKV
        + n_heads * (2 * T * T * dk * 2                      # q@k^T and p@v
                     + 2 * T * n_rel * dk * 2)               # rel-key logits, p_band@ev
        + 2 * T * C * C                                      # output projection
        + 2 * T * C * F * 2                                  # FFN
    )
    weight_bytes = int(sum(a.size * a.dtype.itemsize for a in weights))
    cost = pl.CostEstimate(
        flops=int(B * L * flops_per_bl),
        transcendentals=int(B * L * n_heads * T * T),
        bytes_accessed=int(2 * x.size * 4 + B * weight_bytes),
    )

    return pl.pallas_call(
        kern,
        out_shape=jax.ShapeDtypeStruct((B, T, C), jnp.float32),
        grid_spec=pltpu.PrefetchScalarGridSpec(
            num_scalar_prefetch=0,
            grid=(B, L),
            in_specs=in_specs,
            out_specs=pl.BlockSpec((1, T, C), lambda b, l: (b, 0, 0)),
        ),
        compiler_params=pltpu.CompilerParams(
            dimension_semantics=("parallel", "arbitrary")),
        cost_estimate=cost,
    )(x, xm_col, xm_row, *weights)


def encoder_forward(x_bct, x_mask_b1t, params_list, n_heads, window_size):
    """x_bct: [B, C, T] (PyTorch NCT), x_mask_b1t: [B, 1, T] -> returns [B, C, T]."""
    x = jnp.transpose(x_bct, (0, 2, 1))              # [B, T, C]
    xm_col = jnp.transpose(x_mask_b1t, (0, 2, 1))    # [B, T, 1]
    xm_row = x_mask_b1t                              # [B, 1, T]
    x = x * xm_col
    w = _prep_stacked(params_list, n_heads)
    y = _encoder_stack_call(x, xm_col, xm_row, w, n_heads, window_size,
                            n_layers=len(params_list))
    y = y * xm_col
    return jnp.transpose(y, (0, 2, 1))


def init_params(key, C, F, H, n_layers, window_size):
    dk = C // H
    params = []
    for l in range(n_layers):
        ks = jax.random.split(jax.random.fold_in(key, l), 14)

        def conv(kw, kb, cin, cout):
            # weights stored pre-transposed as [cin, cout] so the kernel does x @ w + b
            bound = 1.0 / math.sqrt(cin)
            w = jax.random.uniform(kw, (cin, cout), jnp.float32, -bound, bound)
            b = jax.random.uniform(kb, (1, cout), jnp.float32, -bound, bound)
            return w, b

        wq, bq = conv(ks[0], ks[1], C, C)
        wk, bk = conv(ks[2], ks[3], C, C)
        wv, bv = conv(ks[4], ks[5], C, C)
        wo, bo = conv(ks[6], ks[7], C, C)
        wf1, bf1 = conv(ks[8], ks[9], C, F)
        wf2, bf2 = conv(ks[10], ks[11], F, C)
        emb_rel_k = jax.random.normal(ks[12], (2 * window_size + 1, dk), jnp.float32) * dk ** -0.5
        emb_rel_v = jax.random.normal(ks[13], (2 * window_size + 1, dk), jnp.float32) * dk ** -0.5
        params.append(dict(
            wq=wq, bq=bq, wk=wk, bk=bk, wv=wv, bv=bv, wo=wo, bo=bo,
            g1=jnp.ones((1, C), jnp.float32), be1=jnp.zeros((1, C), jnp.float32),
            wf1=wf1, bf1=bf1, wf2=wf2, bf2=bf2,
            g2=jnp.ones((1, C), jnp.float32), be2=jnp.zeros((1, C), jnp.float32),
            emb_rel_k=emb_rel_k, emb_rel_v=emb_rel_v,
        ))
    return params


if __name__ == "__main__":
    # hidden_channels=32, filter_channels=64, n_heads=2, n_layers=2,
    # kernel_size=1 (default), p_dropout=0.0 (default), window_size=10 (default)
    B, T = 2, 16
    C, F, H, L, W = 32, 64, 2, 2, 10

    key = jax.random.PRNGKey(0)
    kx, kp = jax.random.split(key)
    x = jax.random.normal(kx, (B, C, T), jnp.float32)            # PyTorch [B, C, T]
    lengths = jnp.array([16, 11])
    x_mask = (jnp.arange(T)[None, :] < lengths[:, None]).astype(jnp.float32)[:, None, :]  # [B,1,T]

    params = init_params(kp, C, F, H, L, W)
    out = encoder_forward(x, x_mask, params, n_heads=H, window_size=W)
    out = jax.block_until_ready(out)

    assert out.shape == (B, C, T)
    assert bool(jnp.all(jnp.isfinite(out)))
    print("KERNEL_OK")
</pallas_src>

<mosaic_0001>
module attributes {stable_mosaic.version = 11 : i64} {
  func.func @_encoder_stack_kernel(%arg0: i32, %arg1: i32, %arg2: memref<1x16x32xf32, #tpu.memory_space<vmem>>, %arg3: memref<1x16x1xf32, #tpu.memory_space<vmem>>, %arg4: memref<1x1x16xf32, #tpu.memory_space<vmem>>, %arg5: memref<1x32x96xbf16, #tpu.memory_space<vmem>>, %arg6: memref<1x1x96xf32, #tpu.memory_space<vmem>>, %arg7: memref<1x32x32xbf16, #tpu.memory_space<vmem>>, %arg8: memref<1x1x32xf32, #tpu.memory_space<vmem>>, %arg9: memref<1x1x32xf32, #tpu.memory_space<vmem>>, %arg10: memref<1x1x32xf32, #tpu.memory_space<vmem>>, %arg11: memref<1x32x64xbf16, #tpu.memory_space<vmem>>, %arg12: memref<1x1x64xf32, #tpu.memory_space<vmem>>, %arg13: memref<1x64x32xbf16, #tpu.memory_space<vmem>>, %arg14: memref<1x1x32xf32, #tpu.memory_space<vmem>>, %arg15: memref<1x1x32xf32, #tpu.memory_space<vmem>>, %arg16: memref<1x1x32xf32, #tpu.memory_space<vmem>>, %arg17: memref<1x21x16xbf16, #tpu.memory_space<vmem>>, %arg18: memref<1x21x16xf32, #tpu.memory_space<vmem>>, %arg19: memref<1x16x32xf32, #tpu.memory_space<vmem>>) attributes {dimension_semantics = [#tpu.dimension_semantics<parallel>, #tpu.dimension_semantics<arbitrary>], iteration_bounds = array<i64: 2, 2>, scalar_prefetch = 0 : i64, scratch_operands = 0 : i64, tpu.core_type = #tpu.core_type<tc>, window_params = [{transform_indices = @transform_0, window_bounds = array<i64: 1, 16, 32>}, {transform_indices = @transform_1, window_bounds = array<i64: 1, 16, 1>}, {transform_indices = @transform_2, window_bounds = array<i64: 1, 1, 16>}, {transform_indices = @transform_3, window_bounds = array<i64: 1, 32, 96>}, {transform_indices = @transform_4, window_bounds = array<i64: 1, 1, 96>}, {transform_indices = @transform_5, window_bounds = array<i64: 1, 32, 32>}, {transform_indices = @transform_6, window_bounds = array<i64: 1, 1, 32>}, {transform_indices = @transform_7, window_bounds = array<i64: 1, 1, 32>}, {transform_indices = @transform_8, window_bounds = array<i64: 1, 1, 32>}, {transform_indices = @transform_9, window_bounds = array<i64: 1, 32, 64>}, {transform_indices = @transform_10, window_bounds = array<i64: 1, 1, 64>}, {transform_indices = @transform_11, window_bounds = array<i64: 1, 64, 32>}, {transform_indices = @transform_12, window_bounds = array<i64: 1, 1, 32>}, {transform_indices = @transform_13, window_bounds = array<i64: 1, 1, 32>}, {transform_indices = @transform_14, window_bounds = array<i64: 1, 1, 32>}, {transform_indices = @transform_15, window_bounds = array<i64: 1, 21, 16>}, {transform_indices = @transform_16, window_bounds = array<i64: 1, 21, 16>}, {transform_indices = @transform_17, window_bounds = array<i64: 1, 16, 32>}]} {
    %c0_i32 = arith.constant 0 : i32
    %0 = arith.cmpi eq, %arg1, %c0_i32 : i32
    %1 = arith.extui %0 : i1 to i32
    %c0_i32_0 = arith.constant 0 : i32
    %2 = arith.cmpi ne, %1, %c0_i32_0 : i32
    scf.if %2 {
      %c0_126 = arith.constant 0 : index
      %c0_127 = arith.constant 0 : index
      %c0_128 = arith.constant 0 : index
      %546 = vector.load %arg2[%c0_126, %c0_127, %c0_128] : memref<1x16x32xf32, #tpu.memory_space<vmem>>, vector<1x16x32xf32>
      %547 = vector.shape_cast %546 : vector<1x16x32xf32> to vector<16x32xf32>
      %c0_129 = arith.constant 0 : index
      %c0_130 = arith.constant 0 : index
      %c0_131 = arith.constant 0 : index
      %548 = vector.load %arg19[%c0_129, %c0_130, %c0_131] : memref<1x16x32xf32, #tpu.memory_space<vmem>>, vector<1x16x32xf32>
      %549 = vector.shape_cast %548 : vector<1x16x32xf32> to vector<16x32xf32>
      %550 = vector.shape_cast %547 : vector<16x32xf32> to vector<1x16x32xf32>
      tpu.vector_store %arg19[%c0_129, %c0_130, %c0_131], %550 {strides = array<i32>} : memref<1x16x32xf32, #tpu.memory_space<vmem>>, vector<1x16x32xf32>,
    } else {
    }
    %c0 = arith.constant 0 : index
    %c0_1 = arith.constant 0 : index
    %c0_2 = arith.constant 0 : index
    %3 = vector.load %arg19[%c0, %c0_1, %c0_2] : memref<1x16x32xf32, #tpu.memory_space<vmem>>, vector<1x16x32xf32>
    %4 = vector.shape_cast %3 : vector<1x16x32xf32> to vector<16x32xf32>
    %c0_3 = arith.constant 0 : index
    %c0_4 = arith.constant 0 : index
    %c0_5 = arith.constant 0 : index
    %5 = vector.load %arg3[%c0_3, %c0_4, %c0_5] : memref<1x16x1xf32, #tpu.memory_space<vmem>>, vector<1x16x1xf32>
    %6 = vector.shape_cast %5 : vector<1x16x1xf32> to vector<16x1xf32>
    %c0_6 = arith.constant 0 : index
    %c0_7 = arith.constant 0 : index
    %c0_8 = arith.constant 0 : index
    %7 = vector.load %arg4[%c0_6, %c0_7, %c0_8] : memref<1x1x16xf32, #tpu.memory_space<vmem>>, vector<1x1x16xf32>
    %8 = vector.shape_cast %7 : vector<1x1x16xf32> to vector<1x16xf32>
    %9 = tpu.iota {dimensions = array<i32: 0>} : vector<16x16xi32>
    %10 = tpu.iota {dimensions = array<i32: 1>} : vector<16x16xi32>
    %11 = arith.subi %10, %9 : vector<16x16xi32>
    %12 = vector.broadcast %6 : vector<16x1xf32> to vector<16x16xf32>
    %13 = vector.broadcast %8 : vector<1x16xf32> to vector<16x16xf32>
    %14 = arith.mulf %12, %13 : vector<16x16xf32>
    %cst = arith.constant 0.000000e+00 : f32
    %15 = vector.broadcast %cst : f32 to vector<16x16xf32>
    %16 = arith.cmpf oeq, %14, %15 : vector<16x16xf32>
    %c-10_i32 = arith.constant -10 : i32
    %17 = vector.broadcast %c-10_i32 : i32 to vector<16x16xi32>
    %18 = arith.cmpi eq, %11, %17 : vector<16x16xi32>
    %19 = arith.extui %18 : vector<16x16xi1> to vector<16x16xi32>
    %20 = arith.sitofp %19 : vector<16x16xi32> to vector<16x16xf32>
    %c-9_i32 = arith.constant -9 : i32
    %21 = vector.broadcast %c-9_i32 : i32 to vector<16x16xi32>
    %22 = arith.cmpi eq, %11, %21 : vector<16x16xi32>
    %23 = arith.extui %22 : vector<16x16xi1> to vector<16x16xi32>
    %24 = arith.sitofp %23 : vector<16x16xi32> to vector<16x16xf32>
    %c-8_i32 = arith.constant -8 : i32
    %25 = vector.broadcast %c-8_i32 : i32 to vector<16x16xi32>
    %26 = arith.cmpi eq, %11, %25 : vector<16x16xi32>
    %27 = arith.extui %26 : vector<16x16xi1> to vector<16x16xi32>
    %28 = arith.sitofp %27 : vector<16x16xi32> to vector<16x16xf32>
    %c-7_i32 = arith.constant -7 : i32
    %29 = vector.broadcast %c-7_i32 : i32 to vector<16x16xi32>
    %30 = arith.cmpi eq, %11, %29 : vector<16x16xi32>
    %31 = arith.extui %30 : vector<16x16xi1> to vector<16x16xi32>
    %32 = arith.sitofp %31 : vector<16x16xi32> to vector<16x16xf32>
    %c-6_i32 = arith.constant -6 : i32
    %33 = vector.broadcast %c-6_i32 : i32 to vector<16x16xi32>
    %34 = arith.cmpi eq, %11, %33 : vector<16x16xi32>
    %35 = arith.extui %34 : vector<16x16xi1> to vector<16x16xi32>
    %36 = arith.sitofp %35 : vector<16x16xi32> to vector<16x16xf32>
    %c-5_i32 = arith.constant -5 : i32
    %37 = vector.broadcast %c-5_i32 : i32 to vector<16x16xi32>
    %38 = arith.cmpi eq, %11, %37 : vector<16x16xi32>
    %39 = arith.extui %38 : vector<16x16xi1> to vector<16x16xi32>
    %40 = arith.sitofp %39 : vector<16x16xi32> to vector<16x16xf32>
    %c-4_i32 = arith.constant -4 : i32
    %41 = vector.broadcast %c-4_i32 : i32 to vector<16x16xi32>
    %42 = arith.cmpi eq, %11, %41 : vector<16x16xi32>
    %43 = arith.extui %42 : vector<16x16xi1> to vector<16x16xi32>
    %44 = arith.sitofp %43 : vector<16x16xi32> to vector<16x16xf32>
    %c-3_i32 = arith.constant -3 : i32
    %45 = vector.broadcast %c-3_i32 : i32 to vector<16x16xi32>
    %46 = arith.cmpi eq, %11, %45 : vector<16x16xi32>
    %47 = arith.extui %46 : vector<16x16xi1> to vector<16x16xi32>
    %48 = arith.sitofp %47 : vector<16x16xi32> to vector<16x16xf32>
    %c-2_i32 = arith.constant -2 : i32
    %49 = vector.broadcast %c-2_i32 : i32 to vector<16x16xi32>
    %50 = arith.cmpi eq, %11, %49 : vector<16x16xi32>
    %51 = arith.extui %50 : vector<16x16xi1> to vector<16x16xi32>
    %52 = arith.sitofp %51 : vector<16x16xi32> to vector<16x16xf32>
    %c-1_i32 = arith.constant -1 : i32
    %53 = vector.broadcast %c-1_i32 : i32 to vector<16x16xi32>
    %54 = arith.cmpi eq, %11, %53 : vector<16x16xi32>
    %55 = arith.extui %54 : vector<16x16xi1> to vector<16x16xi32>
    %56 = arith.sitofp %55 : vector<16x16xi32> to vector<16x16xf32>
    %c0_i32_9 = arith.constant 0 : i32
    %57 = vector.broadcast %c0_i32_9 : i32 to vector<16x16xi32>
    %58 = arith.cmpi eq, %11, %57 : vector<16x16xi32>
    %59 = arith.extui %58 : vector<16x16xi1> to vector<16x16xi32>
    %60 = arith.sitofp %59 : vector<16x16xi32> to vector<16x16xf32>
    %c1_i32 = arith.constant 1 : i32
    %61 = vector.broadcast %c1_i32 : i32 to vector<16x16xi32>
    %62 = arith.cmpi eq, %11, %61 : vector<16x16xi32>
    %63 = arith.extui %62 : vector<16x16xi1> to vector<16x16xi32>
    %64 = arith.sitofp %63 : vector<16x16xi32> to vector<16x16xf32>
    %c2_i32 = arith.constant 2 : i32
    %65 = vector.broadcast %c2_i32 : i32 to vector<16x16xi32>
    %66 = arith.cmpi eq, %11, %65 : vector<16x16xi32>
    %67 = arith.extui %66 : vector<16x16xi1> to vector<16x16xi32>
    %68 = arith.sitofp %67 : vector<16x16xi32> to vector<16x16xf32>
    %c3_i32 = arith.constant 3 : i32
    %69 = vector.broadcast %c3_i32 : i32 to vector<16x16xi32>
    %70 = arith.cmpi eq, %11, %69 : vector<16x16xi32>
    %71 = arith.extui %70 : vector<16x16xi1> to vector<16x16xi32>
    %72 = arith.sitofp %71 : vector<16x16xi32> to vector<16x16xf32>
    %c4_i32 = arith.constant 4 : i32
    %73 = vector.broadcast %c4_i32 : i32 to vector<16x16xi32>
    %74 = arith.cmpi eq, %11, %73 : vector<16x16xi32>
    %75 = arith.extui %74 : vector<16x16xi1> to vector<16x16xi32>
    %76 = arith.sitofp %75 : vector<16x16xi32> to vector<16x16xf32>
    %c5_i32 = arith.constant 5 : i32
    %77 = vector.broadcast %c5_i32 : i32 to vector<16x16xi32>
    %78 = arith.cmpi eq, %11, %77 : vector<16x16xi32>
    %79 = arith.extui %78 : vector<16x16xi1> to vector<16x16xi32>
    %80 = arith.sitofp %79 : vector<16x16xi32> to vector<16x16xf32>
    %c6_i32 = arith.constant 6 : i32
    %81 = vector.broadcast %c6_i32 : i32 to vector<16x16xi32>
    %82 = arith.cmpi eq, %11, %81 : vector<16x16xi32>
    %83 = arith.extui %82 : vector<16x16xi1> to vector<16x16xi32>
    %84 = arith.sitofp %83 : vector<16x16xi32> to vector<16x16xf32>
    %c7_i32 = arith.constant 7 : i32
    %85 = vector.broadcast %c7_i32 : i32 to vector<16x16xi32>
    %86 = arith.cmpi eq, %11, %85 : vector<16x16xi32>
    %87 = arith.extui %86 : vector<16x16xi1> to vector<16x16xi32>
    %88 = arith.sitofp %87 : vector<16x16xi32> to vector<16x16xf32>
    %c8_i32 = arith.constant 8 : i32
    %89 = vector.broadcast %c8_i32 : i32 to vector<16x16xi32>
    %90 = arith.cmpi eq, %11, %89 : vector<16x16xi32>
    %91 = arith.extui %90 : vector<16x16xi1> to vector<16x16xi32>
    %92 = arith.sitofp %91 : vector<16x16xi32> to vector<16x16xf32>
    %c9_i32 = arith.constant 9 : i32
    %93 = vector.broadcast %c9_i32 : i32 to vector<16x16xi32>
    %94 = arith.cmpi eq, %11, %93 : vector<16x16xi32>
    %95 = arith.extui %94 : vector<16x16xi1> to vector<16x16xi32>
    %96 = arith.sitofp %95 : vector<16x16xi32> to vector<16x16xf32>
    %c10_i32 = arith.constant 10 : i32
    %97 = vector.broadcast %c10_i32 : i32 to vector<16x16xi32>
    %98 = arith.cmpi eq, %11, %97 : vector<16x16xi32>
    %99 = arith.extui %98 : vector<16x16xi1> to vector<16x16xi32>
    %100 = arith.sitofp %99 : vector<16x16xi32> to vector<16x16xf32>
    %c0_10 = arith.constant 0 : index
    %c0_11 = arith.constant 0 : index
    %c0_12 = arith.constant 0 : index
    %101 = vector.load %arg17[%c0_10, %c0_11, %c0_12] : memref<1x21x16xbf16, #tpu.memory_space<vmem>>, vector<1x21x16xbf16>
    %102 = vector.shape_cast %101 : vector<1x21x16xbf16> to vector<21x16xbf16>
    %c0_13 = arith.constant 0 : index
    %c0_14 = arith.constant 0 : index
    %c0_15 = arith.constant 0 : index
    %103 = vector.load %arg18[%c0_13, %c0_14, %c0_15] : memref<1x21x16xf32, #tpu.memory_space<vmem>>, vector<1x21x16xf32>
    %104 = vector.shape_cast %103 : vector<1x21x16xf32> to vector<21x16xf32>
    %105 = arith.truncf %4 : vector<16x32xf32> to vector<16x32xbf16>
    %c0_16 = arith.constant 0 : index
    %c0_17 = arith.constant 0 : index
    %c0_18 = arith.constant 0 : index
    %106 = vector.load %arg5[%c0_16, %c0_17, %c0_18] : memref<1x32x96xbf16, #tpu.memory_space<vmem>>, vector<1x32x96xbf16>
    %107 = vector.shape_cast %106 : vector<1x32x96xbf16> to vector<32x96xbf16>
    %cst_19 = arith.constant dense<0.000000e+00> : vector<16x96xf32>
    %108 = tpu.matmul %105, %107, %cst_19 {dimension_numbers = #tpu.dot_dimension_numbers<[1], [0], [0], [1], [0, 0, 1, 1], [], []>} : vector<16x32xbf16>, vector<32x96xbf16>, vector<16x96xf32> -> vector<16x96xf32>
    %c0_20 = arith.constant 0 : index
    %c0_21 = arith.constant 0 : index
    %c0_22 = arith.constant 0 : index
    %109 = vector.load %arg6[%c0_20, %c0_21, %c0_22] : memref<1x1x96xf32, #tpu.memory_space<vmem>>, vector<1x1x96xf32>
    %110 = vector.shape_cast %109 : vector<1x1x96xf32> to vector<1x96xf32>
    %111 = vector.broadcast %110 : vector<1x96xf32> to vector<16x96xf32>
    %112 = arith.addf %108, %111 : vector<16x96xf32>
    %113 = arith.truncf %112 : vector<16x96xf32> to vector<16x96xbf16>
    %114 = vector.extract_strided_slice %113 {offsets = [0, 0], sizes = [16, 16], strides = [1, 1]} : vector<16x96xbf16> to vector<16x16xbf16>
    %115 = vector.extract_strided_slice %113 {offsets = [0, 32], sizes = [16, 16], strides = [1, 1]} : vector<16x96xbf16> to vector<16x16xbf16>
    %116 = vector.extract_strided_slice %113 {offsets = [0, 64], sizes = [16, 16], strides = [1, 1]} : vector<16x96xbf16> to vector<16x16xbf16>
    %cst_23 = arith.constant dense<0.000000e+00> : vector<16x16xf32>
    %117 = tpu.matmul %114, %115, %cst_23 {dimension_numbers = #tpu.dot_dimension_numbers<[1], [1], [0], [0], [0, 0, 1, 0], [], []>} : vector<16x16xbf16>, vector<16x16xbf16>, vector<16x16xf32> -> vector<16x16xf32>
    %cst_24 = arith.constant dense<0.000000e+00> : vector<16x21xf32>
    %118 = tpu.matmul %114, %102, %cst_24 {dimension_numbers = #tpu.dot_dimension_numbers<[1], [1], [0], [0], [0, 0, 1, 0], [], []>} : vector<16x16xbf16>, vector<21x16xbf16>, vector<16x21xf32> -> vector<16x21xf32>
    %119 = vector.extract_strided_slice %118 {offsets = [0, 0], sizes = [16, 1], strides = [1, 1]} : vector<16x21xf32> to vector<16x1xf32>
    %120 = vector.broadcast %119 : vector<16x1xf32> to vector<16x16xf32>
    %121 = arith.mulf %20, %120 : vector<16x16xf32>
    %122 = arith.addf %117, %121 : vector<16x16xf32>
    %123 = vector.extract_strided_slice %118 {offsets = [0, 1], sizes = [16, 1], strides = [1, 1]} : vector<16x21xf32> to vector<16x1xf32>
    %124 = vector.broadcast %123 : vector<16x1xf32> to vector<16x16xf32>
    %125 = arith.mulf %24, %124 : vector<16x16xf32>
    %126 = arith.addf %122, %125 : vector<16x16xf32>
    %127 = vector.extract_strided_slice %118 {offsets = [0, 2], sizes = [16, 1], strides = [1, 1]} : vector<16x21xf32> to vector<16x1xf32>
    %128 = vector.broadcast %127 : vector<16x1xf32> to vector<16x16xf32>
    %129 = arith.mulf %28, %128 : vector<16x16xf32>
    %130 = arith.addf %126, %129 : vector<16x16xf32>
    %131 = vector.extract_strided_slice %118 {offsets = [0, 3], sizes = [16, 1], strides = [1, 1]} : vector<16x21xf32> to vector<16x1xf32>
    %132 = vector.broadcast %131 : vector<16x1xf32> to vector<16x16xf32>
    %133 = arith.mulf %32, %132 : vector<16x16xf32>
    %134 = arith.addf %130, %133 : vector<16x16xf32>
    %135 = vector.extract_strided_slice %118 {offsets = [0, 4], sizes = [16, 1], strides = [1, 1]} : vector<16x21xf32> to vector<16x1xf32>
    %136 = vector.broadcast %135 : vector<16x1xf32> to vector<16x16xf32>
    %137 = arith.mulf %36, %136 : vector<16x16xf32>
    %138 = arith.addf %134, %137 : vector<16x16xf32>
    %139 = vector.extract_strided_slice %118 {offsets = [0, 5], sizes = [16, 1], strides = [1, 1]} : vector<16x21xf32> to vector<16x1xf32>
    %140 = vector.broadcast %139 : vector<16x1xf32> to vector<16x16xf32>
    %141 = arith.mulf %40, %140 : vector<16x16xf32>
    %142 = arith.addf %138, %141 : vector<16x16xf32>
    %143 = vector.extract_strided_slice %118 {offsets = [0, 6], sizes = [16, 1], strides = [1, 1]} : vector<16x21xf32> to vector<16x1xf32>
    %144 = vector.broadcast %143 : vector<16x1xf32> to vector<16x16xf32>
    %145 = arith.mulf %44, %144 : vector<16x16xf32>
    %146 = arith.addf %142, %145 : vector<16x16xf32>
    %147 = vector.extract_strided_slice %118 {offsets = [0, 7], sizes = [16, 1], strides = [1, 1]} : vector<16x21xf32> to vector<16x1xf32>
    %148 = vector.broadcast %147 : vector<16x1xf32> to vector<16x16xf32>
    %149 = arith.mulf %48, %148 : vector<16x16xf32>
    %150 = arith.addf %146, %149 : vector<16x16xf32>
    %151 = vector.extract_strided_slice %118 {offsets = [0, 8], sizes = [16, 1], strides = [1, 1]} : vector<16x21xf32> to vector<16x1xf32>
    %152 = vector.broadcast %151 : vector<16x1xf32> to vector<16x16xf32>
    %153 = arith.mulf %52, %152 : vector<16x16xf32>
    %154 = arith.addf %150, %153 : vector<16x16xf32>
    %155 = vector.extract_strided_slice %118 {offsets = [0, 9], sizes = [16, 1], strides = [1, 1]} : vector<16x21xf32> to vector<16x1xf32>
    %156 = vector.broadcast %155 : vector<16x1xf32> to vector<16x16xf32>
    %157 = arith.mulf %56, %156 : vector<16x16xf32>
    %158 = arith.addf %154, %157 : vector<16x16xf32>
    %159 = vector.extract_strided_slice %118 {offsets = [0, 10], sizes = [16, 1], strides = [1, 1]} : vector<16x21xf32> to vector<16x1xf32>
    %160 = vector.broadcast %159 : vector<16x1xf32> to vector<16x16xf32>
    %161 = arith.mulf %60, %160 : vector<16x16xf32>
    %162 = arith.addf %158, %161 : vector<16x16xf32>
    %163 = vector.extract_strided_slice %118 {offsets = [0, 11], sizes = [16, 1], strides = [1, 1]} : vector<16x21xf32> to vector<16x1xf32>
    %164 = vector.broadcast %163 : vector<16x1xf32> to vector<16x16xf32>
    %165 = arith.mulf %64, %164 : vector<16x16xf32>
    %166 = arith.addf %162, %165 : vector<16x16xf32>
    %167 = vector.extract_strided_slice %118 {offsets = [0, 12], sizes = [16, 1], strides = [1, 1]} : vector<16x21xf32> to vector<16x1xf32>
    %168 = vector.broadcast %167 : vector<16x1xf32> to vector<16x16xf32>
    %169 = arith.mulf %68, %168 : vector<16x16xf32>
    %170 = arith.addf %166, %169 : vector<16x16xf32>
    %171 = vector.extract_strided_slice %118 {offsets = [0, 13], sizes = [16, 1], strides = [1, 1]} : vector<16x21xf32> to vector<16x1xf32>
    %172 = vector.broadcast %171 : vector<16x1xf32> to vector<16x16xf32>
    %173 = arith.mulf %72, %172 : vector<16x16xf32>
    %174 = arith.addf %170, %173 : vector<16x16xf32>
    %175 = vector.extract_strided_slice %118 {offsets = [0, 14], sizes = [16, 1], strides = [1, 1]} : vector<16x21xf32> to vector<16x1xf32>
    %176 = vector.broadcast %175 : vector<16x1xf32> to vector<16x16xf32>
    %177 = arith.mulf %76, %176 : vector<16x16xf32>
    %178 = arith.addf %174, %177 : vector<16x16xf32>
    %179 = vector.extract_strided_slice %118 {offsets = [0, 15], sizes = [16, 1], strides = [1, 1]} : vector<16x21xf32> to vector<16x1xf32>
    %180 = vector.broadcast %179 : vector<16x1xf32> to vector<16x16xf32>
    %181 = arith.mulf %80, %180 : vector<16x16xf32>
    %182 = arith.addf %178, %181 : vector<16x16xf32>
    %183 = vector.extract_strided_slice %118 {offsets = [0, 16], sizes = [16, 1], strides = [1, 1]} : vector<16x21xf32> to vector<16x1xf32>
    %184 = vector.broadcast %183 : vector<16x1xf32> to vector<16x16xf32>
    %185 = arith.mulf %84, %184 : vector<16x16xf32>
    %186 = arith.addf %182, %185 : vector<16x16xf32>
    %187 = vector.extract_strided_slice %118 {offsets = [0, 17], sizes = [16, 1], strides = [1, 1]} : vector<16x21xf32> to vector<16x1xf32>
    %188 = vector.broadcast %187 : vector<16x1xf32> to vector<16x16xf32>
    %189 = arith.mulf %88, %188 : vector<16x16xf32>
    %190 = arith.addf %186, %189 : vector<16x16xf32>
    %191 = vector.extract_strided_slice %118 {offsets = [0, 18], sizes = [16, 1], strides = [1, 1]} : vector<16x21xf32> to vector<16x1xf32>
    %192 = vector.broadcast %191 : vector<16x1xf32> to vector<16x16xf32>
    %193 = arith.mulf %92, %192 : vector<16x16xf32>
    %194 = arith.addf %190, %193 : vector<16x16xf32>
    %195 = vector.extract_strided_slice %118 {offsets = [0, 19], sizes = [16, 1], strides = [1, 1]} : vector<16x21xf32> to vector<16x1xf32>
    %196 = vector.broadcast %195 : vector<16x1xf32> to vector<16x16xf32>
    %197 = arith.mulf %96, %196 : vector<16x16xf32>
    %198 = arith.addf %194, %197 : vector<16x16xf32>
    %199 = vector.extract_strided_slice %118 {offsets = [0, 20], sizes = [16, 1], strides = [1, 1]} : vector<16x21xf32> to vector<16x1xf32>
    %200 = vector.broadcast %199 : vector<16x1xf32> to vector<16x16xf32>
    %201 = arith.mulf %100, %200 : vector<16x16xf32>
    %202 = arith.addf %198, %201 : vector<16x16xf32>
    %cst_25 = arith.constant -1.000000e+04 : f32
    %203 = vector.broadcast %cst_25 : f32 to vector<16x16xf32>
    %204 = arith.select %16, %203, %202 : vector<16x16xi1>, vector<16x16xf32>
    %cst_26 = arith.constant dense<0xFF800000> : vector<16xf32>
    %205 = vector.multi_reduction <maximumf>, %204, %cst_26 [1] : vector<16x16xf32> to vector<16xf32>
    %206 = vector.shape_cast %205 : vector<16xf32> to vector<16x1xf32>
    %207 = vector.broadcast %206 : vector<16x1xf32> to vector<16x16xf32>
    %208 = arith.subf %204, %207 : vector<16x16xf32>
    %209 = math.exp %208 : vector<16x16xf32>
    %cst_27 = arith.constant dense<0.000000e+00> : vector<16xf32>
    %210 = vector.multi_reduction <add>, %209, %cst_27 [1] : vector<16x16xf32> to vector<16xf32>
    %211 = vector.shape_cast %210 : vector<16xf32> to vector<16x1xf32>
    %212 = tpu.reciprocal %211 {approx = true} : vector<16x1xf32> -> vector<16x1xf32>
    %213 = vector.broadcast %212 : vector<16x1xf32> to vector<16x16xf32>
    %214 = arith.mulf %209, %213 : vector<16x16xf32>
    %215 = arith.truncf %214 : vector<16x16xf32> to vector<16x16xbf16>
    %cst_28 = arith.constant dense<0.000000e+00> : vector<16x16xf32>
    %216 = tpu.matmul %215, %116, %cst_28 {dimension_numbers = #tpu.dot_dimension_numbers<[1], [0], [0], [1], [0, 0, 1, 1], [], []>} : vector<16x16xbf16>, vector<16x16xbf16>, vector<16x16xf32> -> vector<16x16xf32>
    %217 = arith.mulf %214, %20 : vector<16x16xf32>
    %cst_29 = arith.constant dense<0.000000e+00> : vector<16xf32>
    %218 = vector.multi_reduction <add>, %217, %cst_29 [1] : vector<16x16xf32> to vector<16xf32>
    %219 = vector.shape_cast %218 : vector<16xf32> to vector<16x1xf32>
    %220 = arith.mulf %214, %24 : vector<16x16xf32>
    %cst_30 = arith.constant dense<0.000000e+00> : vector<16xf32>
    %221 = vector.multi_reduction <add>, %220, %cst_30 [1] : vector<16x16xf32> to vector<16xf32>
    %222 = vector.shape_cast %221 : vector<16xf32> to vector<16x1xf32>
    %223 = arith.mulf %214, %28 : vector<16x16xf32>
    %cst_31 = arith.constant dense<0.000000e+00> : vector<16xf32>
    %224 = vector.multi_reduction <add>, %223, %cst_31 [1] : vector<16x16xf32> to vector<16xf32>
    %225 = vector.shape_cast %224 : vector<16xf32> to vector<16x1xf32>
    %226 = arith.mulf %214, %32 : vector<16x16xf32>
    %cst_32 = arith.constant dense<0.000000e+00> : vector<16xf32>
    %227 = vector.multi_reduction <add>, %226, %cst_32 [1] : vector<16x16xf32> to vector<16xf32>
    %228 = vector.shape_cast %227 : vector<16xf32> to vector<16x1xf32>
    %229 = arith.mulf %214, %36 : vector<16x16xf32>
    %cst_33 = arith.constant dense<0.000000e+00> : vector<16xf32>
    %230 = vector.multi_reduction <add>, %229, %cst_33 [1] : vector<16x16xf32> to vector<16xf32>
    %231 = vector.shape_cast %230 : vector<16xf32> to vector<16x1xf32>
    %232 = arith.mulf %214, %40 : vector<16x16xf32>
    %cst_34 = arith.constant dense<0.000000e+00> : vector<16xf32>
    %233 = vector.multi_reduction <add>, %232, %cst_34 [1] : vector<16x16xf32> to vector<16xf32>
    %234 = vector.shape_cast %233 : vector<16xf32> to vector<16x1xf32>
    %235 = arith.mulf %214, %44 : vector<16x16xf32>
    %cst_35 = arith.constant dense<0.000000e+00> : vector<16xf32>
    %236 = vector.multi_reduction <add>, %235, %cst_35 [1] : vector<16x16xf32> to vector<16xf32>
    %237 = vector.shape_cast %236 : vector<16xf32> to vector<16x1xf32>
    %238 = arith.mulf %214, %48 : vector<16x16xf32>
    %cst_36 = arith.constant dense<0.000000e+00> : vector<16xf32>
    %239 = vector.multi_reduction <add>, %238, %cst_36 [1] : vector<16x16xf32> to vector<16xf32>
    %240 = vector.shape_cast %239 : vector<16xf32> to vector<16x1xf32>
    %241 = arith.mulf %214, %52 : vector<16x16xf32>
    %cst_37 = arith.constant dense<0.000000e+00> : vector<16xf32>
    %242 = vector.multi_reduction <add>, %241, %cst_37 [1] : vector<16x16xf32> to vector<16xf32>
    %243 = vector.shape_cast %242 : vector<16xf32> to vector<16x1xf32>
    %244 = arith.mulf %214, %56 : vector<16x16xf32>
    %cst_38 = arith.constant dense<0.000000e+00> : vector<16xf32>
    %245 = vector.multi_reduction <add>, %244, %cst_38 [1] : vector<16x16xf32> to vector<16xf32>
    %246 = vector.shape_cast %245 : vector<16xf32> to vector<16x1xf32>
    %247 = arith.mulf %214, %60 : vector<16x16xf32>
    %cst_39 = arith.constant dense<0.000000e+00> : vector<16xf32>
    %248 = vector.multi_reduction <add>, %247, %cst_39 [1] : vector<16x16xf32> to vector<16xf32>
    %249 = vector.shape_cast %248 : vector<16xf32> to vector<16x1xf32>
    %250 = arith.mulf %214, %64 : vector<16x16xf32>
    %cst_40 = arith.constant dense<0.000000e+00> : vector<16xf32>
    %251 = vector.multi_reduction <add>, %250, %cst_40 [1] : vector<16x16xf32> to vector<16xf32>
    %252 = vector.shape_cast %251 : vector<16xf32> to vector<16x1xf32>
    %253 = arith.mulf %214, %68 : vector<16x16xf32>
    %cst_41 = arith.constant dense<0.000000e+00> : vector<16xf32>
    %254 = vector.multi_reduction <add>, %253, %cst_41 [1] : vector<16x16xf32> to vector<16xf32>
    %255 = vector.shape_cast %254 : vector<16xf32> to vector<16x1xf32>
    %256 = arith.mulf %214, %72 : vector<16x16xf32>
    %cst_42 = arith.constant dense<0.000000e+00> : vector<16xf32>
    %257 = vector.multi_reduction <add>, %256, %cst_42 [1] : vector<16x16xf32> to vector<16xf32>
    %258 = vector.shape_cast %257 : vector<16xf32> to vector<16x1xf32>
    %259 = arith.mulf %214, %76 : vector<16x16xf32>
    %cst_43 = arith.constant dense<0.000000e+00> : vector<16xf32>
    %260 = vector.multi_reduction <add>, %259, %cst_43 [1] : vector<16x16xf32> to vector<16xf32>
    %261 = vector.shape_cast %260 : vector<16xf32> to vector<16x1xf32>
    %262 = arith.mulf %214, %80 : vector<16x16xf32>
    %cst_44 = arith.constant dense<0.000000e+00> : vector<16xf32>
    %263 = vector.multi_reduction <add>, %262, %cst_44 [1] : vector<16x16xf32> to vector<16xf32>
    %264 = vector.shape_cast %263 : vector<16xf32> to vector<16x1xf32>
    %265 = arith.mulf %214, %84 : vector<16x16xf32>
    %cst_45 = arith.constant dense<0.000000e+00> : vector<16xf32>
    %266 = vector.multi_reduction <add>, %265, %cst_45 [1] : vector<16x16xf32> to vector<16xf32>
    %267 = vector.shape_cast %266 : vector<16xf32> to vector<16x1xf32>
    %268 = arith.mulf %214, %88 : vector<16x16xf32>
    %cst_46 = arith.constant dense<0.000000e+00> : vector<16xf32>
    %269 = vector.multi_reduction <add>, %268, %cst_46 [1] : vector<16x16xf32> to vector<16xf32>
    %270 = vector.shape_cast %269 : vector<16xf32> to vector<16x1xf32>
    %271 = arith.mulf %214, %92 : vector<16x16xf32>
    %cst_47 = arith.constant dense<0.000000e+00> : vector<16xf32>
    %272 = vector.multi_reduction <add>, %271, %cst_47 [1] : vector<16x16xf32> to vector<16xf32>
    %273 = vector.shape_cast %272 : vector<16xf32> to vector<16x1xf32>
    %274 = arith.mulf %214, %96 : vector<16x16xf32>
    %cst_48 = arith.constant dense<0.000000e+00> : vector<16xf32>
    %275 = vector.multi_reduction <add>, %274, %cst_48 [1] : vector<16x16xf32> to vector<16xf32>
    %276 = vector.shape_cast %275 : vector<16xf32> to vector<16x1xf32>
    %277 = arith.mulf %214, %100 : vector<16x16xf32>
    %cst_49 = arith.constant dense<0.000000e+00> : vector<16xf32>
    %278 = vector.multi_reduction <add>, %277, %cst_49 [1] : vector<16x16xf32> to vector<16xf32>
    %279 = vector.shape_cast %278 : vector<16xf32> to vector<16x1xf32>
    %280 = tpu.concatenate %219, %222, %225, %228, %231, %234, %237, %240, %243, %246, %249, %252, %255, %258, %261, %264 in 1 : vector<16x1xf32>, vector<16x1xf32>, vector<16x1xf32>, vector<16x1xf32>, vector<16x1xf32>, vector<16x1xf32>, vector<16x1xf32>, vector<16x1xf32>, vector<16x1xf32>, vector<16x1xf32>, vector<16x1xf32>, vector<16x1xf32>, vector<16x1xf32>, vector<16x1xf32>, vector<16x1xf32>, vector<16x1xf32> -> vector<16x16xf32>
    %281 = tpu.concatenate %267, %270, %273, %276, %279 in 1 : vector<16x1xf32>, vector<16x1xf32>, vector<16x1xf32>, vector<16x1xf32>, vector<16x1xf32> -> vector<16x5xf32>
    %282 = tpu.concatenate %280, %281 in 1 : vector<16x16xf32>, vector<16x5xf32> -> vector<16x21xf32>
    %cst_50 = arith.constant dense<0.000000e+00> : vector<16x16xf32>
    %283 = tpu.matmul %282, %104, %cst_50 {dimension_numbers = #tpu.dot_dimension_numbers<[1], [0], [0], [1], [0, 0, 1, 1], [], []>} : vector<16x21xf32>, vector<21x16xf32>, vector<16x16xf32> -> vector<16x16xf32>
    %284 = arith.addf %216, %283 : vector<16x16xf32>
    %285 = vector.extract_strided_slice %113 {offsets = [0, 16], sizes = [16, 16], strides = [1, 1]} : vector<16x96xbf16> to vector<16x16xbf16>
    %286 = vector.extract_strided_slice %113 {offsets = [0, 48], sizes = [16, 16], strides = [1, 1]} : vector<16x96xbf16> to vector<16x16xbf16>
    %287 = vector.extract_strided_slice %113 {offsets = [0, 80], sizes = [16, 16], strides = [1, 1]} : vector<16x96xbf16> to vector<16x16xbf16>
    %cst_51 = arith.constant dense<0.000000e+00> : vector<16x16xf32>
    %288 = tpu.matmul %285, %286, %cst_51 {dimension_numbers = #tpu.dot_dimension_numbers<[1], [1], [0], [0], [0, 0, 1, 0], [], []>} : vector<16x16xbf16>, vector<16x16xbf16>, vector<16x16xf32> -> vector<16x16xf32>
    %cst_52 = arith.constant dense<0.000000e+00> : vector<16x21xf32>
    %289 = tpu.matmul %285, %102, %cst_52 {dimension_numbers = #tpu.dot_dimension_numbers<[1], [1], [0], [0], [0, 0, 1, 0], [], []>} : vector<16x16xbf16>, vector<21x16xbf16>, vector<16x21xf32> -> vector<16x21xf32>
    %290 = vector.extract_strided_slice %289 {offsets = [0, 0], sizes = [16, 1], strides = [1, 1]} : vector<16x21xf32> to vector<16x1xf32>
    %291 = vector.broadcast %290 : vector<16x1xf32> to vector<16x16xf32>
    %292 = arith.mulf %20, %291 : vector<16x16xf32>
    %293 = arith.addf %288, %292 : vector<16x16xf32>
    %294 = vector.extract_strided_slice %289 {offsets = [0, 1], sizes = [16, 1], strides = [1, 1]} : vector<16x21xf32> to vector<16x1xf32>
    %295 = vector.broadcast %294 : vector<16x1xf32> to vector<16x16xf32>
    %296 = arith.mulf %24, %295 : vector<16x16xf32>
    %297 = arith.addf %293, %296 : vector<16x16xf32>
    %298 = vector.extract_strided_slice %289 {offsets = [0, 2], sizes = [16, 1], strides = [1, 1]} : vector<16x21xf32> to vector<16x1xf32>
    %299 = vector.broadcast %298 : vector<16x1xf32> to vector<16x16xf32>
    %300 = arith.mulf %28, %299 : vector<16x16xf32>
    %301 = arith.addf %297, %300 : vector<16x16xf32>
    %302 = vector.extract_strided_slice %289 {offsets = [0, 3], sizes = [16, 1], strides = [1, 1]} : vector<16x21xf32> to vector<16x1xf32>
    %303 = vector.broadcast %302 : vector<16x1xf32> to vector<16x16xf32>
    %304 = arith.mulf %32, %303 : vector<16x16xf32>
    %305 = arith.addf %301, %304 : vector<16x16xf32>
    %306 = vector.extract_strided_slice %289 {offsets = [0, 4], sizes = [16, 1], strides = [1, 1]} : vector<16x21xf32> to vector<16x1xf32>
    %307 = vector.broadcast %306 : vector<16x1xf32> to vector<16x16xf32>
    %308 = arith.mulf %36, %307 : vector<16x16xf32>
    %309 = arith.addf %305, %308 : vector<16x16xf32>
    %310 = vector.extract_strided_slice %289 {offsets = [0, 5], sizes = [16, 1], strides = [1, 1]} : vector<16x21xf32> to vector<16x1xf32>
    %311 = vector.broadcast %310 : vector<16x1xf32> to vector<16x16xf32>
    %312 = arith.mulf %40, %311 : vector<16x16xf32>
    %313 = arith.addf %309, %312 : vector<16x16xf32>
    %314 = vector.extract_strided_slice %289 {offsets = [0, 6], sizes = [16, 1], strides = [1, 1]} : vector<16x21xf32> to vector<16x1xf32>
    %315 = vector.broadcast %314 : vector<16x1xf32> to vector<16x16xf32>
    %316 = arith.mulf %44, %315 : vector<16x16xf32>
    %317 = arith.addf %313, %316 : vector<16x16xf32>
    %318 = vector.extract_strided_slice %289 {offsets = [0, 7], sizes = [16, 1], strides = [1, 1]} : vector<16x21xf32> to vector<16x1xf32>
    %319 = vector.broadcast %318 : vector<16x1xf32> to vector<16x16xf32>
    %320 = arith.mulf %48, %319 : vector<16x16xf32>
    %321 = arith.addf %317, %320 : vector<16x16xf32>
    %322 = vector.extract_strided_slice %289 {offsets = [0, 8], sizes = [16, 1], strides = [1, 1]} : vector<16x21xf32> to vector<16x1xf32>
    %323 = vector.broadcast %322 : vector<16x1xf32> to vector<16x16xf32>
    %324 = arith.mulf %52, %323 : vector<16x16xf32>
    %325 = arith.addf %321, %324 : vector<16x16xf32>
    %326 = vector.extract_strided_slice %289 {offsets = [0, 9], sizes = [16, 1], strides = [1, 1]} : vector<16x21xf32> to vector<16x1xf32>
    %327 = vector.broadcast %326 : vector<16x1xf32> to vector<16x16xf32>
    %328 = arith.mulf %56, %327 : vector<16x16xf32>
    %329 = arith.addf %325, %328 : vector<16x16xf32>
    %330 = vector.extract_strided_slice %289 {offsets = [0, 10], sizes = [16, 1], strides = [1, 1]} : vector<16x21xf32> to vector<16x1xf32>
    %331 = vector.broadcast %330 : vector<16x1xf32> to vector<16x16xf32>
    %332 = arith.mulf %60, %331 : vector<16x16xf32>
    %333 = arith.addf %329, %332 : vector<16x16xf32>
    %334 = vector.extract_strided_slice %289 {offsets = [0, 11], sizes = [16, 1], strides = [1, 1]} : vector<16x21xf32> to vector<16x1xf32>
    %335 = vector.broadcast %334 : vector<16x1xf32> to vector<16x16xf32>
    %336 = arith.mulf %64, %335 : vector<16x16xf32>
    %337 = arith.addf %333, %336 : vector<16x16xf32>
    %338 = vector.extract_strided_slice %289 {offsets = [0, 12], sizes = [16, 1], strides = [1, 1]} : vector<16x21xf32> to vector<16x1xf32>
    %339 = vector.broadcast %338 : vector<16x1xf32> to vector<16x16xf32>
    %340 = arith.mulf %68, %339 : vector<16x16xf32>
    %341 = arith.addf %337, %340 : vector<16x16xf32>
    %342 = vector.extract_strided_slice %289 {offsets = [0, 13], sizes = [16, 1], strides = [1, 1]} : vector<16x21xf32> to vector<16x1xf32>
    %343 = vector.broadcast %342 : vector<16x1xf32> to vector<16x16xf32>
    %344 = arith.mulf %72, %343 : vector<16x16xf32>
    %345 = arith.addf %341, %344 : vector<16x16xf32>
    %346 = vector.extract_strided_slice %289 {offsets = [0, 14], sizes = [16, 1], strides = [1, 1]} : vector<16x21xf32> to vector<16x1xf32>
    %347 = vector.broadcast %346 : vector<16x1xf32> to vector<16x16xf32>
    %348 = arith.mulf %76, %347 : vector<16x16xf32>
    %349 = arith.addf %345, %348 : vector<16x16xf32>
    %350 = vector.extract_strided_slice %289 {offsets = [0, 15], sizes = [16, 1], strides = [1, 1]} : vector<16x21xf32> to vector<16x1xf32>
    %351 = vector.broadcast %350 : vector<16x1xf32> to vector<16x16xf32>
    %352 = arith.mulf %80, %351 : vector<16x16xf32>
    %353 = arith.addf %349, %352 : vector<16x16xf32>
    %354 = vector.extract_strided_slice %289 {offsets = [0, 16], sizes = [16, 1], strides = [1, 1]} : vector<16x21xf32> to vector<16x1xf32>
    %355 = vector.broadcast %354 : vector<16x1xf32> to vector<16x16xf32>
    %356 = arith.mulf %84, %355 : vector<16x16xf32>
    %357 = arith.addf %353, %356 : vector<16x16xf32>
    %358 = vector.extract_strided_slice %289 {offsets = [0, 17], sizes = [16, 1], strides = [1, 1]} : vector<16x21xf32> to vector<16x1xf32>
    %359 = vector.broadcast %358 : vector<16x1xf32> to vector<16x16xf32>
    %360 = arith.mulf %88, %359 : vector<16x16xf32>
    %361 = arith.addf %357, %360 : vector<16x16xf32>
    %362 = vector.extract_strided_slice %289 {offsets = [0, 18], sizes = [16, 1], strides = [1, 1]} : vector<16x21xf32> to vector<16x1xf32>
    %363 = vector.broadcast %362 : vector<16x1xf32> to vector<16x16xf32>
    %364 = arith.mulf %92, %363 : vector<16x16xf32>
    %365 = arith.addf %361, %364 : vector<16x16xf32>
    %366 = vector.extract_strided_slice %289 {offsets = [0, 19], sizes = [16, 1], strides = [1, 1]} : vector<16x21xf32> to vector<16x1xf32>
    %367 = vector.broadcast %366 : vector<16x1xf32> to vector<16x16xf32>
    %368 = arith.mulf %96, %367 : vector<16x16xf32>
    %369 = arith.addf %365, %368 : vector<16x16xf32>
    %370 = vector.extract_strided_slice %289 {offsets = [0, 20], sizes = [16, 1], strides = [1, 1]} : vector<16x21xf32> to vector<16x1xf32>
    %371 = vector.broadcast %370 : vector<16x1xf32> to vector<16x16xf32>
    %372 = arith.mulf %100, %371 : vector<16x16xf32>
    %373 = arith.addf %369, %372 : vector<16x16xf32>
    %cst_53 = arith.constant -1.000000e+04 : f32
    %374 = vector.broadcast %cst_53 : f32 to vector<16x16xf32>
    %375 = arith.select %16, %374, %373 : vector<16x16xi1>, vector<16x16xf32>
    %cst_54 = arith.constant dense<0xFF800000> : vector<16xf32>
    %376 = vector.multi_reduction <maximumf>, %375, %cst_54 [1] : vector<16x16xf32> to vector<16xf32>
    %377 = vector.shape_cast %376 : vector<16xf32> to vector<16x1xf32>
    %378 = vector.broadcast %377 : vector<16x1xf32> to vector<16x16xf32>
    %379 = arith.subf %375, %378 : vector<16x16xf32>
    %380 = math.exp %379 : vector<16x16xf32>
    %cst_55 = arith.constant dense<0.000000e+00> : vector<16xf32>
    %381 = vector.multi_reduction <add>, %380, %cst_55 [1] : vector<16x16xf32> to vector<16xf32>
    %382 = vector.shape_cast %381 : vector<16xf32> to vector<16x1xf32>
    %383 = tpu.reciprocal %382 {approx = true} : vector<16x1xf32> -> vector<16x1xf32>
    %384 = vector.broadcast %383 : vector<16x1xf32> to vector<16x16xf32>
    %385 = arith.mulf %380, %384 : vector<16x16xf32>
    %386 = arith.truncf %385 : vector<16x16xf32> to vector<16x16xbf16>
    %cst_56 = arith.constant dense<0.000000e+00> : vector<16x16xf32>
    %387 = tpu.matmul %386, %287, %cst_56 {dimension_numbers = #tpu.dot_dimension_numbers<[1], [0], [0], [1], [0, 0, 1, 1], [], []>} : vector<16x16xbf16>, vector<16x16xbf16>, vector<16x16xf32> -> vector<16x16xf32>
    %388 = arith.mulf %385, %20 : vector<16x16xf32>
    %cst_57 = arith.constant dense<0.000000e+00> : vector<16xf32>
    %389 = vector.multi_reduction <add>, %388, %cst_57 [1] : vector<16x16xf32> to vector<16xf32>
    %390 = vector.shape_cast %389 : vector<16xf32> to vector<16x1xf32>
    %391 = arith.mulf %385, %24 : vector<16x16xf32>
    %cst_58 = arith.constant dense<0.000000e+00> : vector<16xf32>
    %392 = vector.multi_reduction <add>, %391, %cst_58 [1] : vector<16x16xf32> to vector<16xf32>
    %393 = vector.shape_cast %392 : vector<16xf32> to vector<16x1xf32>
    %394 = arith.mulf %385, %28 : vector<16x16xf32>
    %cst_59 = arith.constant dense<0.000000e+00> : vector<16xf32>
    %395 = vector.multi_reduction <add>, %394, %cst_59 [1] : vector<16x16xf32> to vector<16xf32>
    %396 = vector.shape_cast %395 : vector<16xf32> to vector<16x1xf32>
    %397 = arith.mulf %385, %32 : vector<16x16xf32>
    %cst_60 = arith.constant dense<0.000000e+00> : vector<16xf32>
    %398 = vector.multi_reduction <add>, %397, %cst_60 [1] : vector<16x16xf32> to vector<16xf32>
    %399 = vector.shape_cast %398 : vector<16xf32> to vector<16x1xf32>
    %400 = arith.mulf %385, %36 : vector<16x16xf32>
    %cst_61 = arith.constant dense<0.000000e+00> : vector<16xf32>
    %401 = vector.multi_reduction <add>, %400, %cst_61 [1] : vector<16x16xf32> to vector<16xf32>
    %402 = vector.shape_cast %401 : vector<16xf32> to vector<16x1xf32>
    %403 = arith.mulf %385, %40 : vector<16x16xf32>
    %cst_62 = arith.constant dense<0.000000e+00> : vector<16xf32>
    %404 = vector.multi_reduction <add>, %403, %cst_62 [1] : vector<16x16xf32> to vector<16xf32>
    %405 = vector.shape_cast %404 : vector<16xf32> to vector<16x1xf32>
    %406 = arith.mulf %385, %44 : vector<16x16xf32>
    %cst_63 = arith.constant dense<0.000000e+00> : vector<16xf32>
    %407 = vector.multi_reduction <add>, %406, %cst_63 [1] : vector<16x16xf32> to vector<16xf32>
    %408 = vector.shape_cast %407 : vector<16xf32> to vector<16x1xf32>
    %409 = arith.mulf %385, %48 : vector<16x16xf32>
    %cst_64 = arith.constant dense<0.000000e+00> : vector<16xf32>
    %410 = vector.multi_reduction <add>, %409, %cst_64 [1] : vector<16x16xf32> to vector<16xf32>
    %411 = vector.shape_cast %410 : vector<16xf32> to vector<16x1xf32>
    %412 = arith.mulf %385, %52 : vector<16x16xf32>
    %cst_65 = arith.constant dense<0.000000e+00> : vector<16xf32>
    %413 = vector.multi_reduction <add>, %412, %cst_65 [1] : vector<16x16xf32> to vector<16xf32>
    %414 = vector.shape_cast %413 : vector<16xf32> to vector<16x1xf32>
    %415 = arith.mulf %385, %56 : vector<16x16xf32>
    %cst_66 = arith.constant dense<0.000000e+00> : vector<16xf32>
    %416 = vector.multi_reduction <add>, %415, %cst_66 [1] : vector<16x16xf32> to vector<16xf32>
    %417 = vector.shape_cast %416 : vector<16xf32> to vector<16x1xf32>
    %418 = arith.mulf %385, %60 : vector<16x16xf32>
    %cst_67 = arith.constant dense<0.000000e+00> : vector<16xf32>
    %419 = vector.multi_reduction <add>, %418, %cst_67 [1] : vector<16x16xf32> to vector<16xf32>
    %420 = vector.shape_cast %419 : vector<16xf32> to vector<16x1xf32>
    %421 = arith.mulf %385, %64 : vector<16x16xf32>
    %cst_68 = arith.constant dense<0.000000e+00> : vector<16xf32>
    %422 = vector.multi_reduction <add>, %421, %cst_68 [1] : vector<16x16xf32> to vector<16xf32>
    %423 = vector.shape_cast %422 : vector<16xf32> to vector<16x1xf32>
    %424 = arith.mulf %385, %68 : vector<16x16xf32>
    %cst_69 = arith.constant dense<0.000000e+00> : vector<16xf32>
    %425 = vector.multi_reduction <add>, %424, %cst_69 [1] : vector<16x16xf32> to vector<16xf32>
    %426 = vector.shape_cast %425 : vector<16xf32> to vector<16x1xf32>
    %427 = arith.mulf %385, %72 : vector<16x16xf32>
    %cst_70 = arith.constant dense<0.000000e+00> : vector<16xf32>
    %428 = vector.multi_reduction <add>, %427, %cst_70 [1] : vector<16x16xf32> to vector<16xf32>
    %429 = vector.shape_cast %428 : vector<16xf32> to vector<16x1xf32>
    %430 = arith.mulf %385, %76 : vector<16x16xf32>
    %cst_71 = arith.constant dense<0.000000e+00> : vector<16xf32>
    %431 = vector.multi_reduction <add>, %430, %cst_71 [1] : vector<16x16xf32> to vector<16xf32>
    %432 = vector.shape_cast %431 : vector<16xf32> to vector<16x1xf32>
    %433 = arith.mulf %385, %80 : vector<16x16xf32>
    %cst_72 = arith.constant dense<0.000000e+00> : vector<16xf32>
    %434 = vector.multi_reduction <add>, %433, %cst_72 [1] : vector<16x16xf32> to vector<16xf32>
    %435 = vector.shape_cast %434 : vector<16xf32> to vector<16x1xf32>
    %436 = arith.mulf %385, %84 : vector<16x16xf32>
    %cst_73 = arith.constant dense<0.000000e+00> : vector<16xf32>
    %437 = vector.multi_reduction <add>, %436, %cst_73 [1] : vector<16x16xf32> to vector<16xf32>
    %438 = vector.shape_cast %437 : vector<16xf32> to vector<16x1xf32>
    %439 = arith.mulf %385, %88 : vector<16x16xf32>
    %cst_74 = arith.constant dense<0.000000e+00> : vector<16xf32>
    %440 = vector.multi_reduction <add>, %439, %cst_74 [1] : vector<16x16xf32> to vector<16xf32>
    %441 = vector.shape_cast %440 : vector<16xf32> to vector<16x1xf32>
    %442 = arith.mulf %385, %92 : vector<16x16xf32>
    %cst_75 = arith.constant dense<0.000000e+00> : vector<16xf32>
    %443 = vector.multi_reduction <add>, %442, %cst_75 [1] : vector<16x16xf32> to vector<16xf32>
    %444 = vector.shape_cast %443 : vector<16xf32> to vector<16x1xf32>
    %445 = arith.mulf %385, %96 : vector<16x16xf32>
    %cst_76 = arith.constant dense<0.000000e+00> : vector<16xf32>
    %446 = vector.multi_reduction <add>, %445, %cst_76 [1] : vector<16x16xf32> to vector<16xf32>
    %447 = vector.shape_cast %446 : vector<16xf32> to vector<16x1xf32>
    %448 = arith.mulf %385, %100 : vector<16x16xf32>
    %cst_77 = arith.constant dense<0.000000e+00> : vector<16xf32>
    %449 = vector.multi_reduction <add>, %448, %cst_77 [1] : vector<16x16xf32> to vector<16xf32>
    %450 = vector.shape_cast %449 : vector<16xf32> to vector<16x1xf32>
    %451 = tpu.concatenate %390, %393, %396, %399, %402, %405, %408, %411, %414, %417, %420, %423, %426, %429, %432, %435 in 1 : vector<16x1xf32>, vector<16x1xf32>, vector<16x1xf32>, vector<16x1xf32>, vector<16x1xf32>, vector<16x1xf32>, vector<16x1xf32>, vector<16x1xf32>, vector<16x1xf32>, vector<16x1xf32>, vector<16x1xf32>, vector<16x1xf32>, vector<16x1xf32>, vector<16x1xf32>, vector<16x1xf32>, vector<16x1xf32> -> vector<16x16xf32>
    %452 = tpu.concatenate %438, %441, %444, %447, %450 in 1 : vector<16x1xf32>, vector<16x1xf32>, vector<16x1xf32>, vector<16x1xf32>, vector<16x1xf32> -> vector<16x5xf32>
    %453 = tpu.concatenate %451, %452 in 1 : vector<16x16xf32>, vector<16x5xf32> -> vector<16x21xf32>
    %cst_78 = arith.constant dense<0.000000e+00> : vector<16x16xf32>
    %454 = tpu.matmul %453, %104, %cst_78 {dimension_numbers = #tpu.dot_dimension_numbers<[1], [0], [0], [1], [0, 0, 1, 1], [], []>} : vector<16x21xf32>, vector<21x16xf32>, vector<16x16xf32> -> vector<16x16xf32>
    %455 = arith.addf %387, %454 : vector<16x16xf32>
    %456 = tpu.concatenate %284, %455 in 1 : vector<16x16xf32>, vector<16x16xf32> -> vector<16x32xf32>
    %457 = arith.truncf %456 : vector<16x32xf32> to vector<16x32xbf16>
    %c0_79 = arith.constant 0 : index
    %c0_80 = arith.constant 0 : index
    %c0_81 = arith.constant 0 : index
    %458 = vector.load %arg7[%c0_79, %c0_80, %c0_81] : memref<1x32x32xbf16, #tpu.memory_space<vmem>>, vector<1x32x32xbf16>
    %459 = vector.shape_cast %458 : vector<1x32x32xbf16> to vector<32x32xbf16>
    %cst_82 = arith.constant dense<0.000000e+00> : vector<16x32xf32>
    %460 = tpu.matmul %457, %459, %cst_82 {dimension_numbers = #tpu.dot_dimension_numbers<[1], [0], [0], [1], [0, 0, 1, 1], [], []>} : vector<16x32xbf16>, vector<32x32xbf16>, vector<16x32xf32> -> vector<16x32xf32>
    %c0_83 = arith.constant 0 : index
    %c0_84 = arith.constant 0 : index
    %c0_85 = arith.constant 0 : index
    %461 = vector.load %arg8[%c0_83, %c0_84, %c0_85] : memref<1x1x32xf32, #tpu.memory_space<vmem>>, vector<1x1x32xf32>
    %462 = vector.shape_cast %461 : vector<1x1x32xf32> to vector<1x32xf32>
    %463 = vector.broadcast %462 : vector<1x32xf32> to vector<16x32xf32>
    %464 = arith.addf %460, %463 : vector<16x32xf32>
    %465 = arith.addf %4, %464 : vector<16x32xf32>
    %c0_86 = arith.constant 0 : index
    %c0_87 = arith.constant 0 : index
    %c0_88 = arith.constant 0 : index
    %466 = vector.load %arg9[%c0_86, %c0_87, %c0_88] : memref<1x1x32xf32, #tpu.memory_space<vmem>>, vector<1x1x32xf32>
    %467 = vector.shape_cast %466 : vector<1x1x32xf32> to vector<1x32xf32>
    %c0_89 = arith.constant 0 : index
    %c0_90 = arith.constant 0 : index
    %c0_91 = arith.constant 0 : index
    %468 = vector.load %arg10[%c0_89, %c0_90, %c0_91] : memref<1x1x32xf32, #tpu.memory_space<vmem>>, vector<1x1x32xf32>
    %469 = vector.shape_cast %468 : vector<1x1x32xf32> to vector<1x32xf32>
    %cst_92 = arith.constant dense<0.000000e+00> : vector<16xf32>
    %470 = vector.multi_reduction <add>, %465, %cst_92 [1] : vector<16x32xf32> to vector<16xf32>
    %471 = vector.shape_cast %470 : vector<16xf32> to vector<16x1xf32>
    %cst_93 = arith.constant 3.200000e+01 : f32
    %472 = vector.broadcast %cst_93 : f32 to vector<16x1xf32>
    %473 = arith.divf %471, %472 : vector<16x1xf32>
    %474 = vector.broadcast %473 : vector<16x1xf32> to vector<16x32xf32>
    %475 = arith.subf %465, %474 : vector<16x32xf32>
    %476 = arith.mulf %475, %475 : vector<16x32xf32>
    %cst_94 = arith.constant dense<0.000000e+00> : vector<16xf32>
    %477 = vector.multi_reduction <add>, %476, %cst_94 [1] : vector<16x32xf32> to vector<16xf32>
    %478 = vector.shape_cast %477 : vector<16xf32> to vector<16x1xf32>
    %cst_95 = arith.constant 3.200000e+01 : f32
    %479 = vector.broadcast %cst_95 : f32 to vector<16x1xf32>
    %480 = arith.divf %478, %479 : vector<16x1xf32>
    %481 = vector.broadcast %473 : vector<16x1xf32> to vector<16x32xf32>
    %482 = arith.subf %465, %481 : vector<16x32xf32>
    %cst_96 = arith.constant 9.99999974E-6 : f32
    %483 = vector.broadcast %cst_96 : f32 to vector<16x1xf32>
    %484 = arith.addf %480, %483 : vector<16x1xf32>
    %485 = math.rsqrt %484 : vector<16x1xf32>
    %486 = vector.broadcast %485 : vector<16x1xf32> to vector<16x32xf32>
    %487 = arith.mulf %482, %486 : vector<16x32xf32>
    %488 = vector.broadcast %467 : vector<1x32xf32> to vector<16x32xf32>
    %489 = arith.mulf %487, %488 : vector<16x32xf32>
    %490 = vector.broadcast %469 : vector<1x32xf32> to vector<16x32xf32>
    %491 = arith.addf %489, %490 : vector<16x32xf32>
    %492 = vector.broadcast %6 : vector<16x1xf32> to vector<16x32xf32>
    %493 = arith.mulf %491, %492 : vector<16x32xf32>
    %494 = arith.truncf %493 : vector<16x32xf32> to vector<16x32xbf16>
    %c0_97 = arith.constant 0 : index
    %c0_98 = arith.constant 0 : index
    %c0_99 = arith.constant 0 : index
    %495 = vector.load %arg11[%c0_97, %c0_98, %c0_99] : memref<1x32x64xbf16, #tpu.memory_space<vmem>>, vector<1x32x64xbf16>
    %496 = vector.shape_cast %495 : vector<1x32x64xbf16> to vector<32x64xbf16>
    %cst_100 = arith.constant dense<0.000000e+00> : vector<16x64xf32>
    %497 = tpu.matmul %494, %496, %cst_100 {dimension_numbers = #tpu.dot_dimension_numbers<[1], [0], [0], [1], [0, 0, 1, 1], [], []>} : vector<16x32xbf16>, vector<32x64xbf16>, vector<16x64xf32> -> vector<16x64xf32>
    %c0_101 = arith.constant 0 : index
    %c0_102 = arith.constant 0 : index
    %c0_103 = arith.constant 0 : index
    %498 = vector.load %arg12[%c0_101, %c0_102, %c0_103] : memref<1x1x64xf32, #tpu.memory_space<vmem>>, vector<1x1x64xf32>
    %499 = vector.shape_cast %498 : vector<1x1x64xf32> to vector<1x64xf32>
    %500 = vector.broadcast %499 : vector<1x64xf32> to vector<16x64xf32>
    %501 = arith.addf %497, %500 : vector<16x64xf32>
    %cst_104 = arith.constant 0.000000e+00 : f32
    %502 = vector.broadcast %cst_104 : f32 to vector<16x64xf32>
    %503 = arith.maximumf %501, %502 : vector<16x64xf32>
    %504 = vector.broadcast %6 : vector<16x1xf32> to vector<16x64xf32>
    %505 = arith.mulf %503, %504 : vector<16x64xf32>
    %506 = arith.truncf %505 : vector<16x64xf32> to vector<16x64xbf16>
    %c0_105 = arith.constant 0 : index
    %c0_106 = arith.constant 0 : index
    %c0_107 = arith.constant 0 : index
    %507 = vector.load %arg13[%c0_105, %c0_106, %c0_107] : memref<1x64x32xbf16, #tpu.memory_space<vmem>>, vector<1x64x32xbf16>
    %508 = vector.shape_cast %507 : vector<1x64x32xbf16> to vector<64x32xbf16>
    %cst_108 = arith.constant dense<0.000000e+00> : vector<16x32xf32>
    %509 = tpu.matmul %506, %508, %cst_108 {dimension_numbers = #tpu.dot_dimension_numbers<[1], [0], [0], [1], [0, 0, 1, 1], [], []>} : vector<16x64xbf16>, vector<64x32xbf16>, vector<16x32xf32> -> vector<16x32xf32>
    %c0_109 = arith.constant 0 : index
    %c0_110 = arith.constant 0 : index
    %c0_111 = arith.constant 0 : index
    %510 = vector.load %arg14[%c0_109, %c0_110, %c0_111] : memref<1x1x32xf32, #tpu.memory_space<vmem>>, vector<1x1x32xf32>
    %511 = vector.shape_cast %510 : vector<1x1x32xf32> to vector<1x32xf32>
    %512 = vector.broadcast %511 : vector<1x32xf32> to vector<16x32xf32>
    %513 = arith.addf %509, %512 : vector<16x32xf32>
    %514 = vector.broadcast %6 : vector<16x1xf32> to vector<16x32xf32>
    %515 = arith.mulf %513, %514 : vector<16x32xf32>
    %516 = arith.addf %491, %515 : vector<16x32xf32>
    %c0_112 = arith.constant 0 : index
    %c0_113 = arith.constant 0 : index
    %c0_114 = arith.constant 0 : index
    %517 = vector.load %arg15[%c0_112, %c0_113, %c0_114] : memref<1x1x32xf32, #tpu.memory_space<vmem>>, vector<1x1x32xf32>
    %518 = vector.shape_cast %517 : vector<1x1x32xf32> to vector<1x32xf32>
    %c0_115 = arith.constant 0 : index
    %c0_116 = arith.constant 0 : index
    %c0_117 = arith.constant 0 : index
    %519 = vector.load %arg16[%c0_115, %c0_116, %c0_117] : memref<1x1x32xf32, #tpu.memory_space<vmem>>, vector<1x1x32xf32>
    %520 = vector.shape_cast %519 : vector<1x1x32xf32> to vector<1x32xf32>
    %cst_118 = arith.constant dense<0.000000e+00> : vector<16xf32>
    %521 = vector.multi_reduction <add>, %516, %cst_118 [1] : vector<16x32xf32> to vector<16xf32>
    %522 = vector.shape_cast %521 : vector<16xf32> to vector<16x1xf32>
    %cst_119 = arith.constant 3.200000e+01 : f32
    %523 = vector.broadcast %cst_119 : f32 to vector<16x1xf32>
    %524 = arith.divf %522, %523 : vector<16x1xf32>
    %525 = vector.broadcast %524 : vector<16x1xf32> to vector<16x32xf32>
    %526 = arith.subf %516, %525 : vector<16x32xf32>
    %527 = arith.mulf %526, %526 : vector<16x32xf32>
    %cst_120 = arith.constant dense<0.000000e+00> : vector<16xf32>
    %528 = vector.multi_reduction <add>, %527, %cst_120 [1] : vector<16x32xf32> to vector<16xf32>
    %529 = vector.shape_cast %528 : vector<16xf32> to vector<16x1xf32>
    %cst_121 = arith.constant 3.200000e+01 : f32
    %530 = vector.broadcast %cst_121 : f32 to vector<16x1xf32>
    %531 = arith.divf %529, %530 : vector<16x1xf32>
    %532 = vector.broadcast %524 : vector<16x1xf32> to vector<16x32xf32>
    %533 = arith.subf %516, %532 : vector<16x32xf32>
    %cst_122 = arith.constant 9.99999974E-6 : f32
    %534 = vector.broadcast %cst_122 : f32 to vector<16x1xf32>
    %535 = arith.addf %531, %534 : vector<16x1xf32>
    %536 = math.rsqrt %535 : vector<16x1xf32>
    %537 = vector.broadcast %536 : vector<16x1xf32> to vector<16x32xf32>
    %538 = arith.mulf %533, %537 : vector<16x32xf32>
    %539 = vector.broadcast %518 : vector<1x32xf32> to vector<16x32xf32>
    %540 = arith.mulf %538, %539 : vector<16x32xf32>
    %541 = vector.broadcast %520 : vector<1x32xf32> to vector<16x32xf32>
    %542 = arith.addf %540, %541 : vector<16x32xf32>
    %c0_123 = arith.constant 0 : index
    %c0_124 = arith.constant 0 : index
    %c0_125 = arith.constant 0 : index
    %543 = vector.load %arg19[%c0_123, %c0_124, %c0_125] : memref<1x16x32xf32, #tpu.memory_space<vmem>>, vector<1x16x32xf32>
    %544 = vector.shape_cast %543 : vector<1x16x32xf32> to vector<16x32xf32>
    %545 = vector.shape_cast %542 : vector<16x32xf32> to vector<1x16x32xf32>
    tpu.vector_store %arg19[%c0_123, %c0_124, %c0_125], %545 {strides = array<i32>} : memref<1x16x32xf32, #tpu.memory_space<vmem>>, vector<1x16x32xf32>,
    return
  }
  func.func @transform_0(%arg0: i32, %arg1: i32) -> (i32, i32, i32) {
    %c0_i32 = arith.constant 0 : i32
    %c0_i32_0 = arith.constant 0 : i32
    %c0_i32_1 = arith.constant 0 : i32
    return %arg0, %c0_i32, %c0_i32_0 : i32, i32, i32
  }
  func.func @transform_1(%arg0: i32, %arg1: i32) -> (i32, i32, i32) {
    %c0_i32 = arith.constant 0 : i32
    %c0_i32_0 = arith.constant 0 : i32
    %c0_i32_1 = arith.constant 0 : i32
    return %arg0, %c0_i32, %c0_i32_0 : i32, i32, i32
  }
  func.func @transform_2(%arg0: i32, %arg1: i32) -> (i32, i32, i32) {
    %c0_i32 = arith.constant 0 : i32
    %c0_i32_0 = arith.constant 0 : i32
    %c0_i32_1 = arith.constant 0 : i32
    return %arg0, %c0_i32, %c0_i32_0 : i32, i32, i32
  }
  func.func @transform_3(%arg0: i32, %arg1: i32) -> (i32, i32, i32) {
    %c0_i32 = arith.constant 0 : i32
    %c0_i32_0 = arith.constant 0 : i32
    %c0_i32_1 = arith.constant 0 : i32
    return %arg1, %c0_i32, %c0_i32_0 : i32, i32, i32
  }
  func.func @transform_4(%arg0: i32, %arg1: i32) -> (i32, i32, i32) {
    %c0_i32 = arith.constant 0 : i32
    %c0_i32_0 = arith.constant 0 : i32
    %c0_i32_1 = arith.constant 0 : i32
    return %arg1, %c0_i32, %c0_i32_0 : i32, i32, i32
  }
  func.func @transform_5(%arg0: i32, %arg1: i32) -> (i32, i32, i32) {
    %c0_i32 = arith.constant 0 : i32
    %c0_i32_0 = arith.constant 0 : i32
    %c0_i32_1 = arith.constant 0 : i32
    return %arg1, %c0_i32, %c0_i32_0 : i32, i32, i32
  }
  func.func @transform_6(%arg0: i32, %arg1: i32) -> (i32, i32, i32) {
    %c0_i32 = arith.constant 0 : i32
    %c0_i32_0 = arith.constant 0 : i32
    %c0_i32_1 = arith.constant 0 : i32
    return %arg1, %c0_i32, %c0_i32_0 : i32, i32, i32
  }
  func.func @transform_7(%arg0: i32, %arg1: i32) -> (i32, i32, i32) {
    %c0_i32 = arith.constant 0 : i32
    %c0_i32_0 = arith.constant 0 : i32
    %c0_i32_1 = arith.constant 0 : i32
    return %arg1, %c0_i32, %c0_i32_0 : i32, i32, i32
  }
  func.func @transform_8(%arg0: i32, %arg1: i32) -> (i32, i32, i32) {
    %c0_i32 = arith.constant 0 : i32
    %c0_i32_0 = arith.constant 0 : i32
    %c0_i32_1 = arith.constant 0 : i32
    return %arg1, %c0_i32, %c0_i32_0 : i32, i32, i32
  }
  func.func @transform_9(%arg0: i32, %arg1: i32) -> (i32, i32, i32) {
    %c0_i32 = arith.constant 0 : i32
    %c0_i32_0 = arith.constant 0 : i32
    %c0_i32_1 = arith.constant 0 : i32
    return %arg1, %c0_i32, %c0_i32_0 : i32, i32, i32
  }
  func.func @transform_10(%arg0: i32, %arg1: i32) -> (i32, i32, i32) {
    %c0_i32 = arith.constant 0 : i32
    %c0_i32_0 = arith.constant 0 : i32
    %c0_i32_1 = arith.constant 0 : i32
    return %arg1, %c0_i32, %c0_i32_0 : i32, i32, i32
  }
  func.func @transform_11(%arg0: i32, %arg1: i32) -> (i32, i32, i32) {
    %c0_i32 = arith.constant 0 : i32
    %c0_i32_0 = arith.constant 0 : i32
    %c0_i32_1 = arith.constant 0 : i32
    return %arg1, %c0_i32, %c0_i32_0 : i32, i32, i32
  }
  func.func @transform_12(%arg0: i32, %arg1: i32) -> (i32, i32, i32) {
    %c0_i32 = arith.constant 0 : i32
    %c0_i32_0 = arith.constant 0 : i32
    %c0_i32_1 = arith.constant 0 : i32
    return %arg1, %c0_i32, %c0_i32_0 : i32, i32, i32
  }
  func.func @transform_13(%arg0: i32, %arg1: i32) -> (i32, i32, i32) {
    %c0_i32 = arith.constant 0 : i32
    %c0_i32_0 = arith.constant 0 : i32
    %c0_i32_1 = arith.constant 0 : i32
    return %arg1, %c0_i32, %c0_i32_0 : i32, i32, i32
  }
  func.func @transform_14(%arg0: i32, %arg1: i32) -> (i32, i32, i32) {
    %c0_i32 = arith.constant 0 : i32
    %c0_i32_0 = arith.constant 0 : i32
    %c0_i32_1 = arith.constant 0 : i32
    return %arg1, %c0_i32, %c0_i32_0 : i32, i32, i32
  }
  func.func @transform_15(%arg0: i32, %arg1: i32) -> (i32, i32, i32) {
    %c0_i32 = arith.constant 0 : i32
    %c0_i32_0 = arith.constant 0 : i32
    %c0_i32_1 = arith.constant 0 : i32
    return %arg1, %c0_i32, %c0_i32_0 : i32, i32, i32
  }
  func.func @transform_16(%arg0: i32, %arg1: i32) -> (i32, i32, i32) {
    %c0_i32 = arith.constant 0 : i32
    %c0_i32_0 = arith.constant 0 : i32
    %c0_i32_1 = arith.constant 0 : i32
    return %arg1, %c0_i32, %c0_i32_0 : i32, i32, i32
  }
  func.func @transform_17(%arg0: i32, %arg1: i32) -> (i32, i32, i32) {
    %c0_i32 = arith.constant 0 : i32
    %c0_i32_0 = arith.constant 0 : i32
    %c0_i32_1 = arith.constant 0 : i32
    return %arg0, %c0_i32, %c0_i32_0 : i32, i32, i32
  }
}

</mosaic_0001>

<llo_original>
// kernel: tpu_custom_call.1
$region0: #{tpu_custom_call.1}
  #allocation0 [shape = 'u32[]', space=smem, size = 0x4, offset = 0x4, fixed_abs, tag = 'smem constant byte address 0x4 - core index']
  #allocation1 [shape = 'u32[72,128]{1,0:T(1,128)}', space=vmem, size = 0x9000, scoped, tag = 'internal scratch']
  %s0 = inlined_call_operand.vmem [shape: f32[2,16,32], index: 0, kind: input, shape index: {}]
  %s1 = inlined_call_operand.vmem [shape: f32[2,16,1], index: 1, kind: input, shape index: {}]
  %s2 = inlined_call_operand.vmem [shape: f32[2,1,16], index: 2, kind: input, shape index: {}]
  %s3 = inlined_call_operand.vmem [shape: bf16[2,32,96], index: 3, kind: input, shape index: {}]
  %s4 = inlined_call_operand.vmem [shape: f32[2,1,96], index: 4, kind: input, shape index: {}]
  %s5 = inlined_call_operand.vmem [shape: bf16[2,32,32], index: 5, kind: input, shape index: {}]
  %s6 = inlined_call_operand.vmem [shape: f32[2,1,32], index: 6, kind: input, shape index: {}]
  %s7 = inlined_call_operand.vmem [shape: f32[2,1,32], index: 7, kind: input, shape index: {}]
  %s8 = inlined_call_operand.vmem [shape: f32[2,1,32], index: 8, kind: input, shape index: {}]
  %s9 = inlined_call_operand.vmem [shape: bf16[2,32,64], index: 9, kind: input, shape index: {}]
  %s10 = inlined_call_operand.vmem [shape: f32[2,1,64], index: 10, kind: input, shape index: {}]
  %s11 = inlined_call_operand.vmem [shape: bf16[2,64,32], index: 11, kind: input, shape index: {}]
  %s12 = inlined_call_operand.vmem [shape: f32[2,1,32], index: 12, kind: input, shape index: {}]
  %s13 = inlined_call_operand.vmem [shape: f32[2,1,32], index: 13, kind: input, shape index: {}]
  %s14 = inlined_call_operand.vmem [shape: f32[2,1,32], index: 14, kind: input, shape index: {}]
  %s15 = inlined_call_operand.vmem [shape: bf16[2,21,16], index: 15, kind: input, shape index: {}]
  %s16 = inlined_call_operand.vmem [shape: f32[2,21,16], index: 16, kind: input, shape index: {}]
  %s17 = inlined_call_operand.hbm [shape: f32[2,16,32], index: 17, kind: output, shape index: {}]
  %s18 = sld [smem:[#allocation0]]
  $region105: #{tpu_custom_call.1} parent=0
    _
  %s20 = ssub.s32 1, %s18
  %s21 = scalar_select 0, %s20, %s18
  $region1: #{tpu_custom_call.1} parent=0
    #allocation2 [shape = 'u8[16384]{0}', space=vmem, size = 0x4000, scoped, tag = 'output window, operand 0']
    #allocation3 [shape = 's32[2]{0}', space=sflag, size = 0x8, scoped, tag = 'scoped memory for tpu_custom_call.1']
    %22 = vsyncpa [#allocation3], 0
    %s23 = scalar_lea.sflag [#allocation3], 1
    %24 = vsyncpa %s23, 0
    loop: start=0, step=1, limit=6
    $region2: #{tpu_custom_call.1} parent=1 // loop_pre_header
      _
    $region3: #{tpu_custom_call.1} parent=1 // loop_header
      %s26 = sphi 0, %s30
      %p27 = scmp.ge.s32.totalorder %s26, 6
      %s33 = sphi 0, %s45
      %s34 = sphi 0, %s41
      %s35 = sphi 0, %s33
      %s36 = sphi 0, %s34
      %s37 = sphi 0, %s35
      %s38 = sphi 0, %s36
      %s48 = sphi 0, %s50
      %s51 = sphi 0, %s48
      %s52 = sphi 0, %s51
      %s68 = sphi 0, %s52
      %s74 = sphi 0, %s76
      %s77 = sphi 0, %s74
      %s78 = sphi 0, %s77
      %s94 = sphi 0, %s78
      %s100 = sphi 0, %s102
      %s103 = sphi 0, %s100
      %s104 = sphi 0, %s103
      %s120 = sphi 0, %s104
      %s126 = sphi 0, %s128
      %s129 = sphi 0, %s126
      %s130 = sphi 0, %s129
      %s146 = sphi 0, %s130
      %s152 = sphi 0, %s154
      %s155 = sphi 0, %s152
      %s156 = sphi 0, %s155
      %s172 = sphi 0, %s156
      %s178 = sphi 0, %s180
      %s181 = sphi 0, %s178
      %s182 = sphi 0, %s181
      %s198 = sphi 0, %s182
      %s204 = sphi 0, %s206
      %s207 = sphi 0, %s204
      %s208 = sphi 0, %s207
      %s224 = sphi 0, %s208
      %s230 = sphi 0, %s232
      %s233 = sphi 0, %s230
      %s234 = sphi 0, %s233
      %s250 = sphi 0, %s234
      %s256 = sphi 0, %s258
      %s259 = sphi 0, %s256
      %s260 = sphi 0, %s259
      %s276 = sphi 0, %s260
      %s282 = sphi 0, %s284
      %s285 = sphi 0, %s282
      %s286 = sphi 0, %s285
      %s302 = sphi 0, %s286
      %s308 = sphi 0, %s310
      %s311 = sphi 0, %s308
      %s312 = sphi 0, %s311
      %s328 = sphi 0, %s312
      %s334 = sphi 0, %s336
      %s337 = sphi 0, %s334
      %s338 = sphi 0, %s337
      %s354 = sphi 0, %s338
      %s360 = sphi 0, %s362
      %s363 = sphi 0, %s360
      %s364 = sphi 0, %s363
      %s380 = sphi 0, %s364
      %s386 = sphi 0, %s388
      %s389 = sphi 0, %s386
      %s390 = sphi 0, %s389
      %s406 = sphi 0, %s390
      %s412 = sphi 0, %s414
      %s415 = sphi 0, %s412
      %s416 = sphi 0, %s415
      %s432 = sphi 0, %s416
      %s438 = sphi 0, %s440
      %s441 = sphi 0, %s438
      %s442 = sphi 0, %s441
      %s458 = sphi 0, %s442
      %s464 = sphi 0, %s466
      %s467 = sphi 0, %s464
      %s468 = sphi 0, %s467
      %s484 = sphi 0, %s468
      %s490 = sphi 0, %s492
      %s493 = sphi 0, %s490
      %s494 = sphi 0, %s493
      %s510 = sphi 0, %s494
    $region4: #{tpu_custom_call.1} parent=1 // loop_header_branch
      %29 = sbr.rel (%p27) target = $region8
    $region5: #{tpu_custom_call.1} parent=1 // loop_body
      %s31 = ssub.s32 %s26, 1
      %s32 = ssub.s32 %s26, 2
      %s39 = sadd.s32 1, %s34
      %p40 = scmp.ge.s32.totalorder %s39, 2
      %s41 = scalar_select %p40, 0, %s39
      %s42 = sadd.s32 1, %s33
      %s43 = scalar_select %p40, %s42, %s33
      %p44 = scmp.ge.s32.totalorder %s43, 2
      %s45 = scalar_select %p44, 0, %s43
      %s46 = ssub.s32 %s33, %s45
      %p47 = scmp.eq.s32.totalorder %s46, 0
      %s49 = sadd.s32 %s48, 1
      %s50 = scalar_select %p47, %s48, %s49
      %p53 = pneg %p47
      %p54 = scmp.eq.s32.totalorder %s26, 3
      %p55 = por %p53, %p54
      %p56 = scmp.ne.s32.totalorder %s48, %s51
      %p57 = scmp.eq.s32.totalorder %s26, 0
      %p58 = por %p56, %p57
      %p59 = scmp.ne.s32.totalorder %s48, %s51
      %p60 = scmp.eq.s32.totalorder %s31, 3
      %p61 = por %p59, %p60
      %p62 = scmp.ne.s32.totalorder %s51, %s52
      %p63 = scmp.eq.s32.totalorder %s31, 0
      %p64 = por %p62, %p63
      %p65 = scmp.ne.s32.totalorder %s51, %s52
      %p66 = scmp.eq.s32.totalorder %s32, 3
      %p67 = por %p65, %p66
      %p69 = scmp.ne.s32.totalorder %s52, %s68
      %p70 = scmp.eq.s32.totalorder %s32, 0
      %p71 = por %p69, %p70
      %s72 = ssub.s32 %s33, %s45
      %p73 = scmp.eq.s32.totalorder %s72, 0
      %s75 = sadd.s32 %s74, 1
      %s76 = scalar_select %p73, %s74, %s75
      %p79 = pneg %p73
      %p80 = scmp.eq.s32.totalorder %s26, 3
      %p81 = por %p79, %p80
      %p82 = scmp.ne.s32.totalorder %s74, %s77
      %p83 = scmp.eq.s32.totalorder %s26, 0
      %p84 = por %p82, %p83
      %p85 = scmp.ne.s32.totalorder %s74, %s77
      %p86 = scmp.eq.s32.totalorder %s31, 3
      %p87 = por %p85, %p86
      %p88 = scmp.ne.s32.totalorder %s77, %s78
      %p89 = scmp.eq.s32.totalorder %s31, 0
      %p90 = por %p88, %p89
      %p91 = scmp.ne.s32.totalorder %s77, %s78
      %p92 = scmp.eq.s32.totalorder %s32, 3
      %p93 = por %p91, %p92
      %p95 = scmp.ne.s32.totalorder %s78, %s94
      %p96 = scmp.eq.s32.totalorder %s32, 0
      %p97 = por %p95, %p96
      %s98 = ssub.s32 %s33, %s45
      %p99 = scmp.eq.s32.totalorder %s98, 0
      %s101 = sadd.s32 %s100, 1
      %s102 = scalar_select %p99, %s100, %s101
      %p105 = pneg %p99
      %p106 = scmp.eq.s32.totalorder %s26, 3
      %p107 = por %p105, %p106
      %p108 = scmp.ne.s32.totalorder %s100, %s103
      %p109 = scmp.eq.s32.totalorder %s26, 0
      %p110 = por %p108, %p109
      %p111 = scmp.ne.s32.totalorder %s100, %s103
      %p112 = scmp.eq.s32.totalorder %s31, 3
      %p113 = por %p111, %p112
      %p114 = scmp.ne.s32.totalorder %s103, %s104
      %p115 = scmp.eq.s32.totalorder %s31, 0
      %p116 = por %p114, %p115
      %p117 = scmp.ne.s32.totalorder %s103, %s104
      %p118 = scmp.eq.s32.totalorder %s32, 3
      %p119 = por %p117, %p118
      %p121 = scmp.ne.s32.totalorder %s104, %s120
      %p122 = scmp.eq.s32.totalorder %s32, 0
      %p123 = por %p121, %p122
      %s124 = ssub.s32 %s34, %s41
      %p125 = scmp.eq.s32.totalorder %s124, 0
      %s127 = sadd.s32 %s126, 1
      %s128 = scalar_select %p125, %s126, %s127
      %p131 = pneg %p125
      %p132 = scmp.eq.s32.totalorder %s26, 3
      %p133 = por %p131, %p132
      %p134 = scmp.ne.s32.totalorder %s126, %s129
      %p135 = scmp.eq.s32.totalorder %s26, 0
      %p136 = por %p134, %p135
      %p137 = scmp.ne.s32.totalorder %s126, %s129
      %p138 = scmp.eq.s32.totalorder %s31, 3
      %p139 = por %p137, %p138
      %p140 = scmp.ne.s32.totalorder %s129, %s130
      %p141 = scmp.eq.s32.totalorder %s31, 0
      %p142 = por %p140, %p141
      %p143 = scmp.ne.s32.totalorder %s129, %s130
      %p144 = scmp.eq.s32.totalorder %s32, 3
      %p145 = por %p143, %p144
      %p147 = scmp.ne.s32.totalorder %s130, %s146
      %p148 = scmp.eq.s32.totalorder %s32, 0
      %p149 = por %p147, %p148
      %s150 = ssub.s32 %s34, %s41
      %p151 = scmp.eq.s32.totalorder %s150, 0
      %s153 = sadd.s32 %s152, 1
      %s154 = scalar_select %p151, %s152, %s153
      %p157 = pneg %p151
      %p158 = scmp.eq.s32.totalorder %s26, 3
      %p159 = por %p157, %p158
      %p160 = scmp.ne.s32.totalorder %s152, %s155
      %p161 = scmp.eq.s32.totalorder %s26, 0
      %p162 = por %p160, %p161
      %p163 = scmp.ne.s32.totalorder %s152, %s155
      %p164 = scmp.eq.s32.totalorder %s31, 3
      %p165 = por %p163, %p164
      %p166 = scmp.ne.s32.totalorder %s155, %s156
      %p167 = scmp.eq.s32.totalorder %s31, 0
      %p168 = por %p166, %p167
      %p169 = scmp.ne.s32.totalorder %s155, %s156
      %p170 = scmp.eq.s32.totalorder %s32, 3
      %p171 = por %p169, %p170
      %p173 = scmp.ne.s32.totalorder %s156, %s172
      %p174 = scmp.eq.s32.totalorder %s32, 0
      %p175 = por %p173, %p174
      %s176 = ssub.s32 %s34, %s41
      %p177 = scmp.eq.s32.totalorder %s176, 0
      %s179 = sadd.s32 %s178, 1
      %s180 = scalar_select %p177, %s178, %s179
      %p183 = pneg %p177
      %p184 = scmp.eq.s32.totalorder %s26, 3
      %p185 = por %p183, %p184
      %p186 = scmp.ne.s32.totalorder %s178, %s181
      %p187 = scmp.eq.s32.totalorder %s26, 0
      %p188 = por %p186, %p187
      %p189 = scmp.ne.s32.totalorder %s178, %s181
      %p190 = scmp.eq.s32.totalorder %s31, 3
      %p191 = por %p189, %p190
      %p192 = scmp.ne.s32.totalorder %s181, %s182
      %p193 = scmp.eq.s32.totalorder %s31, 0
      %p194 = por %p192, %p193
      %p195 = scmp.ne.s32.totalorder %s181, %s182
      %p196 = scmp.eq.s32.totalorder %s32, 3
      %p197 = por %p195, %p196
      %p199 = scmp.ne.s32.totalorder %s182, %s198
      %p200 = scmp.eq.s32.totalorder %s32, 0
      %p201 = por %p199, %p200
      %s202 = ssub.s32 %s34, %s41
      %p203 = scmp.eq.s32.totalorder %s202, 0
      %s205 = sadd.s32 %s204, 1
      %s206 = scalar_select %p203, %s204, %s205
      %p209 = pneg %p203
      %p210 = scmp.eq.s32.totalorder %s26, 3
      %p211 = por %p209, %p210
      %p212 = scmp.ne.s32.totalorder %s204, %s207
      %p213 = scmp.eq.s32.totalorder %s26, 0
      %p214 = por %p212, %p213
      %p215 = scmp.ne.s32.totalorder %s204, %s207
      %p216 = scmp.eq.s32.totalorder %s31, 3
      %p217 = por %p215, %p216
      %p218 = scmp.ne.s32.totalorder %s207, %s208
      %p219 = scmp.eq.s32.totalorder %s31, 0
      %p220 = por %p218, %p219
      %p221 = scmp.ne.s32.totalorder %s207, %s208
      %p222 = scmp.eq.s32.totalorder %s32, 3
      %p223 = por %p221, %p222
      %p225 = scmp.ne.s32.totalorder %s208, %s224
      %p226 = scmp.eq.s32.totalorder %s32, 0
      %p227 = por %p225, %p226
      %s228 = ssub.s32 %s34, %s41
      %p229 = scmp.eq.s32.totalorder %s228, 0
      %s231 = sadd.s32 %s230, 1
      %s232 = scalar_select %p229, %s230, %s231
      %p235 = pneg %p229
      %p236 = scmp.eq.s32.totalorder %s26, 3
      %p237 = por %p235, %p236
      %p238 = scmp.ne.s32.totalorder %s230, %s233
      %p239 = scmp.eq.s32.totalorder %s26, 0
      %p240 = por %p238, %p239
      %p241 = scmp.ne.s32.totalorder %s230, %s233
      %p242 = scmp.eq.s32.totalorder %s31, 3
      %p243 = por %p241, %p242
      %p244 = scmp.ne.s32.totalorder %s233, %s234
      %p245 = scmp.eq.s32.totalorder %s31, 0
      %p246 = por %p244, %p245
      %p247 = scmp.ne.s32.totalorder %s233, %s234
      %p248 = scmp.eq.s32.totalorder %s32, 3
      %p249 = por %p247, %p248
      %p251 = scmp.ne.s32.totalorder %s234, %s250
      %p252 = scmp.eq.s32.totalorder %s32, 0
      %p253 = por %p251, %p252
      %s254 = ssub.s32 %s34, %s41
      %p255 = scmp.eq.s32.totalorder %s254, 0
      %s257 = sadd.s32 %s256, 1
      %s258 = scalar_select %p255, %s256, %s257
      %p261 = pneg %p255
      %p262 = scmp.eq.s32.totalorder %s26, 3
      %p263 = por %p261, %p262
      %p264 = scmp.ne.s32.totalorder %s256, %s259
      %p265 = scmp.eq.s32.totalorder %s26, 0
      %p266 = por %p264, %p265
      %p267 = scmp.ne.s32.totalorder %s256, %s259
      %p268 = scmp.eq.s32.totalorder %s31, 3
      %p269 = por %p267, %p268
      %p270 = scmp.ne.s32.totalorder %s259, %s260
      %p271 = scmp.eq.s32.totalorder %s31, 0
      %p272 = por %p270, %p271
      %p273 = scmp.ne.s32.totalorder %s259, %s260
      %p274 = scmp.eq.s32.totalorder %s32, 3
      %p275 = por %p273, %p274
      %p277 = scmp.ne.s32.totalorder %s260, %s276
      %p278 = scmp.eq.s32.totalorder %s32, 0
      %p279 = por %p277, %p278
      %s280 = ssub.s32 %s34, %s41
      %p281 = scmp.eq.s32.totalorder %s280, 0
      %s283 = sadd.s32 %s282, 1
      %s284 = scalar_select %p281, %s282, %s283
      %p287 = pneg %p281
      %p288 = scmp.eq.s32.totalorder %s26, 3
      %p289 = por %p287, %p288
      %p290 = scmp.ne.s32.totalorder %s282, %s285
      %p291 = scmp.eq.s32.totalorder %s26, 0
      %p292 = por %p290, %p291
      %p293 = scmp.ne.s32.totalorder %s282, %s285
      %p294 = scmp.eq.s32.totalorder %s31, 3
      %p295 = por %p293, %p294
      %p296 = scmp.ne.s32.totalorder %s285, %s286
      %p297 = scmp.eq.s32.totalorder %s31, 0
      %p298 = por %p296, %p297
      %p299 = scmp.ne.s32.totalorder %s285, %s286
      %p300 = scmp.eq.s32.totalorder %s32, 3
      %p301 = por %p299, %p300
      %p303 = scmp.ne.s32.totalorder %s286, %s302
      %p304 = scmp.eq.s32.totalorder %s32, 0
      %p305 = por %p303, %p304
      %s306 = ssub.s32 %s34, %s41
      %p307 = scmp.eq.s32.totalorder %s306, 0
      %s309 = sadd.s32 %s308, 1
      %s310 = scalar_select %p307, %s308, %s309
      %p313 = pneg %p307
      %p314 = scmp.eq.s32.totalorder %s26, 3
      %p315 = por %p313, %p314
      %p316 = scmp.ne.s32.totalorder %s308, %s311
      %p317 = scmp.eq.s32.totalorder %s26, 0
      %p318 = por %p316, %p317
      %p319 = scmp.ne.s32.totalorder %s308, %s311
      %p320 = scmp.eq.s32.totalorder %s31, 3
      %p321 = por %p319, %p320
      %p322 = scmp.ne.s32.totalorder %s311, %s312
      %p323 = scmp.eq.s32.totalorder %s31, 0
      %p324 = por %p322, %p323
      %p325 = scmp.ne.s32.totalorder %s311, %s312
      %p326 = scmp.eq.s32.totalorder %s32, 3
      %p327 = por %p325, %p326
      %p329 = scmp.ne.s32.totalorder %s312, %s328
      %p330 = scmp.eq.s32.totalorder %s32, 0
      %p331 = por %p329, %p330
      %s332 = ssub.s32 %s34, %s41
      %p333 = scmp.eq.s32.totalorder %s332, 0
      %s335 = sadd.s32 %s334, 1
      %s336 = scalar_select %p333, %s334, %s335
      %p339 = pneg %p333
      %p340 = scmp.eq.s32.totalorder %s26, 3
      %p341 = por %p339, %p340
      %p342 = scmp.ne.s32.totalorder %s334, %s337
      %p343 = scmp.eq.s32.totalorder %s26, 0
      %p344 = por %p342, %p343
      %p345 = scmp.ne.s32.totalorder %s334, %s337
      %p346 = scmp.eq.s32.totalorder %s31, 3
      %p347 = por %p345, %p346
      %p348 = scmp.ne.s32.totalorder %s337, %s338
      %p349 = scmp.eq.s32.totalorder %s31, 0
      %p350 = por %p348, %p349
      %p351 = scmp.ne.s32.totalorder %s337, %s338
      %p352 = scmp.eq.s32.totalorder %s32, 3
      %p353 = por %p351, %p352
      %p355 = scmp.ne.s32.totalorder %s338, %s354
      %p356 = scmp.eq.s32.totalorder %s32, 0
      %p357 = por %p355, %p356
      %s358 = ssub.s32 %s34, %s41
      %p359 = scmp.eq.s32.totalorder %s358, 0
      %s361 = sadd.s32 %s360, 1
      %s362 = scalar_select %p359, %s360, %s361
      %p365 = pneg %p359
      %p366 = scmp.eq.s32.totalorder %s26, 3
      %p367 = por %p365, %p366
      %p368 = scmp.ne.s32.totalorder %s360, %s363
      %p369 = scmp.eq.s32.totalorder %s26, 0
      %p370 = por %p368, %p369
      %p371 = scmp.ne.s32.totalorder %s360, %s363
      %p372 = scmp.eq.s32.totalorder %s31, 3
      %p373 = por %p371, %p372
      %p374 = scmp.ne.s32.totalorder %s363, %s364
      %p375 = scmp.eq.s32.totalorder %s31, 0
      %p376 = por %p374, %p375
      %p377 = scmp.ne.s32.totalorder %s363, %s364
      %p378 = scmp.eq.s32.totalorder %s32, 3
      %p379 = por %p377, %p378
      %p381 = scmp.ne.s32.totalorder %s364, %s380
      %p382 = scmp.eq.s32.totalorder %s32, 0
      %p383 = por %p381, %p382
      %s384 = ssub.s32 %s34, %s41
      %p385 = scmp.eq.s32.totalorder %s384, 0
      %s387 = sadd.s32 %s386, 1
      %s388 = scalar_select %p385, %s386, %s387
      %p391 = pneg %p385
      %p392 = scmp.eq.s32.totalorder %s26, 3
      %p393 = por %p391, %p392
      %p394 = scmp.ne.s32.totalorder %s386, %s389
      %p395 = scmp.eq.s32.totalorder %s26, 0
      %p396 = por %p394, %p395
      %p397 = scmp.ne.s32.totalorder %s386, %s389
      %p398 = scmp.eq.s32.totalorder %s31, 3
      %p399 = por %p397, %p398
      %p400 = scmp.ne.s32.totalorder %s389, %s390
      %p401 = scmp.eq.s32.totalorder %s31, 0
      %p402 = por %p400, %p401
      %p403 = scmp.ne.s32.totalorder %s389, %s390
      %p404 = scmp.eq.s32.totalorder %s32, 3
      %p405 = por %p403, %p404
      %p407 = scmp.ne.s32.totalorder %s390, %s406
      %p408 = scmp.eq.s32.totalorder %s32, 0
      %p409 = por %p407, %p408
      %s410 = ssub.s32 %s34, %s41
      %p411 = scmp.eq.s32.totalorder %s410, 0
      %s413 = sadd.s32 %s412, 1
      %s414 = scalar_select %p411, %s412, %s413
      %p417 = pneg %p411
      %p418 = scmp.eq.s32.totalorder %s26, 3
      %p419 = por %p417, %p418
      %p420 = scmp.ne.s32.totalorder %s412, %s415
      %p421 = scmp.eq.s32.totalorder %s26, 0
      %p422 = por %p420, %p421
      %p423 = scmp.ne.s32.totalorder %s412, %s415
      %p424 = scmp.eq.s32.totalorder %s31, 3
      %p425 = por %p423, %p424
      %p426 = scmp.ne.s32.totalorder %s415, %s416
      %p427 = scmp.eq.s32.totalorder %s31, 0
      %p428 = por %p426, %p427
      %p429 = scmp.ne.s32.totalorder %s415, %s416
      %p430 = scmp.eq.s32.totalorder %s32, 3
      %p431 = por %p429, %p430
      %p433 = scmp.ne.s32.totalorder %s416, %s432
      %p434 = scmp.eq.s32.totalorder %s32, 0
      %p435 = por %p433, %p434
      %s436 = ssub.s32 %s34, %s41
      %p437 = scmp.eq.s32.totalorder %s436, 0
      %s439 = sadd.s32 %s438, 1
      %s440 = scalar_select %p437, %s438, %s439
      %p443 = pneg %p437
      %p444 = scmp.eq.s32.totalorder %s26, 3
      %p445 = por %p443, %p444
      %p446 = scmp.ne.s32.totalorder %s438, %s441
      %p447 = scmp.eq.s32.totalorder %s26, 0
      %p448 = por %p446, %p447
      %p449 = scmp.ne.s32.totalorder %s438, %s441
      %p450 = scmp.eq.s32.totalorder %s31, 3
      %p451 = por %p449, %p450
      %p452 = scmp.ne.s32.totalorder %s441, %s442
      %p453 = scmp.eq.s32.totalorder %s31, 0
      %p454 = por %p452, %p453
      %p455 = scmp.ne.s32.totalorder %s441, %s442
      %p456 = scmp.eq.s32.totalorder %s32, 3
      %p457 = por %p455, %p456
      %p459 = scmp.ne.s32.totalorder %s442, %s458
      %p460 = scmp.eq.s32.totalorder %s32, 0
      %p461 = por %p459, %p460
      %s462 = ssub.s32 %s34, %s41
      %p463 = scmp.eq.s32.totalorder %s462, 0
      %s465 = sadd.s32 %s464, 1
      %s466 = scalar_select %p463, %s464, %s465
      %p469 = pneg %p463
      %p470 = scmp.eq.s32.totalorder %s26, 3
      %p471 = por %p469, %p470
      %p472 = scmp.ne.s32.totalorder %s464, %s467
      %p473 = scmp.eq.s32.totalorder %s26, 0
      %p474 = por %p472, %p473
      %p475 = scmp.ne.s32.totalorder %s464, %s467
      %p476 = scmp.eq.s32.totalorder %s31, 3
      %p477 = por %p475, %p476
      %p478 = scmp.ne.s32.totalorder %s467, %s468
      %p479 = scmp.eq.s32.totalorder %s31, 0
      %p480 = por %p478, %p479
      %p481 = scmp.ne.s32.totalorder %s467, %s468
      %p482 = scmp.eq.s32.totalorder %s32, 3
      %p483 = por %p481, %p482
      %p485 = scmp.ne.s32.totalorder %s468, %s484
      %p486 = scmp.eq.s32.totalorder %s32, 0
      %p487 = por %p485, %p486
      %s488 = ssub.s32 %s33, %s45
      %p489 = scmp.eq.s32.totalorder %s488, 0
      %s491 = sadd.s32 %s490, 1
      %s492 = scalar_select %p489, %s490, %s491
      %p495 = pneg %p489
      %p496 = scmp.eq.s32.totalorder %s26, 3
      %p497 = por %p495, %p496
      %p498 = scmp.ne.s32.totalorder %s490, %s493
      %p499 = scmp.eq.s32.totalorder %s26, 0
      %p500 = por %p498, %p499
      %p501 = scmp.ne.s32.totalorder %s490, %s493
      %p502 = scmp.eq.s32.totalorder %s31, 3
      %p503 = por %p501, %p502
      %p504 = scmp.ne.s32.totalorder %s493, %s494
      %p505 = scmp.eq.s32.totalorder %s31, 0
      %p506 = por %p504, %p505
      %p507 = scmp.ne.s32.totalorder %s493, %s494
      %p508 = scmp.eq.s32.totalorder %s32, 3
      %p509 = por %p507, %p508
      %p511 = scmp.ne.s32.totalorder %s494, %s510
      %p512 = scmp.eq.s32.totalorder %s32, 0
      %p513 = por %p511, %p512
      %p514 = scmp.le.s32.totalorder 1, %s26
      %p515 = scmp.lt.s32.totalorder %s26, 5
      %p516 = pnand %p514, %p515
      %p517 = pneg %p516
      // Predicated region
      $region9: #{tpu_custom_call.1} parent=5 // pred_check
        _
      $region10: #{tpu_custom_call.1} parent=5 // pred_check_branch
        %519 = sbr.rel (%p516) target = $region12
      $region11: #{tpu_custom_call.1} parent=5 // pred_region
        %s520 = ssub.s32 %s26, 1
      $region12: #{tpu_custom_call.1} parent=5 // pred_fallthru
        _
      %p521 = scmp.lt.s32.totalorder %s26, 4
      // Predicated region
      $region13: #{tpu_custom_call.1} parent=5 // pred_check
        %p522 = pneg %p521
      $region14: #{tpu_custom_call.1} parent=5 // pred_check_branch
        %524 = sbr.rel (%p522) target = $region16
      $region15: #{tpu_custom_call.1} parent=5 // pred_region
        // Predicated region
        $region17: #{tpu_custom_call.1} parent=15 // pred_check
          %p525 = pneg %p58
        $region18: #{tpu_custom_call.1} parent=15 // pred_check_branch
          %527 = sbr.rel (%p525) target = $region20
        $region19: #{tpu_custom_call.1} parent=15 // pred_region
          %p528 = scmp.lt.s32.totalorder %s33, 1
          %s529 = scalar_select %p528, %s33, 1
          %s530 = smul.addr %s529, 2
          %s531 = smul.addr %s530, 8
          %s532 = scalar_lea.vmem %s0, %s531
        $region20: #{tpu_custom_call.1} parent=15 // pred_fallthru
          _
        // Predicated region
        $region21: #{tpu_custom_call.1} parent=15 // pred_check
          %p533 = pneg %p84
        $region22: #{tpu_custom_call.1} parent=15 // pred_check_branch
          %535 = sbr.rel (%p533) target = $region24
        $region23: #{tpu_custom_call.1} parent=15 // pred_region
          %p536 = scmp.lt.s32.totalorder %s33, 1
          %s537 = scalar_select %p536, %s33, 1
          %s538 = smul.addr %s537, 2
          %s539 = smul.addr %s538, 8
          %s540 = scalar_lea.vmem %s1, %s539
        $region24: #{tpu_custom_call.1} parent=15 // pred_fallthru
          _
        // Predicated region
        $region25: #{tpu_custom_call.1} parent=15 // pred_check
          %p541 = pneg %p110
        $region26: #{tpu_custom_call.1} parent=15 // pred_check_branch
          %543 = sbr.rel (%p541) target = $region28
        $region27: #{tpu_custom_call.1} parent=15 // pred_region
          %p544 = scmp.lt.s32.totalorder %s33, 1
          %s545 = scalar_select %p544, %s33, 1
          %s546 = scalar_lea.vmem %s2, %s545
        $region28: #{tpu_custom_call.1} parent=15 // pred_fallthru
          _
        // Predicated region
        $region29: #{tpu_custom_call.1} parent=15 // pred_check
          %p547 = pneg %p136
        $region30: #{tpu_custom_call.1} parent=15 // pred_check_branch
          %549 = sbr.rel (%p547) target = $region32
        $region31: #{tpu_custom_call.1} parent=15 // pred_region
          %p550 = scmp.lt.s32.totalorder %s34, 1
          %s551 = scalar_select %p550, %s34, 1
          %s552 = smul.addr %s551, 4
          %s553 = smul.addr %s552, 4
          %s554 = scalar_lea.vmem %s3, %s553
        $region32: #{tpu_custom_call.1} parent=15 // pred_fallthru
          _
        // Predicated region
        $region33: #{tpu_custom_call.1} parent=15 // pred_check
          %p555 = pneg %p162
        $region34: #{tpu_custom_call.1} parent=15 // pred_check_branch
          %557 = sbr.rel (%p555) target = $region36
        $region35: #{tpu_custom_call.1} parent=15 // pred_region
          %p558 = scmp.lt.s32.totalorder %s34, 1
          %s559 = scalar_select %p558, %s34, 1
          %s560 = scalar_lea.vmem %s4, %s559
        $region36: #{tpu_custom_call.1} parent=15 // pred_fallthru
          _
        // Predicated region
        $region37: #{tpu_custom_call.1} parent=15 // pred_check
          %p561 = pneg %p188
        $region38: #{tpu_custom_call.1} parent=15 // pred_check_branch
          %563 = sbr.rel (%p561) target = $region40
        $region39: #{tpu_custom_call.1} parent=15 // pred_region
          %p564 = scmp.lt.s32.totalorder %s34, 1
          %s565 = scalar_select %p564, %s34, 1
          %s566 = smul.addr %s565, 4
          %s567 = smul.addr %s566, 4
          %s568 = scalar_lea.vmem %s5, %s567
        $region40: #{tpu_custom_call.1} parent=15 // pred_fallthru
          _
        // Predicated region
        $region41: #{tpu_custom_call.1} parent=15 // pred_check
          %p569 = pneg %p214
        $region42: #{tpu_custom_call.1} parent=15 // pred_check_branch
          %571 = sbr.rel (%p569) target = $region44
        $region43: #{tpu_custom_call.1} parent=15 // pred_region
          %p572 = scmp.lt.s32.totalorder %s34, 1
          %s573 = scalar_select %p572, %s34, 1
          %s574 = scalar_lea.vmem %s6, %s573
        $region44: #{tpu_custom_call.1} parent=15 // pred_fallthru
          _
        // Predicated region
        $region45: #{tpu_custom_call.1} parent=15 // pred_check
          %p575 = pneg %p240
        $region46: #{tpu_custom_call.1} parent=15 // pred_check_branch
          %577 = sbr.rel (%p575) target = $region48
        $region47: #{tpu_custom_call.1} parent=15 // pred_region
          %p578 = scmp.lt.s32.totalorder %s34, 1
          %s579 = scalar_select %p578, %s34, 1
          %s580 = scalar_lea.vmem %s7, %s579
        $region48: #{tpu_custom_call.1} parent=15 // pred_fallthru
          _
        // Predicated region
        $region49: #{tpu_custom_call.1} parent=15 // pred_check
          %p581 = pneg %p266
        $region50: #{tpu_custom_call.1} parent=15 // pred_check_branch
          %583 = sbr.rel (%p581) target = $region52
        $region51: #{tpu_custom_call.1} parent=15 // pred_region
          %p584 = scmp.lt.s32.totalorder %s34, 1
          %s585 = scalar_select %p584, %s34, 1
          %s586 = scalar_lea.vmem %s8, %s585
        $region52: #{tpu_custom_call.1} parent=15 // pred_fallthru
          _
        // Predicated region
        $region53: #{tpu_custom_call.1} parent=15 // pred_check
          %p587 = pneg %p292
        $region54: #{tpu_custom_call.1} parent=15 // pred_check_branch
          %589 = sbr.rel (%p587) target = $region56
        $region55: #{tpu_custom_call.1} parent=15 // pred_region
          %p590 = scmp.lt.s32.totalorder %s34, 1
          %s591 = scalar_select %p590, %s34, 1
          %s592 = smul.addr %s591, 4
          %s593 = smul.addr %s592, 4
          %s594 = scalar_lea.vmem %s9, %s593
        $region56: #{tpu_custom_call.1} parent=15 // pred_fallthru
          _
        // Predicated region
        $region57: #{tpu_custom_call.1} parent=15 // pred_check
          %p595 = pneg %p318
        $region58: #{tpu_custom_call.1} parent=15 // pred_check_branch
          %597 = sbr.rel (%p595) target = $region60
        $region59: #{tpu_custom_call.1} parent=15 // pred_region
          %p598 = scmp.lt.s32.totalorder %s34, 1
          %s599 = scalar_select %p598, %s34, 1
          %s600 = scalar_lea.vmem %s10, %s599
        $region60: #{tpu_custom_call.1} parent=15 // pred_fallthru
          _
        // Predicated region
        $region61: #{tpu_custom_call.1} parent=15 // pred_check
          %p601 = pneg %p344
        $region62: #{tpu_custom_call.1} parent=15 // pred_check_branch
          %603 = sbr.rel (%p601) target = $region64
        $region63: #{tpu_custom_call.1} parent=15 // pred_region
          %p604 = scmp.lt.s32.totalorder %s34, 1
          %s605 = scalar_select %p604, %s34, 1
          %s606 = smul.addr %s605, 8
          %s607 = smul.addr %s606, 4
          %s608 = scalar_lea.vmem %s11, %s607
        $region64: #{tpu_custom_call.1} parent=15 // pred_fallthru
          _
        // Predicated region
        $region65: #{tpu_custom_call.1} parent=15 // pred_check
          %p609 = pneg %p370
        $region66: #{tpu_custom_call.1} parent=15 // pred_check_branch
          %611 = sbr.rel (%p609) target = $region68
        $region67: #{tpu_custom_call.1} parent=15 // pred_region
          %p612 = scmp.lt.s32.totalorder %s34, 1
          %s613 = scalar_select %p612, %s34, 1
          %s614 = scalar_lea.vmem %s12, %s613
        $region68: #{tpu_custom_call.1} parent=15 // pred_fallthru
          _
        // Predicated region
        $region69: #{tpu_custom_call.1} parent=15 // pred_check
          %p615 = pneg %p396
        $region70: #{tpu_custom_call.1} parent=15 // pred_check_branch
          %617 = sbr.rel (%p615) target = $region72
        $region71: #{tpu_custom_call.1} parent=15 // pred_region
          %p618 = scmp.lt.s32.totalorder %s34, 1
          %s619 = scalar_select %p618, %s34, 1
          %s620 = scalar_lea.vmem %s13, %s619
        $region72: #{tpu_custom_call.1} parent=15 // pred_fallthru
          _
        // Predicated region
        $region73: #{tpu_custom_call.1} parent=15 // pred_check
          %p621 = pneg %p422
        $region74: #{tpu_custom_call.1} parent=15 // pred_check_branch
          %623 = sbr.rel (%p621) target = $region76
        $region75: #{tpu_custom_call.1} parent=15 // pred_region
          %p624 = scmp.lt.s32.totalorder %s34, 1
          %s625 = scalar_select %p624, %s34, 1
          %s626 = scalar_lea.vmem %s14, %s625
        $region76: #{tpu_custom_call.1} parent=15 // pred_fallthru
          _
        // Predicated region
        $region77: #{tpu_custom_call.1} parent=15 // pred_check
          %p627 = pneg %p448
        $region78: #{tpu_custom_call.1} parent=15 // pred_check_branch
          %629 = sbr.rel (%p627) target = $region80
        $region79: #{tpu_custom_call.1} parent=15 // pred_region
          %p630 = scmp.lt.s32.totalorder %s34, 1
          %s631 = scalar_select %p630, %s34, 1
          %s632 = smul.addr %s631, 3
          %s633 = smul.addr %s632, 4
          %s634 = scalar_lea.vmem %s15, %s633
        $region80: #{tpu_custom_call.1} parent=15 // pred_fallthru
          _
        // Predicated region
        $region81: #{tpu_custom_call.1} parent=15 // pred_check
          %p635 = pneg %p474
        $region82: #{tpu_custom_call.1} parent=15 // pred_check_branch
          %637 = sbr.rel (%p635) target = $region84
        $region83: #{tpu_custom_call.1} parent=15 // pred_region
          %p638 = scmp.lt.s32.totalorder %s34, 1
          %s639 = scalar_select %p638, %s34, 1
          %s640 = smul.addr %s639, 3
          %s641 = smul.addr %s640, 8
          %s642 = scalar_lea.vmem %s16, %s641
        $region84: #{tpu_custom_call.1} parent=15 // pred_fallthru
          _
      $region16: #{tpu_custom_call.1} parent=5 // pred_fallthru
        _
      %p643 = scmp.le.s32.totalorder 1, %s26
      %p644 = scmp.lt.s32.totalorder %s26, 5
      %p645 = pnand %p643, %p644
      %p646 = pneg %p645
      // Predicated region
      $region85: #{tpu_custom_call.1} parent=5 // pred_check
        _
      $region86: #{tpu_custom_call.1} parent=5 // pred_check_branch
        %648 = sbr.rel (%p645) target = $region88
      $region87: #{tpu_custom_call.1} parent=5 // pred_region
        %s649 = ssub.s32 %s26, 1
        %p650 = scmp.lt.s32.totalorder %s35, 1
        %s651 = scalar_select %p650, %s35, 1
        %s652 = smul.addr %s651, 2
        %s653 = smul.addr %s652, 8
        %s654 = scalar_lea.vmem %s0, %s653
        %p655 = pneg %p64
        %p656 = pneg %p61
        %p657 = scmp.lt.s32.totalorder %s35, 1
        %s658 = scalar_select %p657, %s35, 1
        %s659 = smul.addr %s658, 2
        %s660 = smul.addr %s659, 8
        %s661 = scalar_lea.vmem %s1, %s660
        %p662 = pneg %p90
        %p663 = pneg %p87
        %p664 = scmp.lt.s32.totalorder %s35, 1
        %s665 = scalar_select %p664, %s35, 1
        %s666 = scalar_lea.vmem %s2, %s665
        %p667 = pneg %p116
        %p668 = pneg %p113
        %p669 = scmp.lt.s32.totalorder %s36, 1
        %s670 = scalar_select %p669, %s36, 1
        %s671 = smul.addr %s670, 4
        %s672 = smul.addr %s671, 4
        %s673 = scalar_lea.vmem %s3, %s672
        %p674 = pneg %p142
        %p675 = pneg %p139
        %p676 = scmp.lt.s32.totalorder %s36, 1
        %s677 = scalar_select %p676, %s36, 1
        %s678 = scalar_lea.vmem %s4, %s677
        %p679 = pneg %p168
        %p680 = pneg %p165
        %p681 = scmp.lt.s32.totalorder %s36, 1
        %s682 = scalar_select %p681, %s36, 1
        %s683 = smul.addr %s682, 4
        %s684 = smul.addr %s683, 4
        %s685 = scalar_lea.vmem %s5, %s684
        %p686 = pneg %p194
        %p687 = pneg %p191
        %p688 = scmp.lt.s32.totalorder %s36, 1
        %s689 = scalar_select %p688, %s36, 1
        %s690 = scalar_lea.vmem %s6, %s689
        %p691 = pneg %p220
        %p692 = pneg %p217
        %p693 = scmp.lt.s32.totalorder %s36, 1
        %s694 = scalar_select %p693, %s36, 1
        %s695 = scalar_lea.vmem %s7, %s694
        %p696 = pneg %p246
        %p697 = pneg %p243
        %p698 = scmp.lt.s32.totalorder %s36, 1
        %s699 = scalar_select %p698, %s36, 1
        %s700 = scalar_lea.vmem %s8, %s699
        %p701 = pneg %p272
        %p702 = pneg %p269
        %p703 = scmp.lt.s32.totalorder %s36, 1
        %s704 = scalar_select %p703, %s36, 1
        %s705 = smul.addr %s704, 4
        %s706 = smul.addr %s705, 4
        %s707 = scalar_lea.vmem %s9, %s706
        %p708 = pneg %p298
        %p709 = pneg %p295
        %p710 = scmp.lt.s32.totalorder %s36, 1
        %s711 = scalar_select %p710, %s36, 1
        %s712 = scalar_lea.vmem %s10, %s711
        %p713 = pneg %p324
        %p714 = pneg %p321
        %p715 = scmp.lt.s32.totalorder %s36, 1
        %s716 = scalar_select %p715, %s36, 1
        %s717 = smul.addr %s716, 8
        %s718 = smul.addr %s717, 4
        %s719 = scalar_lea.vmem %s11, %s718
        %p720 = pneg %p350
        %p721 = pneg %p347
        %p722 = scmp.lt.s32.totalorder %s36, 1
        %s723 = scalar_select %p722, %s36, 1
        %s724 = scalar_lea.vmem %s12, %s723
        %p725 = pneg %p376
        %p726 = pneg %p373
        %p727 = scmp.lt.s32.totalorder %s36, 1
        %s728 = scalar_select %p727, %s36, 1
        %s729 = scalar_lea.vmem %s13, %s728
        %p730 = pneg %p402
        %p731 = pneg %p399
        %p732 = scmp.lt.s32.totalorder %s36, 1
        %s733 = scalar_select %p732, %s36, 1
        %s734 = scalar_lea.vmem %s14, %s733
        %p735 = pneg %p428
        %p736 = pneg %p425
        %p737 = scmp.lt.s32.totalorder %s36, 1
        %s738 = scalar_select %p737, %s36, 1
        %s739 = smul.addr %s738, 3
        %s740 = smul.addr %s739, 4
        %s741 = scalar_lea.vmem %s15, %s740
        %p742 = pneg %p454
        %p743 = pneg %p451
        %p744 = scmp.lt.s32.totalorder %s36, 1
        %s745 = scalar_select %p744, %s36, 1
        %s746 = smul.addr %s745, 3
        %s747 = smul.addr %s746, 8
        %s748 = scalar_lea.vmem %s16, %s747
        %p749 = pneg %p480
        %p750 = pneg %p477
        %p751 = pneg %p506
        %p752 = pneg %p503
        %s753 = sand.u32 %s493, 1
        %s754 = scalar_lea.sflag [#allocation3], %s753
        %s755 = sand.u32 %s493, 1
        %s756 = smul.addr %s755, 16
        %s757 = scalar_lea.vmem [#allocation2], %s756
        %p758 = scmp.lt.s32.totalorder %s35, 1
        %s759 = scalar_select %p758, %s35, 1
        %s760 = smul.addr %s759, 2
        %s761 = smul.addr %s760, 8
        %s762 = scalar_lea.vmem %s0, %s761
        %p763 = scmp.lt.s32.totalorder %s35, 1
        %s764 = scalar_select %p763, %s35, 1
        %s765 = smul.addr %s764, 2
        %s766 = smul.addr %s765, 8
        %s767 = scalar_lea.vmem %s1, %s766
        %p768 = scmp.lt.s32.totalorder %s35, 1
        %s769 = scalar_select %p768, %s35, 1
        %s770 = scalar_lea.vmem %s2, %s769
        %p771 = scmp.lt.s32.totalorder %s36, 1
        %s772 = scalar_select %p771, %s36, 1
        %s773 = smul.addr %s772, 4
        %s774 = smul.addr %s773, 4
        %s775 = scalar_lea.vmem %s3, %s774
        %p776 = scmp.lt.s32.totalorder %s36, 1
        %s777 = scalar_select %p776, %s36, 1
        %s778 = scalar_lea.vmem %s4, %s777
        %p779 = scmp.lt.s32.totalorder %s36, 1
        %s780 = scalar_select %p779, %s36, 1
        %s781 = smul.addr %s780, 4
        %s782 = smul.addr %s781, 4
        %s783 = scalar_lea.vmem %s5, %s782
        %p784 = scmp.lt.s32.totalorder %s36, 1
        %s785 = scalar_select %p784, %s36, 1
        %s786 = scalar_lea.vmem %s6, %s785
        %p787 = scmp.lt.s32.totalorder %s36, 1
        %s788 = scalar_select %p787, %s36, 1
        %s789 = scalar_lea.vmem %s7, %s788
        %p790 = scmp.lt.s32.totalorder %s36, 1
        %s791 = scalar_select %p790, %s36, 1
        %s792 = scalar_lea.vmem %s8, %s791
        %p793 = scmp.lt.s32.totalorder %s36, 1
        %s794 = scalar_select %p793, %s36, 1
        %s795 = smul.addr %s794, 4
        %s796 = smul.addr %s795, 4
        %s797 = scalar_lea.vmem %s9, %s796
        %p798 = scmp.lt.s32.totalorder %s36, 1
        %s799 = scalar_select %p798, %s36, 1
        %s800 = scalar_lea.vmem %s10, %s799
        %p801 = scmp.lt.s32.totalorder %s36, 1
        %s802 = scalar_select %p801, %s36, 1
        %s803 = smul.addr %s802, 8
        %s804 = smul.addr %s803, 4
        %s805 = scalar_lea.vmem %s11, %s804
        %p806 = scmp.lt.s32.totalorder %s36, 1
        %s807 = scalar_select %p806, %s36, 1
        %s808 = scalar_lea.vmem %s12, %s807
        %p809 = scmp.lt.s32.totalorder %s36, 1
        %s810 = scalar_select %p809, %s36, 1
        %s811 = scalar_lea.vmem %s13, %s810
        %p812 = scmp.lt.s32.totalorder %s36, 1
        %s813 = scalar_select %p812, %s36, 1
        %s814 = scalar_lea.vmem %s14, %s813
        %p815 = scmp.lt.s32.totalorder %s36, 1
        %s816 = scalar_select %p815, %s36, 1
        %s817 = smul.addr %s816, 3
        %s818 = smul.addr %s817, 4
        %s819 = scalar_lea.vmem %s15, %s818
        %p820 = scmp.lt.s32.totalorder %s36, 1
        %s821 = scalar_select %p820, %s36, 1
        %s822 = smul.addr %s821, 3
        %s823 = smul.addr %s822, 8
        %s824 = scalar_lea.vmem %s16, %s823
        %p826 = scmp.eq.s32.totalorder %s36, 0
        // Predicated region
        $region89: #{tpu_custom_call.1} parent=87 // pred_check
          %p827 = pneg %p826
        $region90: #{tpu_custom_call.1} parent=87 // pred_check_branch
          %829 = sbr.rel (%p827) target = $region92
        $region91: #{tpu_custom_call.1} parent=87 // pred_region
          %v830 = vld [vmem:[%s762] sm:$0xff]
          %v831 = vld [vmem:[%s762 + $0x8] sm:$0xff]
          %vm832 = vcmask 261120
          %833 = vst.msk [vmem:[%s757] sm:$0xff] %vm832, %v830
          %834 = vst.msk [vmem:[%s757 + $0x8] sm:$0xff] %vm832, %v831
        $region92: #{tpu_custom_call.1} parent=87 // pred_fallthru
          _
        %v835 = vld [vmem:[%s757] sm:$0xff]
        %v836 = vld [vmem:[%s757 + $0x8] sm:$0xff]
        %v837 = vld [vmem:[%s767] sm:$0xff]
        %v838 = vld [vmem:[%s767 + $0x8] sm:$0xff]
        %v839 = vld [vmem:[%s770] sm:$0x1]
        %v840 = vlaneseq
        %v841 = vshrl.u32 %v840, 7
        %v842 = vadd.s32 %v841, 8
        %v843 = vlaneseq
        %v844 = vand.u32 %v843, 127
        %v845 = vsub.s32 %v844, %v841
        %v846 = vsub.s32 %v844, %v842
        %848 = vset.pattern.permute.xlu0 0
        %849 = vperm.xlu0 %848, %v837
        %v850 = vpop.permute.xlu0 %849
        %853 = vset.pattern.permute.xlu0 0
        %854 = vperm.xlu0 %853, %v838
        %v855 = vpop.permute.xlu0 %854
        %v858 = vperm.slane %v839, 0
        %v860 = vmul.f32 %v850, %v858
        %v861 = vmul.f32 %v855, %v858
        %vm862 = vcmp.eq.f32.partialorder %v860, 0.0
        %vm863 = vcmp.eq.f32.partialorder %v861, 0.0
        %vm864 = vcmp.eq.s32.totalorder %v845, 4294967286
        %vm865 = vcmp.eq.s32.totalorder %v846, 4294967286
        %v866 = vsel %vm864, 1, 0
        %v867 = vsel %vm865, 1, 0
        %v868 = vcvt.s32.f32 %v866
        %v869 = vcvt.s32.f32 %v867
        %vm870 = vcmp.eq.s32.totalorder %v845, 4294967287
        %vm871 = vcmp.eq.s32.totalorder %v846, 4294967287
        %v872 = vsel %vm870, 1, 0
        %v873 = vsel %vm871, 1, 0
        %v874 = vcvt.s32.f32 %v872
        %v875 = vcvt.s32.f32 %v873
        %vm876 = vcmp.eq.s32.totalorder %v845, 4294967288
        %vm877 = vcmp.eq.s32.totalorder %v846, 4294967288
        %v878 = vsel %vm876, 1, 0
        %v879 = vsel %vm877, 1, 0
        %v880 = vcvt.s32.f32 %v878
        %v881 = vcvt.s32.f32 %v879
        %vm882 = vcmp.eq.s32.totalorder %v845, 4294967289
        %vm883 = vcmp.eq.s32.totalorder %v846, 4294967289
        %v884 = vsel %vm882, 1, 0
        %v885 = vsel %vm883, 1, 0
        %v886 = vcvt.s32.f32 %v884
        %v887 = vcvt.s32.f32 %v885
        %vm888 = vcmp.eq.s32.totalorder %v845, 4294967290
        %vm889 = vcmp.eq.s32.totalorder %v846, 4294967290
        %v890 = vsel %vm888, 1, 0
        %v891 = vsel %vm889, 1, 0
        %v892 = vcvt.s32.f32 %v890
        %v893 = vcvt.s32.f32 %v891
        %vm894 = vcmp.eq.s32.totalorder %v845, 4294967291
        %vm895 = vcmp.eq.s32.totalorder %v846, 4294967291
        %v896 = vsel %vm894, 1, 0
        %v897 = vsel %vm895, 1, 0
        %v898 = vcvt.s32.f32 %v896
        %v899 = vcvt.s32.f32 %v897
        %vm900 = vcmp.eq.s32.totalorder %v845, 4294967292
        %vm901 = vcmp.eq.s32.totalorder %v846, 4294967292
        %v902 = vsel %vm900, 1, 0
        %v903 = vsel %vm901, 1, 0
        %v904 = vcvt.s32.f32 %v902
        %v905 = vcvt.s32.f32 %v903
        %vm906 = vcmp.eq.s32.totalorder %v845, 4294967293
        %vm907 = vcmp.eq.s32.totalorder %v846, 4294967293
        %v908 = vsel %vm906, 1, 0
        %v909 = vsel %vm907, 1, 0
        %v910 = vcvt.s32.f32 %v908
        %v911 = vcvt.s32.f32 %v909
        %vm912 = vcmp.eq.s32.totalorder %v845, 4294967294
        %vm913 = vcmp.eq.s32.totalorder %v846, 4294967294
        %v914 = vsel %vm912, 1, 0
        %v915 = vsel %vm913, 1, 0
        %v916 = vcvt.s32.f32 %v914
        %v917 = vcvt.s32.f32 %v915
        %vm918 = vcmp.eq.s32.totalorder %v845, 4294967295
        %vm919 = vcmp.eq.s32.totalorder %v846, 4294967295
        %v920 = vsel %vm918, 1, 0
        %v921 = vsel %vm919, 1, 0
        %v922 = vcvt.s32.f32 %v920
        %v923 = vcvt.s32.f32 %v921
        %vm924 = vcmp.eq.s32.totalorder %v845, 0
        %vm925 = vcmp.eq.s32.totalorder %v846, 0
        %v926 = vsel %vm924, 1, 0
        %v927 = vsel %vm925, 1, 0
        %v928 = vcvt.s32.f32 %v926
        %v929 = vcvt.s32.f32 %v927
        %vm930 = vcmp.eq.s32.totalorder %v845, 1
        %vm931 = vcmp.eq.s32.totalorder %v846, 1
        %v932 = vsel %vm930, 1, 0
        %v933 = vsel %vm931, 1, 0
        %v934 = vcvt.s32.f32 %v932
        %v935 = vcvt.s32.f32 %v933
        %vm936 = vcmp.eq.s32.totalorder %v845, 2
        %vm937 = vcmp.eq.s32.totalorder %v846, 2
        %v938 = vsel %vm936, 1, 0
        %v939 = vsel %vm937, 1, 0
        %v940 = vcvt.s32.f32 %v938
        %v941 = vcvt.s32.f32 %v939
        %vm942 = vcmp.eq.s32.totalorder %v845, 3
        %vm943 = vcmp.eq.s32.totalorder %v846, 3
        %v944 = vsel %vm942, 1, 0
        %v945 = vsel %vm943, 1, 0
        %v946 = vcvt.s32.f32 %v944
        %v947 = vcvt.s32.f32 %v945
        %vm948 = vcmp.eq.s32.totalorder %v845, 4
        %vm949 = vcmp.eq.s32.totalorder %v846, 4
        %v950 = vsel %vm948, 1, 0
        %v951 = vsel %vm949, 1, 0
        %v952 = vcvt.s32.f32 %v950
        %v953 = vcvt.s32.f32 %v951
        %vm954 = vcmp.eq.s32.totalorder %v845, 5
        %vm955 = vcmp.eq.s32.totalorder %v846, 5
        %v956 = vsel %vm954, 1, 0
        %v957 = vsel %vm955, 1, 0
        %v958 = vcvt.s32.f32 %v956
        %v959 = vcvt.s32.f32 %v957
        %vm960 = vcmp.eq.s32.totalorder %v845, 6
        %vm961 = vcmp.eq.s32.totalorder %v846, 6
        %v962 = vsel %vm960, 1, 0
        %v963 = vsel %vm961, 1, 0
        %v964 = vcvt.s32.f32 %v962
        %v965 = vcvt.s32.f32 %v963
        %vm966 = vcmp.eq.s32.totalorder %v845, 7
        %vm967 = vcmp.eq.s32.totalorder %v846, 7
        %v968 = vsel %vm966, 1, 0
        %v969 = vsel %vm967, 1, 0
        %v970 = vcvt.s32.f32 %v968
        %v971 = vcvt.s32.f32 %v969
        %vm972 = vcmp.eq.s32.totalorder %v845, 8
        %vm973 = vcmp.eq.s32.totalorder %v846, 8
        %v974 = vsel %vm972, 1, 0
        %v975 = vsel %vm973, 1, 0
        %v976 = vcvt.s32.f32 %v974
        %v977 = vcvt.s32.f32 %v975
        %vm978 = vcmp.eq.s32.totalorder %v845, 9
        %vm979 = vcmp.eq.s32.totalorder %v846, 9
        %v980 = vsel %vm978, 1, 0
        %v981 = vsel %vm979, 1, 0
        %v982 = vcvt.s32.f32 %v980
        %v983 = vcvt.s32.f32 %v981
        %vm984 = vcmp.eq.s32.totalorder %v845, 10
        %vm985 = vcmp.eq.s32.totalorder %v846, 10
        %v986 = vsel %vm984, 1, 0
        %v987 = vsel %vm985, 1, 0
        %v988 = vcvt.s32.f32 %v986
        %v989 = vcvt.s32.f32 %v987
        %v990 = vld [vmem:[%s819] sm:$0xf]
        %v991 = vld [vmem:[%s819 + $0x4] sm:$0xf]
        %v992 = vld [vmem:[%s819 + $0x8] sm:$0x7]
        %v993 = vld [vmem:[%s824] sm:$0xff]
        %v994 = vld [vmem:[%s824 + $0x8] sm:$0xff]
        %v995 = vld [vmem:[%s824 + $0x10] sm:$0x1f]
        %v996 = vpack.c.bf16 %v836, %v835
        %v997 = vld [vmem:[%s775] sm:$0xf]
        %v998 = vld [vmem:[%s775 + $0x4] sm:$0xf]
        %v999 = vld [vmem:[%s775 + $0x8] sm:$0xf]
        %v1000 = vld [vmem:[%s775 + $0xc] sm:$0xf]
        %v1001 = vld [vmem:[%s778] sm:$0x1]
        %v1003 = vperm.slane %v1001, 0
        %v1009 = vunpack.c.l.b16 %v997
        %v1010 = vunpack.c.l.b16 %v998
        %v1011 = vunpack.c.l.b16 %v999
        %v1012 = vunpack.c.l.b16 %v1000
        %v1013 = vpack.c.b16 %v1010, %v1009
        %v1014 = vpack.c.b16 %v1012, %v1011
        %vm1017 = vcmask 261120
        %v1019 = vsel %vm1017, %v996, 0
        %1021 = vmatpush.bf16.msra.mxu0 0
        %1022 = vmatpush.bf16.msra.mxu0 0
        %1023 = vmatpush.bf16.msra.mxu0 0
        %1024 = vmatpush.bf16.msra.mxu0 0
        %1025 = vmatpush.bf16.msra.mxu0 0
        %1026 = vmatpush.bf16.msra.mxu0 0
        %1027 = vmatpush.bf16.msra.mxu0 %v1014
        %1028 = vmatpush.bf16.msra.mxu0 %v1013
        %1029 = vmatmul.bf16.gmra.mxu0 %v1019
        %v1030 = vpop.f32.mrf.mxu0
        %v1031 = vadd.f32 %v1003, %v1030
        %v1032 = vpop.f32.mrf.mxu0
        %v1033 = vadd.f32 %v1003, %v1032
        %1034 = vdwg.mxu0
        %v1035 = vpack.c.bf16 %v1031, %v1031
        %v1036 = vpack.c.bf16 %v1033, %v1033
        %v1039 = vunpack.c.l.b16 %v1035
        %v1040 = vunpack.c.l.b16 %v1036
        %v1041 = vpack.c.b16 %v1040, %v1039
        %v1045 = vunpack.c.l.b16 %v990
        %v1046 = vunpack.c.l.b16 %v991
        %v1047 = vunpack.c.l.b16 %v992
        %v1048 = vpack.c.b16 %v1046, %v1045
        %v1049 = vpack.c.b16 %v1047, %v1047
        %vm1050 = vcmask 130048
        %v1052 = vsel %vm1050, %v1041, 0
        %v1055 = vsel %vm1050, %v1048, 0
        %v1058 = vsel %vm1050, %v1049, 0
        %1060 = vmatpush.bf16.xpose.msra.mxu0 0
        %1061 = vmatpush.bf16.xpose.msra.mxu0 0
        %1062 = vmatpush.bf16.xpose.msra.mxu0 0
        %1063 = vmatpush.bf16.xpose.msra.mxu0 0
        %1064 = vmatpush.bf16.xpose.msra.mxu0 0
        %1065 = vmatpush.bf16.xpose.msra.mxu0 0
        %1066 = vmatpush.bf16.xpose.msra.mxu0 %v1058
        %1067 = vmatpush.bf16.xpose.msra.mxu0 %v1055
        %1068 = vmatmul.bf16.gmra.mxu0 %v1052
        %v1069 = vpop.f32.mrf.mxu0
        %v1070 = vadd.f32 0.0, %v1069
        %v1071 = vpop.f32.mrf.mxu0
        %v1072 = vadd.f32 0.0, %v1071
        %1073 = vdwg.mxu0
        %1075 = vset.pattern.permute.xlu0 0
        %1076 = vperm.xlu0 %1075, %v1070
        %v1077 = vpop.permute.xlu0 %1076
        %1080 = vset.pattern.permute.xlu0 0
        %1081 = vperm.xlu0 %1080, %v1072
        %v1082 = vpop.permute.xlu0 %1081
        %v1084 = vmul.f32 %v868, %v1077
        %v1085 = vmul.f32 %v869, %v1082
        %1086 = vrot.lane.b32.xlu0 %v1041, 96
        %v1087 = vpop.permute.xlu0 %1086
        %v1089 = vsel %vm1050, %v1087, 0
        %1091 = vmatpush.bf16.xpose.msra.mxu0 0
        %1092 = vmatpush.bf16.xpose.msra.mxu0 0
        %1093 = vmatpush.bf16.xpose.msra.mxu0 0
        %1094 = vmatpush.bf16.xpose.msra.mxu0 0
        %1095 = vmatpush.bf16.xpose.msra.mxu0 0
        %1096 = vmatpush.bf16.xpose.msra.mxu0 0
        %1097 = vmatpush.bf16.xpose.msra.mxu0 0
        %1098 = vmatpush.bf16.xpose.msra.mxu0 %v1089
        %1099 = vmatmul.bf16.gmra.mxu0 %v1052
        %v1100 = vpop.f32.mrf.mxu0
        %v1101 = vadd.f32 %v1084, %v1100
        %v1102 = vpop.f32.mrf.mxu0
        %v1103 = vadd.f32 %v1085, %v1102
        %1104 = vdwg.mxu0
        %1105 = vset.pattern.permute.xlu0 1
        %1106 = vperm.xlu0 %1105, %v1070
        %v1107 = vpop.permute.xlu0 %1106
        %1109 = vset.pattern.permute.xlu0 1
        %1110 = vperm.xlu0 %1109, %v1072
        %v1111 = vpop.permute.xlu0 %1110
        %v1113 = vmul.f32 %v874, %v1107
        %v1114 = vmul.f32 %v875, %v1111
        %v1115 = vadd.f32 %v1101, %v1113
        %v1116 = vadd.f32 %v1103, %v1114
        %1117 = vset.pattern.permute.xlu0 2
        %1118 = vperm.xlu0 %1117, %v1070
        %v1119 = vpop.permute.xlu0 %1118
        %1121 = vset.pattern.permute.xlu0 2
        %1122 = vperm.xlu0 %1121, %v1072
        %v1123 = vpop.permute.xlu0 %1122
        %v1125 = vmul.f32 %v880, %v1119
        %v1126 = vmul.f32 %v881, %v1123
        %v1127 = vadd.f32 %v1115, %v1125
        %v1128 = vadd.f32 %v1116, %v1126
        %1129 = vset.pattern.permute.xlu0 3
        %1130 = vperm.xlu0 %1129, %v1070
        %v1131 = vpop.permute.xlu0 %1130
        %1133 = vset.pattern.permute.xlu0 3
        %1134 = vperm.xlu0 %1133, %v1072
        %v1135 = vpop.permute.xlu0 %1134
        %v1137 = vmul.f32 %v886, %v1131
        %v1138 = vmul.f32 %v887, %v1135
        %v1139 = vadd.f32 %v1127, %v1137
        %v1140 = vadd.f32 %v1128, %v1138
        %1141 = vset.pattern.permute.xlu0 4
        %1142 = vperm.xlu0 %1141, %v1070
        %v1143 = vpop.permute.xlu0 %1142
        %1145 = vset.pattern.permute.xlu0 4
        %1146 = vperm.xlu0 %1145, %v1072
        %v1147 = vpop.permute.xlu0 %1146
        %v1149 = vmul.f32 %v892, %v1143
        %v1150 = vmul.f32 %v893, %v1147
        %v1151 = vadd.f32 %v1139, %v1149
        %v1152 = vadd.f32 %v1140, %v1150
        %1153 = vset.pattern.permute.xlu0 5
        %1154 = vperm.xlu0 %1153, %v1070
        %v1155 = vpop.permute.xlu0 %1154
        %1157 = vset.pattern.permute.xlu0 5
        %1158 = vperm.xlu0 %1157, %v1072
        %v1159 = vpop.permute.xlu0 %1158
        %v1161 = vmul.f32 %v898, %v1155
        %v1162 = vmul.f32 %v899, %v1159
        %v1163 = vadd.f32 %v1151, %v1161
        %v1164 = vadd.f32 %v1152, %v1162
        %1165 = vset.pattern.permute.xlu0 6
        %1166 = vperm.xlu0 %1165, %v1070
        %v1167 = vpop.permute.xlu0 %1166
        %1169 = vset.pattern.permute.xlu0 6
        %1170 = vperm.xlu0 %1169, %v1072
        %v1171 = vpop.permute.xlu0 %1170
        %v1173 = vmul.f32 %v904, %v1167
        %v1174 = vmul.f32 %v905, %v1171
        %v1175 = vadd.f32 %v1163, %v1173
        %v1176 = vadd.f32 %v1164, %v1174
        %1177 = vset.pattern.permute.xlu0 7
        %1178 = vperm.xlu0 %1177, %v1070
        %v1179 = vpop.permute.xlu0 %1178
        %1181 = vset.pattern.permute.xlu0 7
        %1182 = vperm.xlu0 %1181, %v1072
        %v1183 = vpop.permute.xlu0 %1182
        %v1185 = vmul.f32 %v910, %v1179
        %v1186 = vmul.f32 %v911, %v1183
        %v1187 = vadd.f32 %v1175, %v1185
        %v1188 = vadd.f32 %v1176, %v1186
        %1189 = vset.pattern.permute.xlu0 8
        %1190 = vperm.xlu0 %1189, %v1070
        %v1191 = vpop.permute.xlu0 %1190
        %1193 = vset.pattern.permute.xlu0 8
        %1194 = vperm.xlu0 %1193, %v1072
        %v1195 = vpop.permute.xlu0 %1194
        %v1197 = vmul.f32 %v916, %v1191
        %v1198 = vmul.f32 %v917, %v1195
        %v1199 = vadd.f32 %v1187, %v1197
        %v1200 = vadd.f32 %v1188, %v1198
        %1201 = vset.pattern.permute.xlu0 9
        %1202 = vperm.xlu0 %1201, %v1070
        %v1203 = vpop.permute.xlu0 %1202
        %1205 = vset.pattern.permute.xlu0 9
        %1206 = vperm.xlu0 %1205, %v1072
        %v1207 = vpop.permute.xlu0 %1206
        %v1209 = vmul.f32 %v922, %v1203
        %v1210 = vmul.f32 %v923, %v1207
        %v1211 = vadd.f32 %v1199, %v1209
        %v1212 = vadd.f32 %v1200, %v1210
        %1213 = vset.pattern.permute.xlu0 10
        %1214 = vperm.xlu0 %1213, %v1070
        %v1215 = vpop.permute.xlu0 %1214
        %1217 = vset.pattern.permute.xlu0 10
        %1218 = vperm.xlu0 %1217, %v1072
        %v1219 = vpop.permute.xlu0 %1218
        %v1221 = vmul.f32 %v928, %v1215
        %v1222 = vmul.f32 %v929, %v1219
        %v1223 = vadd.f32 %v1211, %v1221
        %v1224 = vadd.f32 %v1212, %v1222
        %1225 = vset.pattern.permute.xlu0 11
        %1226 = vperm.xlu0 %1225, %v1070
        %v1227 = vpop.permute.xlu0 %1226
        %1229 = vset.pattern.permute.xlu0 11
        %1230 = vperm.xlu0 %1229, %v1072
        %v1231 = vpop.permute.xlu0 %1230
        %v1233 = vmul.f32 %v934, %v1227
        %v1234 = vmul.f32 %v935, %v1231
        %v1235 = vadd.f32 %v1223, %v1233
        %v1236 = vadd.f32 %v1224, %v1234
        %1237 = vset.pattern.permute.xlu0 12
        %1238 = vperm.xlu0 %1237, %v1070
        %v1239 = vpop.permute.xlu0 %1238
        %1241 = vset.pattern.permute.xlu0 12
        %1242 = vperm.xlu0 %1241, %v1072
        %v1243 = vpop.permute.xlu0 %1242
        %v1245 = vmul.f32 %v940, %v1239
        %v1246 = vmul.f32 %v941, %v1243
        %v1247 = vadd.f32 %v1235, %v1245
        %v1248 = vadd.f32 %v1236, %v1246
        %1249 = vset.pattern.permute.xlu0 13
        %1250 = vperm.xlu0 %1249, %v1070
        %v1251 = vpop.permute.xlu0 %1250
        %1253 = vset.pattern.permute.xlu0 13
        %1254 = vperm.xlu0 %1253, %v1072
        %v1255 = vpop.permute.xlu0 %1254
        %v1257 = vmul.f32 %v946, %v1251
        %v1258 = vmul.f32 %v947, %v1255
        %v1259 = vadd.f32 %v1247, %v1257
        %v1260 = vadd.f32 %v1248, %v1258
        %1261 = vset.pattern.permute.xlu0 14
        %1262 = vperm.xlu0 %1261, %v1070
        %v1263 = vpop.permute.xlu0 %1262
        %1265 = vset.pattern.permute.xlu0 14
        %1266 = vperm.xlu0 %1265, %v1072
        %v1267 = vpop.permute.xlu0 %1266
        %v1269 = vmul.f32 %v952, %v1263
        %v1270 = vmul.f32 %v953, %v1267
        %v1271 = vadd.f32 %v1259, %v1269
        %v1272 = vadd.f32 %v1260, %v1270
        %1273 = vset.pattern.permute.xlu0 15
        %1274 = vperm.xlu0 %1273, %v1070
        %v1275 = vpop.permute.xlu0 %1274
        %1277 = vset.pattern.permute.xlu0 15
        %1278 = vperm.xlu0 %1277, %v1072
        %v1279 = vpop.permute.xlu0 %1278
        %v1281 = vmul.f32 %v958, %v1275
        %v1282 = vmul.f32 %v959, %v1279
        %v1283 = vadd.f32 %v1271, %v1281
        %v1284 = vadd.f32 %v1272, %v1282
        %1285 = vset.pattern.permute.xlu0 16
        %1286 = vperm.xlu0 %1285, %v1070
        %v1287 = vpop.permute.xlu0 %1286
        %1289 = vset.pattern.permute.xlu0 16
        %1290 = vperm.xlu0 %1289, %v1072
        %v1291 = vpop.permute.xlu0 %1290
        %v1293 = vmul.f32 %v964, %v1287
        %v1294 = vmul.f32 %v965, %v1291
        %v1295 = vadd.f32 %v1283, %v1293
        %v1296 = vadd.f32 %v1284, %v1294
        %1297 = vset.pattern.permute.xlu0 17
        %1298 = vperm.xlu0 %1297, %v1070
        %v1299 = vpop.permute.xlu0 %1298
        %1301 = vset.pattern.permute.xlu0 17
        %1302 = vperm.xlu0 %1301, %v1072
        %v1303 = vpop.permute.xlu0 %1302
        %v1305 = vmul.f32 %v970, %v1299
        %v1306 = vmul.f32 %v971, %v1303
        %v1307 = vadd.f32 %v1295, %v1305
        %v1308 = vadd.f32 %v1296, %v1306
        %1309 = vset.pattern.permute.xlu0 18
        %1310 = vperm.xlu0 %1309, %v1070
        %v1311 = vpop.permute.xlu0 %1310
        %1313 = vset.pattern.permute.xlu0 18
        %1314 = vperm.xlu0 %1313, %v1072
        %v1315 = vpop.permute.xlu0 %1314
        %v1317 = vmul.f32 %v976, %v1311
        %v1318 = vmul.f32 %v977, %v1315
        %v1319 = vadd.f32 %v1307, %v1317
        %v1320 = vadd.f32 %v1308, %v1318
        %1321 = vset.pattern.permute.xlu0 19
        %1322 = vperm.xlu0 %1321, %v1070
        %v1323 = vpop.permute.xlu0 %1322
        %1325 = vset.pattern.permute.xlu0 19
        %1326 = vperm.xlu0 %1325, %v1072
        %v1327 = vpop.permute.xlu0 %1326
        %v1329 = vmul.f32 %v982, %v1323
        %v1330 = vmul.f32 %v983, %v1327
        %v1331 = vadd.f32 %v1319, %v1329
        %v1332 = vadd.f32 %v1320, %v1330
        %1333 = vset.pattern.permute.xlu0 20
        %1334 = vperm.xlu0 %1333, %v1070
        %v1335 = vpop.permute.xlu0 %1334
        %1337 = vset.pattern.permute.xlu0 20
        %1338 = vperm.xlu0 %1337, %v1072
        %v1339 = vpop.permute.xlu0 %1338
        %v1341 = vmul.f32 %v988, %v1335
        %v1342 = vmul.f32 %v989, %v1339
        %v1343 = vadd.f32 %v1331, %v1341
        %v1344 = vadd.f32 %v1332, %v1342
        %v1345 = vsel %vm862, -10000.0, %v1343
        %v1346 = vsel %vm863, -10000.0, %v1344
        %v1347 = vsel %vm1050, %v1345, -inf
        %1348 = vmax.xlane.f32.xlu0 %v1347
        %v1349 = vpop.xlane.xlu0 %1348
        %v1350 = vsel %vm1050, %v1346, -inf
        %1351 = vmax.xlane.f32.xlu0 %v1350
        %v1352 = vpop.xlane.xlu0 %1351
        %v1353 = vsub.f32 %v1345, %v1349
        %v1354 = vsub.f32 %v1346, %v1352
        %v1355 = vmul.f32 %v1353, 1.442695
        %v1356 = vpow.pop %v1355
        %v1357 = vmul.f32 %v1354, 1.442695
        %v1358 = vpow.pop %v1357
        %v1359 = vsel %vm1050, %v1356, 0.0
        %1360 = vadd.xlane.f32.xlu0 %v1359
        %v1361 = vpop.xlane.xlu0 %1360
        %v1362 = vsel %vm1050, %v1358, 0.0
        %1363 = vadd.xlane.f32.xlu0 %v1362
        %v1364 = vpop.xlane.xlu0 %1363
        %v1365 = vrcp.pop %v1361
        %v1366 = vrcp.pop %v1364
        %v1367 = vmul.f32 %v1356, %v1365
        %v1368 = vmul.f32 %v1358, %v1366
        %v1369 = vpack.c.bf16 %v1368, %v1367
        %v1370 = vmul.f32 %v1367, %v868
        %v1371 = vmul.f32 %v1368, %v869
        %v1372 = vsel %vm1050, %v1370, 0.0
        %1373 = vadd.xlane.f32.xlu0 %v1372
        %v1374 = vpop.xlane.xlu0 %1373
        %v1375 = vsel %vm1050, %v1371, 0.0
        %1376 = vadd.xlane.f32.xlu0 %v1375
        %v1377 = vpop.xlane.xlu0 %1376
        %v1378 = vmul.f32 %v1367, %v874
        %v1379 = vmul.f32 %v1368, %v875
        %v1380 = vsel %vm1050, %v1378, 0.0
        %1381 = vadd.xlane.f32.xlu0 %v1380
        %v1382 = vpop.xlane.xlu0 %1381
        %v1383 = vsel %vm1050, %v1379, 0.0
        %1384 = vadd.xlane.f32.xlu0 %v1383
        %v1385 = vpop.xlane.xlu0 %1384
        %v1386 = vmul.f32 %v1367, %v880
        %v1387 = vmul.f32 %v1368, %v881
        %v1388 = vsel %vm1050, %v1386, 0.0
        %1389 = vadd.xlane.f32.xlu0 %v1388
        %v1390 = vpop.xlane.xlu0 %1389
        %v1391 = vsel %vm1050, %v1387, 0.0
        %1392 = vadd.xlane.f32.xlu0 %v1391
        %v1393 = vpop.xlane.xlu0 %1392
        %v1394 = vmul.f32 %v1367, %v886
        %v1395 = vmul.f32 %v1368, %v887
        %v1396 = vsel %vm1050, %v1394, 0.0
        %1397 = vadd.xlane.f32.xlu0 %v1396
        %v1398 = vpop.xlane.xlu0 %1397
        %v1399 = vsel %vm1050, %v1395, 0.0
        %1400 = vadd.xlane.f32.xlu0 %v1399
        %v1401 = vpop.xlane.xlu0 %1400
        %v1402 = vmul.f32 %v1367, %v892
        %v1403 = vmul.f32 %v1368, %v893
        %v1404 = vsel %vm1050, %v1402, 0.0
        %1405 = vadd.xlane.f32.xlu0 %v1404
        %v1406 = vpop.xlane.xlu0 %1405
        %v1407 = vsel %vm1050, %v1403, 0.0
        %1408 = vadd.xlane.f32.xlu0 %v1407
        %v1409 = vpop.xlane.xlu0 %1408
        %v1410 = vmul.f32 %v1367, %v898
        %v1411 = vmul.f32 %v1368, %v899
        %v1412 = vsel %vm1050, %v1410, 0.0
        %1413 = vadd.xlane.f32.xlu0 %v1412
        %v1414 = vpop.xlane.xlu0 %1413
        %v1415 = vsel %vm1050, %v1411, 0.0
        %1416 = vadd.xlane.f32.xlu0 %v1415
        %v1417 = vpop.xlane.xlu0 %1416
        %v1418 = vmul.f32 %v1367, %v904
        %v1419 = vmul.f32 %v1368, %v905
        %v1420 = vsel %vm1050, %v1418, 0.0
        %1421 = vadd.xlane.f32.xlu0 %v1420
        %v1422 = vpop.xlane.xlu0 %1421
        %v1423 = vsel %vm1050, %v1419, 0.0
        %1424 = vadd.xlane.f32.xlu0 %v1423
        %v1425 = vpop.xlane.xlu0 %1424
        %v1426 = vmul.f32 %v1367, %v910
        %v1427 = vmul.f32 %v1368, %v911
        %v1428 = vsel %vm1050, %v1426, 0.0
        %1429 = vadd.xlane.f32.xlu0 %v1428
        %v1430 = vpop.xlane.xlu0 %1429
        %v1431 = vsel %vm1050, %v1427, 0.0
        %1432 = vadd.xlane.f32.xlu0 %v1431
        %v1433 = vpop.xlane.xlu0 %1432
        %v1434 = vmul.f32 %v1367, %v916
        %v1435 = vmul.f32 %v1368, %v917
        %v1436 = vsel %vm1050, %v1434, 0.0
        %1437 = vadd.xlane.f32.xlu0 %v1436
        %v1438 = vpop.xlane.xlu0 %1437
        %v1439 = vsel %vm1050, %v1435, 0.0
        %1440 = vadd.xlane.f32.xlu0 %v1439
        %v1441 = vpop.xlane.xlu0 %1440
        %v1442 = vmul.f32 %v1367, %v922
        %v1443 = vmul.f32 %v1368, %v923
        %v1444 = vsel %vm1050, %v1442, 0.0
        %1445 = vadd.xlane.f32.xlu0 %v1444
        %v1446 = vpop.xlane.xlu0 %1445
        %v1447 = vsel %vm1050, %v1443, 0.0
        %1448 = vadd.xlane.f32.xlu0 %v1447
        %v1449 = vpop.xlane.xlu0 %1448
        %v1450 = vmul.f32 %v1367, %v928
        %v1451 = vmul.f32 %v1368, %v929
        %v1452 = vsel %vm1050, %v1450, 0.0
        %1453 = vadd.xlane.f32.xlu0 %v1452
        %v1454 = vpop.xlane.xlu0 %1453
        %v1455 = vsel %vm1050, %v1451, 0.0
        %1456 = vadd.xlane.f32.xlu0 %v1455
        %v1457 = vpop.xlane.xlu0 %1456
        %v1458 = vmul.f32 %v1367, %v934
        %v1459 = vmul.f32 %v1368, %v935
        %v1460 = vsel %vm1050, %v1458, 0.0
        %1461 = vadd.xlane.f32.xlu0 %v1460
        %v1462 = vpop.xlane.xlu0 %1461
        %v1463 = vsel %vm1050, %v1459, 0.0
        %1464 = vadd.xlane.f32.xlu0 %v1463
        %v1465 = vpop.xlane.xlu0 %1464
        %v1466 = vmul.f32 %v1367, %v940
        %v1467 = vmul.f32 %v1368, %v941
        %v1468 = vsel %vm1050, %v1466, 0.0
        %1469 = vadd.xlane.f32.xlu0 %v1468
        %v1470 = vpop.xlane.xlu0 %1469
        %v1471 = vsel %vm1050, %v1467, 0.0
        %1472 = vadd.xlane.f32.xlu0 %v1471
        %v1473 = vpop.xlane.xlu0 %1472
        %v1474 = vmul.f32 %v1367, %v946
        %v1475 = vmul.f32 %v1368, %v947
        %v1476 = vsel %vm1050, %v1474, 0.0
        %1477 = vadd.xlane.f32.xlu0 %v1476
        %v1478 = vpop.xlane.xlu0 %1477
        %v1479 = vsel %vm1050, %v1475, 0.0
        %1480 = vadd.xlane.f32.xlu0 %v1479
        %v1481 = vpop.xlane.xlu0 %1480
        %v1482 = vmul.f32 %v1367, %v952
        %v1483 = vmul.f32 %v1368, %v953
        %v1484 = vsel %vm1050, %v1482, 0.0
        %1485 = vadd.xlane.f32.xlu0 %v1484
        %v1486 = vpop.xlane.xlu0 %1485
        %v1487 = vsel %vm1050, %v1483, 0.0
        %1488 = vadd.xlane.f32.xlu0 %v1487
        %v1489 = vpop.xlane.xlu0 %1488
        %v1490 = vmul.f32 %v1367, %v958
        %v1491 = vmul.f32 %v1368, %v959
        %v1492 = vsel %vm1050, %v1490, 0.0
        %1493 = vadd.xlane.f32.xlu0 %v1492
        %v1494 = vpop.xlane.xlu0 %1493
        %v1495 = vsel %vm1050, %v1491, 0.0
        %1496 = vadd.xlane.f32.xlu0 %v1495
        %v1497 = vpop.xlane.xlu0 %1496
        %v1498 = vmul.f32 %v1367, %v964
        %v1499 = vmul.f32 %v1368, %v965
        %v1500 = vsel %vm1050, %v1498, 0.0
        %1501 = vadd.xlane.f32.xlu0 %v1500
        %v1502 = vpop.xlane.xlu0 %1501
        %v1503 = vsel %vm1050, %v1499, 0.0
        %1504 = vadd.xlane.f32.xlu0 %v1503
        %v1505 = vpop.xlane.xlu0 %1504
        %v1506 = vmul.f32 %v1367, %v970
        %v1507 = vmul.f32 %v1368, %v971
        %v1508 = vsel %vm1050, %v1506, 0.0
        %1509 = vadd.xlane.f32.xlu0 %v1508
        %v1510 = vpop.xlane.xlu0 %1509
        %v1511 = vsel %vm1050, %v1507, 0.0
        %1512 = vadd.xlane.f32.xlu0 %v1511
        %v1513 = vpop.xlane.xlu0 %1512
        %v1514 = vmul.f32 %v1367, %v976
        %v1515 = vmul.f32 %v1368, %v977
        %v1516 = vsel %vm1050, %v1514, 0.0
        %1517 = vadd.xlane.f32.xlu0 %v1516
        %v1518 = vpop.xlane.xlu0 %1517
        %v1519 = vsel %vm1050, %v1515, 0.0
        %1520 = vadd.xlane.f32.xlu0 %v1519
        %v1521 = vpop.xlane.xlu0 %1520
        %v1522 = vmul.f32 %v1367, %v982
        %v1523 = vmul.f32 %v1368, %v983
        %v1524 = vsel %vm1050, %v1522, 0.0
        %1525 = vadd.xlane.f32.xlu0 %v1524
        %v1526 = vpop.xlane.xlu0 %1525
        %v1527 = vsel %vm1050, %v1523, 0.0
        %1528 = vadd.xlane.f32.xlu0 %v1527
        %v1529 = vpop.xlane.xlu0 %1528
        %v1530 = vmul.f32 %v1367, %v988
        %v1531 = vmul.f32 %v1368, %v989
        %v1532 = vsel %vm1050, %v1530, 0.0
        %1533 = vadd.xlane.f32.xlu0 %v1532
        %v1534 = vpop.xlane.xlu0 %1533
        %v1535 = vsel %vm1050, %v1531, 0.0
        %1536 = vadd.xlane.f32.xlu0 %v1535
        %v1537 = vpop.xlane.xlu0 %1536
        %vm1538 = vcmask 7168
        %v1539 = vsel %vm1538, %v1374, %v1382
        %v1540 = vsel %vm1538, %v1377, %v1385
        %vm1541 = vcmask 15360
        %v1542 = vsel %vm1541, %v1539, %v1390
        %v1543 = vsel %vm1541, %v1540, %v1393
        %vm1544 = vcmask 23552
        %v1545 = vsel %vm1544, %v1542, %v1398
        %v1546 = vsel %vm1544, %v1543, %v1401
        %vm1547 = vcmask 31744
        %v1548 = vsel %vm1547, %v1545, %v1406
        %v1549 = vsel %vm1547, %v1546, %v1409
        %vm1550 = vcmask 39936
        %v1551 = vsel %vm1550, %v1548, %v1414
        %v1552 = vsel %vm1550, %v1549, %v1417
        %vm1553 = vcmask 48128
        %v1554 = vsel %vm1553, %v1551, %v1422
        %v1555 = vsel %vm1553, %v1552, %v1425
        %vm1556 = vcmask 56320
        %v1557 = vsel %vm1556, %v1554, %v1430
        %v1558 = vsel %vm1556, %v1555, %v1433
        %vm1559 = vcmask 64512
        %v1560 = vsel %vm1559, %v1557, %v1438
        %v1561 = vsel %vm1559, %v1558, %v1441
        %vm1562 = vcmask 72704
        %v1563 = vsel %vm1562, %v1560, %v1446
        %v1564 = vsel %vm1562, %v1561, %v1449
        %vm1565 = vcmask 80896
        %v1566 = vsel %vm1565, %v1563, %v1454
        %v1567 = vsel %vm1565, %v1564, %v1457
        %vm1568 = vcmask 89088
        %v1569 = vsel %vm1568, %v1566, %v1462
        %v1570 = vsel %vm1568, %v1567, %v1465
        %vm1571 = vcmask 97280
        %v1572 = vsel %vm1571, %v1569, %v1470
        %v1573 = vsel %vm1571, %v1570, %v1473
        %vm1574 = vcmask 105472
        %v1575 = vsel %vm1574, %v1572, %v1478
        %v1576 = vsel %vm1574, %v1573, %v1481
        %vm1577 = vcmask 113664
        %v1578 = vsel %vm1577, %v1575, %v1486
        %v1579 = vsel %vm1577, %v1576, %v1489
        %vm1580 = vcmask 121856
        %v1581 = vsel %vm1580, %v1578, %v1494
        %v1582 = vsel %vm1580, %v1579, %v1497
        %v1583 = vsel %vm1538, %v1502, %v1510
        %v1584 = vsel %vm1538, %v1505, %v1513
        %v1585 = vsel %vm1541, %v1583, %v1518
        %v1586 = vsel %vm1541, %v1584, %v1521
        %v1587 = vsel %vm1544, %v1585, %v1526
        %v1588 = vsel %vm1544, %v1586, %v1529
        %v1589 = vsel %vm1547, %v1587, %v1534
        %v1590 = vsel %vm1547, %v1588, %v1537
        %1593 = vrot.lane.b32.xlu0 %v1589, 16
        %v1594 = vpop.permute.xlu0 %1593
        %1595 = vrot.lane.b32.xlu0 %v1590, 16
        %v1596 = vpop.permute.xlu0 %1595
        %v1599 = vsel %vm1050, %v1581, %v1594
        %v1600 = vsel %vm1050, %v1582, %v1596
        %vm1601 = vcmask 171008
        %v1603 = vsel %vm1601, %v1599, 0
        %v1606 = vsel %vm1601, %v1600, 0
        %vm1608 = vcmask 1044480
        %v1610 = vsel %vm1608, %v995, 0
        %1612 = vmatpush.msra.mxu0 0.0
        %1613 = vmatpush.msra.mxu0 0.0
        %1614 = vmatpush.msra.mxu0 0.0
        %1615 = vmatpush.msra.mxu0 0.0
        %1616 = vmatpush.msra.mxu0 0.0
        %1617 = vmatpush.msra.mxu0 0.0
        %1618 = vmatpush.msra.mxu0 0.0
        %1619 = vmatpush.msra.mxu0 0.0
        %1620 = vmatpush.msra.mxu0 0.0
        %1621 = vmatpush.msra.mxu0 0.0
        %1622 = vmatpush.msra.mxu0 0.0
        %1623 = vmatpush.msra.mxu0 0.0
        %1624 = vmatpush.msra.mxu0 0.0
        %1625 = vmatpush.msra.mxu0 %v1610
        %1626 = vmatpush.msra.mxu0 %v994
        %1627 = vmatpush.msra.mxu0 %v993
        %1628 = vmatmul.f32.gmra.mxu0 %v1603
        %v1629 = vpop.f32.mrf.mxu0
        %v1630 = vadd.f32 0.0, %v1629
        %1631 = vmatmul.f32.gmra.mxu0 %v1606
        %v1632 = vpop.f32.mrf.mxu0
        %v1633 = vadd.f32 0.0, %v1632
        %1634 = vdwg.mxu0
        %1635 = vrot.lane.b32.xlu0 %v1041, 64
        %v1636 = vpop.permute.xlu0 %1635
        %v1639 = vsel %vm1050, %v1369, 0
        %1641 = vmatpush.bf16.msra.mxu0 0
        %1642 = vmatpush.bf16.msra.mxu0 0
        %1643 = vmatpush.bf16.msra.mxu0 0
        %1644 = vmatpush.bf16.msra.mxu0 0
        %1645 = vmatpush.bf16.msra.mxu0 0
        %1646 = vmatpush.bf16.msra.mxu0 0
        %1647 = vmatpush.bf16.msra.mxu0 0
        %1648 = vmatpush.bf16.msra.mxu0 %v1636
        %1649 = vmatmul.bf16.gmra.mxu0 %v1639
        %v1650 = vpop.f32.mrf.mxu0
        %v1651 = vadd.f32 %v1630, %v1650
        %v1652 = vpop.f32.mrf.mxu0
        %v1653 = vadd.f32 %v1633, %v1652
        %1654 = vdwg.mxu0
        %1655 = vrot.lane.b32.xlu0 %v1041, 112
        %v1656 = vpop.permute.xlu0 %1655
        %v1658 = vsel %vm1050, %v1656, 0
        %1660 = vmatpush.bf16.xpose.msra.mxu0 0
        %1661 = vmatpush.bf16.xpose.msra.mxu0 0
        %1662 = vmatpush.bf16.xpose.msra.mxu0 0
        %1663 = vmatpush.bf16.xpose.msra.mxu0 0
        %1664 = vmatpush.bf16.xpose.msra.mxu0 0
        %1665 = vmatpush.bf16.xpose.msra.mxu0 0
        %1666 = vmatpush.bf16.xpose.msra.mxu0 %v1058
        %1667 = vmatpush.bf16.xpose.msra.mxu0 %v1055
        %1668 = vmatmul.bf16.gmra.mxu0 %v1658
        %v1669 = vpop.f32.mrf.mxu0
        %v1670 = vadd.f32 0.0, %v1669
        %v1671 = vpop.f32.mrf.mxu0
        %v1672 = vadd.f32 0.0, %v1671
        %1673 = vdwg.mxu0
        %1675 = vset.pattern.permute.xlu0 0
        %1676 = vperm.xlu0 %1675, %v1670
        %v1677 = vpop.permute.xlu0 %1676
        %1680 = vset.pattern.permute.xlu0 0
        %1681 = vperm.xlu0 %1680, %v1672
        %v1682 = vpop.permute.xlu0 %1681
        %v1684 = vmul.f32 %v868, %v1677
        %v1685 = vmul.f32 %v869, %v1682
        %1686 = vrot.lane.b32.xlu0 %v1041, 80
        %v1687 = vpop.permute.xlu0 %1686
        %v1689 = vsel %vm1050, %v1687, 0
        %1691 = vmatpush.bf16.xpose.msra.mxu0 0
        %1692 = vmatpush.bf16.xpose.msra.mxu0 0
        %1693 = vmatpush.bf16.xpose.msra.mxu0 0
        %1694 = vmatpush.bf16.xpose.msra.mxu0 0
        %1695 = vmatpush.bf16.xpose.msra.mxu0 0
        %1696 = vmatpush.bf16.xpose.msra.mxu0 0
        %1697 = vmatpush.bf16.xpose.msra.mxu0 0
        %1698 = vmatpush.bf16.xpose.msra.mxu0 %v1689
        %1699 = vmatmul.bf16.gmra.mxu0 %v1658
        %v1700 = vpop.f32.mrf.mxu0
        %v1701 = vadd.f32 %v1684, %v1700
        %v1702 = vpop.f32.mrf.mxu0
        %v1703 = vadd.f32 %v1685, %v1702
        %1704 = vdwg.mxu0
        %1705 = vset.pattern.permute.xlu0 1
        %1706 = vperm.xlu0 %1705, %v1670
        %v1707 = vpop.permute.xlu0 %1706
        %1709 = vset.pattern.permute.xlu0 1
        %1710 = vperm.xlu0 %1709, %v1672
        %v1711 = vpop.permute.xlu0 %1710
        %v1713 = vmul.f32 %v874, %v1707
        %v1714 = vmul.f32 %v875, %v1711
        %v1715 = vadd.f32 %v1701, %v1713
        %v1716 = vadd.f32 %v1703, %v1714
        %1717 = vset.pattern.permute.xlu0 2
        %1718 = vperm.xlu0 %1717, %v1670
        %v1719 = vpop.permute.xlu0 %1718
        %1721 = vset.pattern.permute.xlu0 2
        %1722 = vperm.xlu0 %1721, %v1672
        %v1723 = vpop.permute.xlu0 %1722
        %v1725 = vmul.f32 %v880, %v1719
        %v1726 = vmul.f32 %v881, %v1723
        %v1727 = vadd.f32 %v1715, %v1725
        %v1728 = vadd.f32 %v1716, %v1726
        %1729 = vset.pattern.permute.xlu0 3
        %1730 = vperm.xlu0 %1729, %v1670
        %v1731 = vpop.permute.xlu0 %1730
        %1733 = vset.pattern.permute.xlu0 3
        %1734 = vperm.xlu0 %1733, %v1672
        %v1735 = vpop.permute.xlu0 %1734
        %v1737 = vmul.f32 %v886, %v1731
        %v1738 = vmul.f32 %v887, %v1735
        %v1739 = vadd.f32 %v1727, %v1737
        %v1740 = vadd.f32 %v1728, %v1738
        %1741 = vset.pattern.permute.xlu0 4
        %1742 = vperm.xlu0 %1741, %v1670
        %v1743 = vpop.permute.xlu0 %1742
        %1745 = vset.pattern.permute.xlu0 4
        %1746 = vperm.xlu0 %1745, %v1672
        %v1747 = vpop.permute.xlu0 %1746
        %v1749 = vmul.f32 %v892, %v1743
        %v1750 = vmul.f32 %v893, %v1747
        %v1751 = vadd.f32 %v1739, %v1749
        %v1752 = vadd.f32 %v1740, %v1750
        %1753 = vset.pattern.permute.xlu0 5
        %1754 = vperm.xlu0 %1753, %v1670
        %v1755 = vpop.permute.xlu0 %1754
        %1757 = vset.pattern.permute.xlu0 5
        %1758 = vperm.xlu0 %1757, %v1672
        %v1759 = vpop.permute.xlu0 %1758
        %v1761 = vmul.f32 %v898, %v1755
        %v1762 = vmul.f32 %v899, %v1759
        %v1763 = vadd.f32 %v1751, %v1761
        %v1764 = vadd.f32 %v1752, %v1762
        %1765 = vset.pattern.permute.xlu0 6
        %1766 = vperm.xlu0 %1765, %v1670
        %v1767 = vpop.permute.xlu0 %1766
        %1769 = vset.pattern.permute.xlu0 6
        %1770 = vperm.xlu0 %1769, %v1672
        %v1771 = vpop.permute.xlu0 %1770
        %v1773 = vmul.f32 %v904, %v1767
        %v1774 = vmul.f32 %v905, %v1771
        %v1775 = vadd.f32 %v1763, %v1773
        %v1776 = vadd.f32 %v1764, %v1774
        %1777 = vset.pattern.permute.xlu0 7
        %1778 = vperm.xlu0 %1777, %v1670
        %v1779 = vpop.permute.xlu0 %1778
        %1781 = vset.pattern.permute.xlu0 7
        %1782 = vperm.xlu0 %1781, %v1672
        %v1783 = vpop.permute.xlu0 %1782
        %v1785 = vmul.f32 %v910, %v1779
        %v1786 = vmul.f32 %v911, %v1783
        %v1787 = vadd.f32 %v1775, %v1785
        %v1788 = vadd.f32 %v1776, %v1786
        %1789 = vset.pattern.permute.xlu0 8
        %1790 = vperm.xlu0 %1789, %v1670
        %v1791 = vpop.permute.xlu0 %1790
        %1793 = vset.pattern.permute.xlu0 8
        %1794 = vperm.xlu0 %1793, %v1672
        %v1795 = vpop.permute.xlu0 %1794
        %v1797 = vmul.f32 %v916, %v1791
        %v1798 = vmul.f32 %v917, %v1795
        %v1799 = vadd.f32 %v1787, %v1797
        %v1800 = vadd.f32 %v1788, %v1798
        %1801 = vset.pattern.permute.xlu0 9
        %1802 = vperm.xlu0 %1801, %v1670
        %v1803 = vpop.permute.xlu0 %1802
        %1805 = vset.pattern.permute.xlu0 9
        %1806 = vperm.xlu0 %1805, %v1672
        %v1807 = vpop.permute.xlu0 %1806
        %v1809 = vmul.f32 %v922, %v1803
        %v1810 = vmul.f32 %v923, %v1807
        %v1811 = vadd.f32 %v1799, %v1809
        %v1812 = vadd.f32 %v1800, %v1810
        %1813 = vset.pattern.permute.xlu0 10
        %1814 = vperm.xlu0 %1813, %v1670
        %v1815 = vpop.permute.xlu0 %1814
        %1817 = vset.pattern.permute.xlu0 10
        %1818 = vperm.xlu0 %1817, %v1672
        %v1819 = vpop.permute.xlu0 %1818
        %v1821 = vmul.f32 %v928, %v1815
        %v1822 = vmul.f32 %v929, %v1819
        %v1823 = vadd.f32 %v1811, %v1821
        %v1824 = vadd.f32 %v1812, %v1822
        %1825 = vset.pattern.permute.xlu0 11
        %1826 = vperm.xlu0 %1825, %v1670
        %v1827 = vpop.permute.xlu0 %1826
        %1829 = vset.pattern.permute.xlu0 11
        %1830 = vperm.xlu0 %1829, %v1672
        %v1831 = vpop.permute.xlu0 %1830
        %v1833 = vmul.f32 %v934, %v1827
        %v1834 = vmul.f32 %v935, %v1831
        %v1835 = vadd.f32 %v1823, %v1833
        %v1836 = vadd.f32 %v1824, %v1834
        %1837 = vset.pattern.permute.xlu0 12
        %1838 = vperm.xlu0 %1837, %v1670
        %v1839 = vpop.permute.xlu0 %1838
        %1841 = vset.pattern.permute.xlu0 12
        %1842 = vperm.xlu0 %1841, %v1672
        %v1843 = vpop.permute.xlu0 %1842
        %v1845 = vmul.f32 %v940, %v1839
        %v1846 = vmul.f32 %v941, %v1843
        %v1847 = vadd.f32 %v1835, %v1845
        %v1848 = vadd.f32 %v1836, %v1846
        %1849 = vset.pattern.permute.xlu0 13
        %1850 = vperm.xlu0 %1849, %v1670
        %v1851 = vpop.permute.xlu0 %1850
        %1853 = vset.pattern.permute.xlu0 13
        %1854 = vperm.xlu0 %1853, %v1672
        %v1855 = vpop.permute.xlu0 %1854
        %v1857 = vmul.f32 %v946, %v1851
        %v1858 = vmul.f32 %v947, %v1855
        %v1859 = vadd.f32 %v1847, %v1857
        %v1860 = vadd.f32 %v1848, %v1858
        %1861 = vset.pattern.permute.xlu0 14
        %1862 = vperm.xlu0 %1861, %v1670
        %v1863 = vpop.permute.xlu0 %1862
        %1865 = vset.pattern.permute.xlu0 14
        %1866 = vperm.xlu0 %1865, %v1672
        %v1867 = vpop.permute.xlu0 %1866
        %v1869 = vmul.f32 %v952, %v1863
        %v1870 = vmul.f32 %v953, %v1867
        %v1871 = vadd.f32 %v1859, %v1869
        %v1872 = vadd.f32 %v1860, %v1870
        %1873 = vset.pattern.permute.xlu0 15
        %1874 = vperm.xlu0 %1873, %v1670
        %v1875 = vpop.permute.xlu0 %1874
        %1877 = vset.pattern.permute.xlu0 15
        %1878 = vperm.xlu0 %1877, %v1672
        %v1879 = vpop.permute.xlu0 %1878
        %v1881 = vmul.f32 %v958, %v1875
        %v1882 = vmul.f32 %v959, %v1879
        %v1883 = vadd.f32 %v1871, %v1881
        %v1884 = vadd.f32 %v1872, %v1882
        %1885 = vset.pattern.permute.xlu0 16
        %1886 = vperm.xlu0 %1885, %v1670
        %v1887 = vpop.permute.xlu0 %1886
        %1889 = vset.pattern.permute.xlu0 16
        %1890 = vperm.xlu0 %1889, %v1672
        %v1891 = vpop.permute.xlu0 %1890
        %v1893 = vmul.f32 %v964, %v1887
        %v1894 = vmul.f32 %v965, %v1891
        %v1895 = vadd.f32 %v1883, %v1893
        %v1896 = vadd.f32 %v1884, %v1894
        %1897 = vset.pattern.permute.xlu0 17
        %1898 = vperm.xlu0 %1897, %v1670
        %v1899 = vpop.permute.xlu0 %1898
        %1901 = vset.pattern.permute.xlu0 17
        %1902 = vperm.xlu0 %1901, %v1672
        %v1903 = vpop.permute.xlu0 %1902
        %v1905 = vmul.f32 %v970, %v1899
        %v1906 = vmul.f32 %v971, %v1903
        %v1907 = vadd.f32 %v1895, %v1905
        %v1908 = vadd.f32 %v1896, %v1906
        %1909 = vset.pattern.permute.xlu0 18
        %1910 = vperm.xlu0 %1909, %v1670
        %v1911 = vpop.permute.xlu0 %1910
        %1913 = vset.pattern.permute.xlu0 18
        %1914 = vperm.xlu0 %1913, %v1672
        %v1915 = vpop.permute.xlu0 %1914
        %v1917 = vmul.f32 %v976, %v1911
        %v1918 = vmul.f32 %v977, %v1915
        %v1919 = vadd.f32 %v1907, %v1917
        %v1920 = vadd.f32 %v1908, %v1918
        %1921 = vset.pattern.permute.xlu0 19
        %1922 = vperm.xlu0 %1921, %v1670
        %v1923 = vpop.permute.xlu0 %1922
        %1925 = vset.pattern.permute.xlu0 19
        %1926 = vperm.xlu0 %1925, %v1672
        %v1927 = vpop.permute.xlu0 %1926
        %v1929 = vmul.f32 %v982, %v1923
        %v1930 = vmul.f32 %v983, %v1927
        %v1931 = vadd.f32 %v1919, %v1929
        %v1932 = vadd.f32 %v1920, %v1930
        %1933 = vset.pattern.permute.xlu0 20
        %1934 = vperm.xlu0 %1933, %v1670
        %v1935 = vpop.permute.xlu0 %1934
        %1937 = vset.pattern.permute.xlu0 20
        %1938 = vperm.xlu0 %1937, %v1672
        %v1939 = vpop.permute.xlu0 %1938
        %v1941 = vmul.f32 %v988, %v1935
        %v1942 = vmul.f32 %v989, %v1939
        %v1943 = vadd.f32 %v1931, %v1941
        %v1944 = vadd.f32 %v1932, %v1942
        %v1945 = vsel %vm862, -10000.0, %v1943
        %v1946 = vsel %vm863, -10000.0, %v1944
        %v1947 = vsel %vm1050, %v1945, -inf
        %1948 = vmax.xlane.f32.xlu0 %v1947
        %v1949 = vpop.xlane.xlu0 %1948
        %v1950 = vsel %vm1050, %v1946, -inf
        %1951 = vmax.xlane.f32.xlu0 %v1950
        %v1952 = vpop.xlane.xlu0 %1951
        %v1953 = vsub.f32 %v1945, %v1949
        %v1954 = vsub.f32 %v1946, %v1952
        %v1955 = vmul.f32 %v1953, 1.442695
        %v1956 = vpow.pop %v1955
        %v1957 = vmul.f32 %v1954, 1.442695
        %v1958 = vpow.pop %v1957
        %v1959 = vsel %vm1050, %v1956, 0.0
        %1960 = vadd.xlane.f32.xlu0 %v1959
        %v1961 = vpop.xlane.xlu0 %1960
        %v1962 = vsel %vm1050, %v1958, 0.0
        %1963 = vadd.xlane.f32.xlu0 %v1962
        %v1964 = vpop.xlane.xlu0 %1963
        %v1965 = vrcp.pop %v1961
        %v1966 = vrcp.pop %v1964
        %v1967 = vmul.f32 %v1956, %v1965
        %v1968 = vmul.f32 %v1958, %v1966
        %v1969 = vpack.c.bf16 %v1968, %v1967
        %v1970 = vmul.f32 %v1967, %v868
        %v1971 = vmul.f32 %v1968, %v869
        %v1972 = vsel %vm1050, %v1970, 0.0
        %1973 = vadd.xlane.f32.xlu0 %v1972
        %v1974 = vpop.xlane.xlu0 %1973
        %v1975 = vsel %vm1050, %v1971, 0.0
        %1976 = vadd.xlane.f32.xlu0 %v1975
        %v1977 = vpop.xlane.xlu0 %1976
        %v1978 = vmul.f32 %v1967, %v874
        %v1979 = vmul.f32 %v1968, %v875
        %v1980 = vsel %vm1050, %v1978, 0.0
        %1981 = vadd.xlane.f32.xlu0 %v1980
        %v1982 = vpop.xlane.xlu0 %1981
        %v1983 = vsel %vm1050, %v1979, 0.0
        %1984 = vadd.xlane.f32.xlu0 %v1983
        %v1985 = vpop.xlane.xlu0 %1984
        %v1986 = vmul.f32 %v1967, %v880
        %v1987 = vmul.f32 %v1968, %v881
        %v1988 = vsel %vm1050, %v1986, 0.0
        %1989 = vadd.xlane.f32.xlu0 %v1988
        %v1990 = vpop.xlane.xlu0 %1989
        %v1991 = vsel %vm1050, %v1987, 0.0
        %1992 = vadd.xlane.f32.xlu0 %v1991
        %v1993 = vpop.xlane.xlu0 %1992
        %v1994 = vmul.f32 %v1967, %v886
        %v1995 = vmul.f32 %v1968, %v887
        %v1996 = vsel %vm1050, %v1994, 0.0
        %1997 = vadd.xlane.f32.xlu0 %v1996
        %v1998 = vpop.xlane.xlu0 %1997
        %v1999 = vsel %vm1050, %v1995, 0.0
        %2000 = vadd.xlane.f32.xlu0 %v1999
        %v2001 = vpop.xlane.xlu0 %2000
        %v2002 = vmul.f32 %v1967, %v892
        %v2003 = vmul.f32 %v1968, %v893
        %v2004 = vsel %vm1050, %v2002, 0.0
        %2005 = vadd.xlane.f32.xlu0 %v2004
        %v2006 = vpop.xlane.xlu0 %2005
        %v2007 = vsel %vm1050, %v2003, 0.0
        %2008 = vadd.xlane.f32.xlu0 %v2007
        %v2009 = vpop.xlane.xlu0 %2008
        %v2010 = vmul.f32 %v1967, %v898
        %v2011 = vmul.f32 %v1968, %v899
        %v2012 = vsel %vm1050, %v2010, 0.0
        %2013 = vadd.xlane.f32.xlu0 %v2012
        %v2014 = vpop.xlane.xlu0 %2013
        %v2015 = vsel %vm1050, %v2011, 0.0
        %2016 = vadd.xlane.f32.xlu0 %v2015
        %v2017 = vpop.xlane.xlu0 %2016
        %v2018 = vmul.f32 %v1967, %v904
        %v2019 = vmul.f32 %v1968, %v905
        %v2020 = vsel %vm1050, %v2018, 0.0
        %2021 = vadd.xlane.f32.xlu0 %v2020
        %v2022 = vpop.xlane.xlu0 %2021
        %v2023 = vsel %vm1050, %v2019, 0.0
        %2024 = vadd.xlane.f32.xlu0 %v2023
        %v2025 = vpop.xlane.xlu0 %2024
        %v2026 = vmul.f32 %v1967, %v910
        %v2027 = vmul.f32 %v1968, %v911
        %v2028 = vsel %vm1050, %v2026, 0.0
        %2029 = vadd.xlane.f32.xlu0 %v2028
        %v2030 = vpop.xlane.xlu0 %2029
        %v2031 = vsel %vm1050, %v2027, 0.0
        %2032 = vadd.xlane.f32.xlu0 %v2031
        %v2033 = vpop.xlane.xlu0 %2032
        %v2034 = vmul.f32 %v1967, %v916
        %v2035 = vmul.f32 %v1968, %v917
        %v2036 = vsel %vm1050, %v2034, 0.0
        %2037 = vadd.xlane.f32.xlu0 %v2036
        %v2038 = vpop.xlane.xlu0 %2037
        %v2039 = vsel %vm1050, %v2035, 0.0
        %2040 = vadd.xlane.f32.xlu0 %v2039
        %v2041 = vpop.xlane.xlu0 %2040
        %v2042 = vmul.f32 %v1967, %v922
        %v2043 = vmul.f32 %v1968, %v923
        %v2044 = vsel %vm1050, %v2042, 0.0
        %2045 = vadd.xlane.f32.xlu0 %v2044
        %v2046 = vpop.xlane.xlu0 %2045
        %v2047 = vsel %vm1050, %v2043, 0.0
        %2048 = vadd.xlane.f32.xlu0 %v2047
        %v2049 = vpop.xlane.xlu0 %2048
        %v2050 = vmul.f32 %v1967, %v928
        %v2051 = vmul.f32 %v1968, %v929
        %v2052 = vsel %vm1050, %v2050, 0.0
        %2053 = vadd.xlane.f32.xlu0 %v2052
        %v2054 = vpop.xlane.xlu0 %2053
        %v2055 = vsel %vm1050, %v2051, 0.0
        %2056 = vadd.xlane.f32.xlu0 %v2055
        %v2057 = vpop.xlane.xlu0 %2056
        %v2058 = vmul.f32 %v1967, %v934
        %v2059 = vmul.f32 %v1968, %v935
        %v2060 = vsel %vm1050, %v2058, 0.0
        %2061 = vadd.xlane.f32.xlu0 %v2060
        %v2062 = vpop.xlane.xlu0 %2061
        %v2063 = vsel %vm1050, %v2059, 0.0
        %2064 = vadd.xlane.f32.xlu0 %v2063
        %v2065 = vpop.xlane.xlu0 %2064
        %v2066 = vmul.f32 %v1967, %v940
        %v2067 = vmul.f32 %v1968, %v941
        %v2068 = vsel %vm1050, %v2066, 0.0
        %2069 = vadd.xlane.f32.xlu0 %v2068
        %v2070 = vpop.xlane.xlu0 %2069
        %v2071 = vsel %vm1050, %v2067, 0.0
        %2072 = vadd.xlane.f32.xlu0 %v2071
        %v2073 = vpop.xlane.xlu0 %2072
        %v2074 = vmul.f32 %v1967, %v946
        %v2075 = vmul.f32 %v1968, %v947
        %v2076 = vsel %vm1050, %v2074, 0.0
        %2077 = vadd.xlane.f32.xlu0 %v2076
        %v2078 = vpop.xlane.xlu0 %2077
        %v2079 = vsel %vm1050, %v2075, 0.0
        %2080 = vadd.xlane.f32.xlu0 %v2079
        %v2081 = vpop.xlane.xlu0 %2080
        %v2082 = vmul.f32 %v1967, %v952
        %v2083 = vmul.f32 %v1968, %v953
        %v2084 = vsel %vm1050, %v2082, 0.0
        %2085 = vadd.xlane.f32.xlu0 %v2084
        %v2086 = vpop.xlane.xlu0 %2085
        %v2087 = vsel %vm1050, %v2083, 0.0
        %2088 = vadd.xlane.f32.xlu0 %v2087
        %v2089 = vpop.xlane.xlu0 %2088
        %v2090 = vmul.f32 %v1967, %v958
        %v2091 = vmul.f32 %v1968, %v959
        %v2092 = vsel %vm1050, %v2090, 0.0
        %2093 = vadd.xlane.f32.xlu0 %v2092
        %v2094 = vpop.xlane.xlu0 %2093
        %v2095 = vsel %vm1050, %v2091, 0.0
        %2096 = vadd.xlane.f32.xlu0 %v2095
        %v2097 = vpop.xlane.xlu0 %2096
        %v2098 = vmul.f32 %v1967, %v964
        %v2099 = vmul.f32 %v1968, %v965
        %v2100 = vsel %vm1050, %v2098, 0.0
        %2101 = vadd.xlane.f32.xlu0 %v2100
        %v2102 = vpop.xlane.xlu0 %2101
        %v2103 = vsel %vm1050, %v2099, 0.0
        %2104 = vadd.xlane.f32.xlu0 %v2103
        %v2105 = vpop.xlane.xlu0 %2104
        %v2106 = vmul.f32 %v1967, %v970
        %v2107 = vmul.f32 %v1968, %v971
        %v2108 = vsel %vm1050, %v2106, 0.0
        %2109 = vadd.xlane.f32.xlu0 %v2108
        %v2110 = vpop.xlane.xlu0 %2109
        %v2111 = vsel %vm1050, %v2107, 0.0
        %2112 = vadd.xlane.f32.xlu0 %v2111
        %v2113 = vpop.xlane.xlu0 %2112
        %v2114 = vmul.f32 %v1967, %v976
        %v2115 = vmul.f32 %v1968, %v977
        %v2116 = vsel %vm1050, %v2114, 0.0
        %2117 = vadd.xlane.f32.xlu0 %v2116
        %v2118 = vpop.xlane.xlu0 %2117
        %v2119 = vsel %vm1050, %v2115, 0.0
        %2120 = vadd.xlane.f32.xlu0 %v2119
        %v2121 = vpop.xlane.xlu0 %2120
        %v2122 = vmul.f32 %v1967, %v982
        %v2123 = vmul.f32 %v1968, %v983
        %v2124 = vsel %vm1050, %v2122, 0.0
        %2125 = vadd.xlane.f32.xlu0 %v2124
        %v2126 = vpop.xlane.xlu0 %2125
        %v2127 = vsel %vm1050, %v2123, 0.0
        %2128 = vadd.xlane.f32.xlu0 %v2127
        %v2129 = vpop.xlane.xlu0 %2128
        %v2130 = vmul.f32 %v1967, %v988
        %v2131 = vmul.f32 %v1968, %v989
        %v2132 = vsel %vm1050, %v2130, 0.0
        %2133 = vadd.xlane.f32.xlu0 %v2132
        %v2134 = vpop.xlane.xlu0 %2133
        %v2135 = vsel %vm1050, %v2131, 0.0
        %2136 = vadd.xlane.f32.xlu0 %v2135
        %v2137 = vpop.xlane.xlu0 %2136
        %v2138 = vsel %vm1538, %v1974, %v1982
        %v2139 = vsel %vm1538, %v1977, %v1985
        %v2140 = vsel %vm1541, %v2138, %v1990
        %v2141 = vsel %vm1541, %v2139, %v1993
        %v2142 = vsel %vm1544, %v2140, %v1998
        %v2143 = vsel %vm1544, %v2141, %v2001
        %v2144 = vsel %vm1547, %v2142, %v2006
        %v2145 = vsel %vm1547, %v2143, %v2009
        %v2146 = vsel %vm1550, %v2144, %v2014
        %v2147 = vsel %vm1550, %v2145, %v2017
        %v2148 = vsel %vm1553, %v2146, %v2022
        %v2149 = vsel %vm1553, %v2147, %v2025
        %v2150 = vsel %vm1556, %v2148, %v2030
        %v2151 = vsel %vm1556, %v2149, %v2033
        %v2152 = vsel %vm1559, %v2150, %v2038
        %v2153 = vsel %vm1559, %v2151, %v2041
        %v2154 = vsel %vm1562, %v2152, %v2046
        %v2155 = vsel %vm1562, %v2153, %v2049
        %v2156 = vsel %vm1565, %v2154, %v2054
        %v2157 = vsel %vm1565, %v2155, %v2057
        %v2158 = vsel %vm1568, %v2156, %v2062
        %v2159 = vsel %vm1568, %v2157, %v2065
        %v2160 = vsel %vm1571, %v2158, %v2070
        %v2161 = vsel %vm1571, %v2159, %v2073
        %v2162 = vsel %vm1574, %v2160, %v2078
        %v2163 = vsel %vm1574, %v2161, %v2081
        %v2164 = vsel %vm1577, %v2162, %v2086
        %v2165 = vsel %vm1577, %v2163, %v2089
        %v2166 = vsel %vm1580, %v2164, %v2094
        %v2167 = vsel %vm1580, %v2165, %v2097
        %v2168 = vsel %vm1538, %v2102, %v2110
        %v2169 = vsel %vm1538, %v2105, %v2113
        %v2170 = vsel %vm1541, %v2168, %v2118
        %v2171 = vsel %vm1541, %v2169, %v2121
        %v2172 = vsel %vm1544, %v2170, %v2126
        %v2173 = vsel %vm1544, %v2171, %v2129
        %v2174 = vsel %vm1547, %v2172, %v2134
        %v2175 = vsel %vm1547, %v2173, %v2137
        %2178 = vrot.lane.b32.xlu0 %v2174, 16
        %v2179 = vpop.permute.xlu0 %2178
        %2180 = vrot.lane.b32.xlu0 %v2175, 16
        %v2181 = vpop.permute.xlu0 %2180
        %v2184 = vsel %vm1050, %v2166, %v2179
        %v2185 = vsel %vm1050, %v2167, %v2181
        %v2187 = vsel %vm1601, %v2184, 0
        %v2190 = vsel %vm1601, %v2185, 0
        %2192 = vmatpush.msra.mxu0 0.0
        %2193 = vmatpush.msra.mxu0 0.0
        %2194 = vmatpush.msra.mxu0 0.0
        %2195 = vmatpush.msra.mxu0 0.0
        %2196 = vmatpush.msra.mxu0 0.0
        %2197 = vmatpush.msra.mxu0 0.0
        %2198 = vmatpush.msra.mxu0 0.0
        %2199 = vmatpush.msra.mxu0 0.0
        %2200 = vmatpush.msra.mxu0 0.0
        %2201 = vmatpush.msra.mxu0 0.0
        %2202 = vmatpush.msra.mxu0 0.0
        %2203 = vmatpush.msra.mxu0 0.0
        %2204 = vmatpush.msra.mxu0 0.0
        %2205 = vmatpush.msra.mxu0 %v1610
        %2206 = vmatpush.msra.mxu0 %v994
        %2207 = vmatpush.msra.mxu0 %v993
        %2208 = vmatmul.f32.gmra.mxu0 %v2187
        %v2209 = vpop.f32.mrf.mxu0
        %v2210 = vadd.f32 0.0, %v2209
        %2211 = vmatmul.f32.gmra.mxu0 %v2190
        %v2212 = vpop.f32.mrf.mxu0
        %v2213 = vadd.f32 0.0, %v2212
        %2214 = vdwg.mxu0
        %2215 = vrot.lane.b32.xlu0 %v1041, 48
        %v2216 = vpop.permute.xlu0 %2215
        %v2219 = vsel %vm1050, %v1969, 0
        %2221 = vmatpush.bf16.msra.mxu0 0
        %2222 = vmatpush.bf16.msra.mxu0 0
        %2223 = vmatpush.bf16.msra.mxu0 0
        %2224 = vmatpush.bf16.msra.mxu0 0
        %2225 = vmatpush.bf16.msra.mxu0 0
        %2226 = vmatpush.bf16.msra.mxu0 0
        %2227 = vmatpush.bf16.msra.mxu0 0
        %2228 = vmatpush.bf16.msra.mxu0 %v2216
        %2229 = vmatmul.bf16.gmra.mxu0 %v2219
        %v2230 = vpop.f32.mrf.mxu0
        %v2231 = vadd.f32 %v2210, %v2230
        %v2232 = vpop.f32.mrf.mxu0
        %v2233 = vadd.f32 %v2213, %v2232
        %2234 = vdwg.mxu0
        %2237 = vrot.lane.b32.xlu0 %v2231, 16
        %v2238 = vpop.permute.xlu0 %2237
        %2239 = vrot.lane.b32.xlu0 %v2233, 16
        %v2240 = vpop.permute.xlu0 %2239
        %v2243 = vsel %vm1050, %v1651, %v2238
        %v2244 = vsel %vm1050, %v1653, %v2240
        %v2245 = vpack.c.bf16 %v2244, %v2243
        %v2246 = vld [vmem:[%s783] sm:$0xf]
        %v2247 = vld [vmem:[%s783 + $0x4] sm:$0xf]
        %v2248 = vld [vmem:[%s783 + $0x8] sm:$0xf]
        %v2249 = vld [vmem:[%s783 + $0xc] sm:$0xf]
        %v2250 = vld [vmem:[%s786] sm:$0x1]
        %v2252 = vperm.slane %v2250, 0
        %v2258 = vunpack.c.l.b16 %v2246
        %v2259 = vunpack.c.l.b16 %v2247
        %v2260 = vunpack.c.l.b16 %v2248
        %v2261 = vunpack.c.l.b16 %v2249
        %v2262 = vpack.c.b16 %v2259, %v2258
        %v2263 = vpack.c.b16 %v2261, %v2260
        %v2267 = vsel %vm1017, %v2245, 0
        %2269 = vmatpush.bf16.msra.mxu0 0
        %2270 = vmatpush.bf16.msra.mxu0 0
        %2271 = vmatpush.bf16.msra.mxu0 0
        %2272 = vmatpush.bf16.msra.mxu0 0
        %2273 = vmatpush.bf16.msra.mxu0 0
        %2274 = vmatpush.bf16.msra.mxu0 0
        %2275 = vmatpush.bf16.msra.mxu0 %v2263
        %2276 = vmatpush.bf16.msra.mxu0 %v2262
        %2277 = vmatmul.bf16.gmra.mxu0 %v2267
        %v2278 = vpop.f32.mrf.mxu0
        %v2279 = vadd.f32 %v2252, %v2278
        %v2280 = vpop.f32.mrf.mxu0
        %v2281 = vadd.f32 %v2252, %v2280
        %2282 = vdwg.mxu0
        %v2283 = vadd.f32 %v835, %v2279
        %v2284 = vadd.f32 %v836, %v2281
        %v2285 = vld [vmem:[%s789] sm:$0x1]
        %v2286 = vld [vmem:[%s792] sm:$0x1]
        %v2287 = vsel %vm1017, %v2283, 0.0
        %2288 = vadd.xlane.f32.xlu0 %v2287
        %v2289 = vpop.xlane.xlu0 %2288
        %v2290 = vsel %vm1017, %v2284, 0.0
        %2291 = vadd.xlane.f32.xlu0 %v2290
        %v2292 = vpop.xlane.xlu0 %2291
        %v2293 = vrcp.pop 32.0
        %v2294 = vmul.f32 32.0, %v2293
        %v2295 = vsub.f32 1.0, %v2294
        %v2296 = vmul.f32 %v2293, %v2295
        %v2297 = vadd.f32 %v2293, %v2296
        %vm2298 = vweird.f32 %v2293
        %v2299 = vsel %vm2298, %v2293, %v2297
        %v2300 = vmul.f32 %v2289, %v2299
        %v2301 = vmul.f32 %v2292, %v2299
        %v2302 = vsub.f32 %v2283, %v2300
        %v2303 = vsub.f32 %v2284, %v2301
        %v2304 = vmul.f32 %v2302, %v2302
        %v2305 = vmul.f32 %v2303, %v2303
        %v2306 = vsel %vm1017, %v2304, 0.0
        %2307 = vadd.xlane.f32.xlu0 %v2306
        %v2308 = vpop.xlane.xlu0 %2307
        %v2309 = vsel %vm1017, %v2305, 0.0
        %2310 = vadd.xlane.f32.xlu0 %v2309
        %v2311 = vpop.xlane.xlu0 %2310
        %v2312 = vmul.f32 %v2308, %v2299
        %v2313 = vmul.f32 %v2311, %v2299
        %v2314 = vadd.f32 %v2312, 1e-05
        %v2315 = vadd.f32 %v2313, 1e-05
        %v2316 = vrsqrt.pop %v2314
        %v2317 = vmul.f32 %v2316, %v2314
        %v2318 = vmul.f32 %v2317, %v2316
        %v2319 = vmul.f32 0.5, %v2318
        %v2320 = vsub.f32 1.5, %v2319
        %v2321 = vmul.f32 %v2316, %v2320
        %vm2322 = vweird.f32 %v2314
        %vm2323 = vweird.f32 %v2316
        %vm2324 = vmor %vm2322, %vm2323
        %v2325 = vsel %vm2324, %v2316, %v2321
        %v2326 = vrsqrt.pop %v2315
        %v2327 = vmul.f32 %v2326, %v2315
        %v2328 = vmul.f32 %v2327, %v2326
        %v2329 = vmul.f32 0.5, %v2328
        %v2330 = vsub.f32 1.5, %v2329
        %v2331 = vmul.f32 %v2326, %v2330
        %vm2332 = vweird.f32 %v2315
        %vm2333 = vweird.f32 %v2326
        %vm2334 = vmor %vm2332, %vm2333
        %v2335 = vsel %vm2334, %v2326, %v2331
        %v2336 = vmul.f32 %v2302, %v2325
        %v2337 = vmul.f32 %v2303, %v2335
        %v2339 = vperm.slane %v2285, 0
        %v2341 = vmul.f32 %v2336, %v2339
        %v2342 = vmul.f32 %v2337, %v2339
        %v2344 = vperm.slane %v2286, 0
        %v2346 = vadd.f32 %v2341, %v2344
        %v2347 = vadd.f32 %v2342, %v2344
        %v2348 = vmul.f32 %v2346, %v850
        %v2349 = vmul.f32 %v2347, %v855
        %v2350 = vpack.c.bf16 %v2349, %v2348
        %v2351 = vld [vmem:[%s797] sm:$0xf]
        %v2352 = vld [vmem:[%s797 + $0x4] sm:$0xf]
        %v2353 = vld [vmem:[%s797 + $0x8] sm:$0xf]
        %v2354 = vld [vmem:[%s797 + $0xc] sm:$0xf]
        %v2355 = vld [vmem:[%s800] sm:$0x1]
        %v2357 = vperm.slane %v2355, 0
        %v2363 = vunpack.c.l.b16 %v2351
        %v2364 = vunpack.c.l.b16 %v2352
        %v2365 = vunpack.c.l.b16 %v2353
        %v2366 = vunpack.c.l.b16 %v2354
        %v2367 = vpack.c.b16 %v2364, %v2363
        %v2368 = vpack.c.b16 %v2366, %v2365
        %v2372 = vsel %vm1017, %v2350, 0
        %2374 = vmatpush.bf16.msra.mxu0 0
        %2375 = vmatpush.bf16.msra.mxu0 0
        %2376 = vmatpush.bf16.msra.mxu0 0
        %2377 = vmatpush.bf16.msra.mxu0 0
        %2378 = vmatpush.bf16.msra.mxu0 0
        %2379 = vmatpush.bf16.msra.mxu0 0
        %2380 = vmatpush.bf16.msra.mxu0 %v2368
        %2381 = vmatpush.bf16.msra.mxu0 %v2367
        %2382 = vmatmul.bf16.gmra.mxu0 %v2372
        %v2383 = vpop.f32.mrf.mxu0
        %v2384 = vadd.f32 %v2357, %v2383
        %v2385 = vpop.f32.mrf.mxu0
        %v2386 = vadd.f32 %v2357, %v2385
        %2387 = vdwg.mxu0
        %v2388 = vmax.f32 %v2384, 0.0
        %v2389 = vmax.f32 %v2386, 0.0
        %v2390 = vmul.f32 %v2388, %v850
        %v2391 = vmul.f32 %v2389, %v855
        %v2392 = vpack.c.bf16 %v2391, %v2390
        %v2393 = vld [vmem:[%s805] sm:$0xf]
        %v2394 = vld [vmem:[%s805 + $0x4] sm:$0xf]
        %v2395 = vld [vmem:[%s805 + $0x8] sm:$0xf]
        %v2396 = vld [vmem:[%s805 + $0xc] sm:$0xf]
        %v2397 = vld [vmem:[%s805 + $0x10] sm:$0xf]
        %v2398 = vld [vmem:[%s805 + $0x14] sm:$0xf]
        %v2399 = vld [vmem:[%s805 + $0x18] sm:$0xf]
        %v2400 = vld [vmem:[%s805 + $0x1c] sm:$0xf]
        %v2401 = vld [vmem:[%s808] sm:$0x1]
        %v2403 = vperm.slane %v2401, 0
        %v2413 = vunpack.c.l.b16 %v2393
        %v2414 = vunpack.c.l.b16 %v2394
        %v2415 = vunpack.c.l.b16 %v2395
        %v2416 = vunpack.c.l.b16 %v2396
        %v2417 = vunpack.c.l.b16 %v2397
        %v2418 = vunpack.c.l.b16 %v2398
        %v2419 = vunpack.c.l.b16 %v2399
        %v2420 = vunpack.c.l.b16 %v2400
        %v2421 = vpack.c.b16 %v2414, %v2413
        %v2422 = vpack.c.b16 %v2416, %v2415
        %v2423 = vpack.c.b16 %v2418, %v2417
        %v2424 = vpack.c.b16 %v2420, %v2419
        %vm2429 = vcmask 523264
        %v2431 = vsel %vm2429, %v2392, 0
        %2433 = vmatpush.bf16.msra.mxu0 0
        %2434 = vmatpush.bf16.msra.mxu0 0
        %2435 = vmatpush.bf16.msra.mxu0 0
        %2436 = vmatpush.bf16.msra.mxu0 0
        %2437 = vmatpush.bf16.msra.mxu0 %v2424
        %2438 = vmatpush.bf16.msra.mxu0 %v2423
        %2439 = vmatpush.bf16.msra.mxu0 %v2422
        %2440 = vmatpush.bf16.msra.mxu0 %v2421
        %2441 = vmatmul.bf16.gmra.mxu0 %v2431
        %v2442 = vpop.f32.mrf.mxu0
        %v2443 = vadd.f32 %v2403, %v2442
        %v2444 = vpop.f32.mrf.mxu0
        %v2445 = vadd.f32 %v2403, %v2444
        %2446 = vdwg.mxu0
        %v2447 = vmul.f32 %v2443, %v850
        %v2448 = vmul.f32 %v2445, %v855
        %v2449 = vadd.f32 %v2346, %v2447
        %v2450 = vadd.f32 %v2347, %v2448
        %v2451 = vld [vmem:[%s811] sm:$0x1]
        %v2452 = vld [vmem:[%s814] sm:$0x1]
        %v2453 = vsel %vm1017, %v2449, 0.0
        %2454 = vadd.xlane.f32.xlu0 %v2453
        %v2455 = vpop.xlane.xlu0 %2454
        %v2456 = vsel %vm1017, %v2450, 0.0
        %2457 = vadd.xlane.f32.xlu0 %v2456
        %v2458 = vpop.xlane.xlu0 %2457
        %v2459 = vmul.f32 %v2455, %v2299
        %v2460 = vmul.f32 %v2458, %v2299
        %v2461 = vsub.f32 %v2449, %v2459
        %v2462 = vsub.f32 %v2450, %v2460
        %v2463 = vmul.f32 %v2461, %v2461
        %v2464 = vmul.f32 %v2462, %v2462
        %v2465 = vsel %vm1017, %v2463, 0.0
        %2466 = vadd.xlane.f32.xlu0 %v2465
        %v2467 = vpop.xlane.xlu0 %2466
        %v2468 = vsel %vm1017, %v2464, 0.0
        %2469 = vadd.xlane.f32.xlu0 %v2468
        %v2470 = vpop.xlane.xlu0 %2469
        %v2471 = vmul.f32 %v2467, %v2299
        %v2472 = vmul.f32 %v2470, %v2299
        %v2473 = vadd.f32 %v2471, 1e-05
        %v2474 = vadd.f32 %v2472, 1e-05
        %v2475 = vrsqrt.pop %v2473
        %v2476 = vmul.f32 %v2475, %v2473
        %v2477 = vmul.f32 %v2476, %v2475
        %v2478 = vmul.f32 0.5, %v2477
        %v2479 = vsub.f32 1.5, %v2478
        %v2480 = vmul.f32 %v2475, %v2479
        %vm2481 = vweird.f32 %v2473
        %vm2482 = vweird.f32 %v2475
        %vm2483 = vmor %vm2481, %vm2482
        %v2484 = vsel %vm2483, %v2475, %v2480
        %v2485 = vrsqrt.pop %v2474
        %v2486 = vmul.f32 %v2485, %v2474
        %v2487 = vmul.f32 %v2486, %v2485
        %v2488 = vmul.f32 0.5, %v2487
        %v2489 = vsub.f32 1.5, %v2488
        %v2490 = vmul.f32 %v2485, %v2489
        %vm2491 = vweird.f32 %v2474
        %vm2492 = vweird.f32 %v2485
        %vm2493 = vmor %vm2491, %vm2492
        %v2494 = vsel %vm2493, %v2485, %v2490
        %v2495 = vmul.f32 %v2461, %v2484
        %v2496 = vmul.f32 %v2462, %v2494
        %v2498 = vperm.slane %v2451, 0
        %v2500 = vmul.f32 %v2495, %v2498
        %v2501 = vmul.f32 %v2496, %v2498
        %v2503 = vperm.slane %v2452, 0
        %v2505 = vadd.f32 %v2500, %v2503
        %v2506 = vadd.f32 %v2501, %v2503
        %2507 = vst.msk [vmem:[%s757] sm:$0xff] %vm1017, %v2505
        %2508 = vst.msk [vmem:[%s757 + $0x8] sm:$0xff] %vm1017, %v2506
        %s2509 = sand.u32 %s493, 1
        %s2510 = scalar_lea.sflag [#allocation3], %s2509
        %s2511 = sand.u32 %s493, 1
        %s2512 = smul.addr %s2511, 16
        %s2513 = scalar_lea.vmem [#allocation2], %s2512
        // Predicated region
        $region93: #{tpu_custom_call.1} parent=87 // pred_check
          %p2514 = pneg %p503
        $region94: #{tpu_custom_call.1} parent=87 // pred_check_branch
          %2516 = sbr.rel (%p2514) target = $region96
        $region95: #{tpu_custom_call.1} parent=87 // pred_region
          %2518 = vsyncadd %s2510, 0
          %s2519 = smul.addr %s35, 2
          %s2520 = smul.addr %s2519, 8
          %s2521 = scalar_lea.hbm %s17, %s2520
          %s2522 = sshll.u32 %s2513, 4
          %s2523 = int_to_ptr.vmem [resolvable:$true] %s2522
          %s2524 = sshll.u32 %s2521, 4
          %s2525 = int_to_ptr.hbm [resolvable:$true] %s2524
          %2530 = dma.vmem_to_hbm [thread:$0]  %s2523, 256, %s2525, %s2510, 128, 128, 8
        $region96: #{tpu_custom_call.1} parent=87 // pred_fallthru
          _
      $region88: #{tpu_custom_call.1} parent=5 // pred_fallthru
        _
      %p2531 = scmp.le.s32.totalorder 2, %s26
      // Predicated region
      $region97: #{tpu_custom_call.1} parent=5 // pred_check
        %p2532 = pneg %p2531
      $region98: #{tpu_custom_call.1} parent=5 // pred_check_branch
        %2534 = sbr.rel (%p2532) target = $region100
      $region99: #{tpu_custom_call.1} parent=5 // pred_region
        %s2535 = ssub.s32 %s26, 2
        // Predicated region
        $region101: #{tpu_custom_call.1} parent=99 // pred_check
          %p2536 = pneg %p509
        $region102: #{tpu_custom_call.1} parent=99 // pred_check_branch
          %2538 = sbr.rel (%p2536) target = $region104
        $region103: #{tpu_custom_call.1} parent=99 // pred_region
          %s2539 = sand.u32 %s494, 1
          %s2540 = scalar_lea.sflag [#allocation3], %s2539
          %s2541 = sand.u32 %s494, 1
          %s2542 = smul.addr %s2541, 16
          %s2543 = scalar_lea.vmem [#allocation2], %s2542
          %2545 = dma.done %s2540, 256
        $region104: #{tpu_custom_call.1} parent=99 // pred_fallthru
          _
      $region100: #{tpu_custom_call.1} parent=5 // pred_fallthru
        _
    $region6: #{tpu_custom_call.1} parent=1 // loop_footer
      %s30 = sadd.s32 1, %s26
    $region7: #{tpu_custom_call.1} parent=1 // loop_footer_branch
      %25 = sbr.rel target = $region3
    $region8: #{tpu_custom_call.1} parent=1 // loop_exit
      _
    %2546 = vsyncpa [#allocation3], 1
    %s2547 = scalar_lea.sflag [#allocation3], 1
    %2548 = vsyncpa %s2547, 1

</llo_original>
